<compile_context>
chip_gen: v7x
topology: tpu7x:2x2x1
jax: 0.10.0
libtpu: 0.0.40
codegen_flags: <defaults>
</compile_context>

<pallas_src>
import jax
import jax.numpy as jnp
from jax.experimental import pallas as pl
from jax.experimental.pallas import tpu as pltpu

IN_FEATURES = 9216
OUT_FEATURES = 62


def _linear_logsoftmax_kernel(x_ref, w_ref, b_ref, o_ref):
    # (B, K) @ (K, 62) on the MXU with f32 accumulation.
    logits = (
        jnp.dot(x_ref[...], w_ref[...], preferred_element_type=jnp.float32)
        + b_ref[...]
    )
    # Fused, numerically-stable log_softmax over the feature (lane) axis.
    m = jnp.max(logits, axis=-1, keepdims=True)
    z = logits - m
    lse = jnp.log(jnp.sum(jnp.exp(z), axis=-1, keepdims=True))
    o_ref[...] = (z - lse).astype(o_ref.dtype)


@jax.jit
def aux_model_femnist_forward(x, w_t, b):
    """x: (B, 9216) f32, w_t: (9216, 62) f32, b: (62,) f32 -> (B, 62) f32."""
    B, K = x.shape
    assert K == IN_FEATURES
    b2d = b.reshape(1, OUT_FEATURES)  # tiny; kept 2-D for TPU layout

    return pl.pallas_call(
        _linear_logsoftmax_kernel,
        out_shape=jax.ShapeDtypeStruct((B, OUT_FEATURES), jnp.float32),
        grid_spec=pltpu.PrefetchScalarGridSpec(
            num_scalar_prefetch=0,
            grid=(1,),
            in_specs=[
                pl.BlockSpec((B, K), lambda i: (0, 0)),             # x (whole)
                pl.BlockSpec((K, OUT_FEATURES), lambda i: (0, 0)),  # W (whole, 62 lanes)
                pl.BlockSpec((1, OUT_FEATURES), lambda i: (0, 0)),  # bias
            ],
            out_specs=pl.BlockSpec((B, OUT_FEATURES), lambda i: (0, 0)),
        ),
        compiler_params=pltpu.CompilerParams(
            dimension_semantics=("arbitrary",),
        ),
    )(x, w_t, b2d)


def _init_params(key):
    """Deterministic init mimicking nn.Linear defaults (uniform ±1/sqrt(fan_in))."""
    kw, kb = jax.random.split(key)
    bound = 1.0 / jnp.sqrt(jnp.float32(IN_FEATURES))
    # PyTorch stores weight as (out, in); we keep the transposed (in, out) layout
    # so the kernel is a plain x @ W.
    w_t = jax.random.uniform(
        kw, (IN_FEATURES, OUT_FEATURES), jnp.float32, -bound, bound
    )
    b = jax.random.uniform(kb, (OUT_FEATURES,), jnp.float32, -bound, bound)
    return w_t, b


if __name__ == "__main__":
    key = jax.random.PRNGKey(0)
    k_param, k_x = jax.random.split(key)

    w_t, b = _init_params(k_param)

    # Small batch; feature dim is fixed at 9216 by the module definition.
    B = 2
    x = jax.random.normal(k_x, (B, IN_FEATURES), jnp.float32)

    out = aux_model_femnist_forward(x, w_t, b)
    out = jax.block_until_ready(out)

    # Pure-JAX reference check.
    ref = jax.nn.log_softmax(x @ w_t + b, axis=1)
    assert out.shape == (B, OUT_FEATURES)
    assert jnp.allclose(out, ref, atol=1e-4, rtol=1e-4), (
        float(jnp.max(jnp.abs(out - ref)))
    )

    print("KERNEL_OK")
</pallas_src>

<mosaic_0001>
module attributes {stable_mosaic.version = 11 : i64} {
  func.func @_linear_logsoftmax_kernel(%arg0: i32, %arg1: memref<2x9216xf32, #tpu.memory_space<vmem>>, %arg2: memref<9216x62xf32, #tpu.memory_space<vmem>>, %arg3: memref<1x62xf32, #tpu.memory_space<vmem>>, %arg4: memref<2x62xf32, #tpu.memory_space<vmem>>) attributes {dimension_semantics = [#tpu.dimension_semantics<arbitrary>], iteration_bounds = array<i64: 1>, scalar_prefetch = 0 : i64, scratch_operands = 0 : i64, tpu.core_type = #tpu.core_type<tc>, window_params = [{pipeline_mode = #tpu.pipeline_mode<synchronous>, transform_indices = @transform_0, window_bounds = array<i64: 2, 9216>}, {pipeline_mode = #tpu.pipeline_mode<synchronous>, transform_indices = @transform_1, window_bounds = array<i64: 9216, 62>}, {pipeline_mode = #tpu.pipeline_mode<synchronous>, transform_indices = @transform_2, window_bounds = array<i64: 1, 62>}, {pipeline_mode = #tpu.pipeline_mode<synchronous>, transform_indices = @transform_3, window_bounds = array<i64: 2, 62>}]} {
    %c0 = arith.constant 0 : index
    %c0_0 = arith.constant 0 : index
    %0 = vector.load %arg1[%c0, %c0_0] : memref<2x9216xf32, #tpu.memory_space<vmem>>, vector<2x9216xf32>
    %c0_1 = arith.constant 0 : index
    %c0_2 = arith.constant 0 : index
    %1 = vector.load %arg2[%c0_1, %c0_2] : memref<9216x62xf32, #tpu.memory_space<vmem>>, vector<9216x62xf32>
    %cst = arith.constant dense<0.000000e+00> : vector<2x62xf32>
    %2 = tpu.matmul %0, %1, %cst {dimension_numbers = #tpu.dot_dimension_numbers<[1], [0], [0], [1], [0, 0, 1, 1], [], []>} : vector<2x9216xf32>, vector<9216x62xf32>, vector<2x62xf32> -> vector<2x62xf32>
    %c0_3 = arith.constant 0 : index
    %c0_4 = arith.constant 0 : index
    %3 = vector.load %arg3[%c0_3, %c0_4] : memref<1x62xf32, #tpu.memory_space<vmem>>, vector<1x62xf32>
    %4 = vector.broadcast %3 : vector<1x62xf32> to vector<2x62xf32>
    %5 = arith.addf %2, %4 : vector<2x62xf32>
    %cst_5 = arith.constant dense<0xFF800000> : vector<2xf32>
    %6 = vector.multi_reduction <maximumf>, %5, %cst_5 [1] : vector<2x62xf32> to vector<2xf32>
    %7 = vector.shape_cast %6 : vector<2xf32> to vector<2x1xf32>
    %8 = vector.broadcast %7 : vector<2x1xf32> to vector<2x62xf32>
    %9 = arith.subf %5, %8 : vector<2x62xf32>
    %10 = math.exp %9 : vector<2x62xf32>
    %cst_6 = arith.constant dense<0.000000e+00> : vector<2xf32>
    %11 = vector.multi_reduction <add>, %10, %cst_6 [1] : vector<2x62xf32> to vector<2xf32>
    %12 = vector.shape_cast %11 : vector<2xf32> to vector<2x1xf32>
    %13 = math.log %12 : vector<2x1xf32>
    %14 = vector.broadcast %13 : vector<2x1xf32> to vector<2x62xf32>
    %15 = arith.subf %9, %14 : vector<2x62xf32>
    %c0_7 = arith.constant 0 : index
    %c0_8 = arith.constant 0 : index
    %16 = vector.load %arg4[%c0_7, %c0_8] : memref<2x62xf32, #tpu.memory_space<vmem>>, vector<2x62xf32>
    tpu.vector_store %arg4[%c0_7, %c0_8], %15 {strides = array<i32>} : memref<2x62xf32, #tpu.memory_space<vmem>>, vector<2x62xf32>,
    return
  }
  func.func @transform_0(%arg0: i32) -> (i32, i32) {
    %c0_i32 = arith.constant 0 : i32
    %c0_i32_0 = arith.constant 0 : i32
    %c0_i32_1 = arith.constant 0 : i32
    return %c0_i32, %c0_i32_0 : i32, i32
  }
  func.func @transform_1(%arg0: i32) -> (i32, i32) {
    %c0_i32 = arith.constant 0 : i32
    %c0_i32_0 = arith.constant 0 : i32
    %c0_i32_1 = arith.constant 0 : i32
    return %c0_i32, %c0_i32_0 : i32, i32
  }
  func.func @transform_2(%arg0: i32) -> (i32, i32) {
    %c0_i32 = arith.constant 0 : i32
    %c0_i32_0 = arith.constant 0 : i32
    %c0_i32_1 = arith.constant 0 : i32
    return %c0_i32, %c0_i32_0 : i32, i32
  }
  func.func @transform_3(%arg0: i32) -> (i32, i32) {
    %c0_i32 = arith.constant 0 : i32
    %c0_i32_0 = arith.constant 0 : i32
    %c0_i32_1 = arith.constant 0 : i32
    return %c0_i32, %c0_i32_0 : i32, i32
  }
}

</mosaic_0001>

<llo_original>
// kernel: aux_model_femnist_forward.1
$region0: #{aux_model_femnist_forward.1}
  #allocation0 [shape = 'u32[]', space=smem, size = 0x4, offset = 0x4, fixed_abs, tag = 'smem constant byte address 0x4 - core index']
  #allocation1 [shape = 'u32[144,128]{1,0:T(1,128)}', space=vmem, size = 0x12000, scoped, tag = 'internal scratch']
  %s0 = inlined_call_operand.vmem [shape: f32[2,9216], index: 0, kind: input, shape index: {}]
  %s1 = inlined_call_operand.vmem [shape: f32[9216,62], index: 1, kind: input, shape index: {}]
  %s2 = inlined_call_operand.vmem [shape: f32[1,62], index: 2, kind: input, shape index: {}]
  %s3 = inlined_call_operand.hbm [shape: f32[2,62], index: 3, kind: output, shape index: {}]
  %s4 = sld [smem:[#allocation0]]
  $region22: #{aux_model_femnist_forward.1} parent=0
    _
  %s6 = ssub.s32 1, %s4
  %s7 = scalar_select 0, %s6, %s4
  $region1: #{aux_model_femnist_forward.1} parent=0
    #allocation2 [shape = 'u8[1024]{0}', space=vmem, size = 0x400, scoped, tag = 'output window, operand 0, single buffered']
    #allocation3 [shape = 's32[1]{0}', space=sflag, size = 0x4, scoped, tag = 'scoped memory for aux_model_femnist_forward.1']
    %8 = vsyncpa [#allocation3], 0
    // Predicated region
    $region2: #{aux_model_femnist_forward.1} parent=1 // pred_check
      _
    $region3: #{aux_model_femnist_forward.1} parent=1 // pred_check_branch
      %10 = sbr.rel (0) target = $region5
    $region4: #{aux_model_femnist_forward.1} parent=1 // pred_region
      _
    $region5: #{aux_model_femnist_forward.1} parent=1 // pred_fallthru
      _
    // Predicated region
    $region6: #{aux_model_femnist_forward.1} parent=1 // pred_check
      _
    $region7: #{aux_model_femnist_forward.1} parent=1 // pred_check_branch
      %12 = sbr.rel (0) target = $region9
    $region8: #{aux_model_femnist_forward.1} parent=1 // pred_region
      _
    $region9: #{aux_model_femnist_forward.1} parent=1 // pred_fallthru
      _
    // Predicated region
    $region10: #{aux_model_femnist_forward.1} parent=1 // pred_check
      _
    $region11: #{aux_model_femnist_forward.1} parent=1 // pred_check_branch
      %14 = sbr.rel (0) target = $region13
    $region12: #{aux_model_femnist_forward.1} parent=1 // pred_region
      _
    $region13: #{aux_model_femnist_forward.1} parent=1 // pred_fallthru
      _
    %v15 = vld [vmem:[%s0] sm:$0xff]
    %v16 = vld [vmem:[%s0 + $0x8] sm:$0xff]
    %v17 = vld [vmem:[%s0 + $0x10] sm:$0xff]
    %v18 = vld [vmem:[%s0 + $0x18] sm:$0xff]
    %v19 = vld [vmem:[%s0 + $0x20] sm:$0xff]
    %v20 = vld [vmem:[%s0 + $0x28] sm:$0xff]
    %v21 = vld [vmem:[%s0 + $0x30] sm:$0xff]
    %v22 = vld [vmem:[%s0 + $0x38] sm:$0xff]
    %v23 = vld [vmem:[%s0 + $0x40] sm:$0xff]
    %v24 = vld [vmem:[%s0 + $0x48] sm:$0xff]
    %v25 = vld [vmem:[%s0 + $0x50] sm:$0xff]
    %v26 = vld [vmem:[%s0 + $0x58] sm:$0xff]
    %v27 = vld [vmem:[%s0 + $0x60] sm:$0xff]
    %v28 = vld [vmem:[%s0 + $0x68] sm:$0xff]
    %v29 = vld [vmem:[%s0 + $0x70] sm:$0xff]
    %v30 = vld [vmem:[%s0 + $0x78] sm:$0xff]
    %v31 = vld [vmem:[%s0 + $0x80] sm:$0xff]
    %v32 = vld [vmem:[%s0 + $0x88] sm:$0xff]
    %v33 = vld [vmem:[%s1] sm:$0xff]
    %v34 = vld [vmem:[%s1 + $0x8] sm:$0xff]
    %v35 = vld [vmem:[%s1 + $0x10] sm:$0xff]
    %v36 = vld [vmem:[%s1 + $0x18] sm:$0xff]
    %v37 = vld [vmem:[%s1 + $0x20] sm:$0xff]
    %v38 = vld [vmem:[%s1 + $0x28] sm:$0xff]
    %v39 = vld [vmem:[%s1 + $0x30] sm:$0xff]
    %v40 = vld [vmem:[%s1 + $0x38] sm:$0xff]
    %v41 = vld [vmem:[%s1 + $0x40] sm:$0xff]
    %v42 = vld [vmem:[%s1 + $0x48] sm:$0xff]
    %v43 = vld [vmem:[%s1 + $0x50] sm:$0xff]
    %v44 = vld [vmem:[%s1 + $0x58] sm:$0xff]
    %v45 = vld [vmem:[%s1 + $0x60] sm:$0xff]
    %v46 = vld [vmem:[%s1 + $0x68] sm:$0xff]
    %v47 = vld [vmem:[%s1 + $0x70] sm:$0xff]
    %v48 = vld [vmem:[%s1 + $0x78] sm:$0xff]
    %v49 = vld [vmem:[%s1 + $0x80] sm:$0xff]
    %v50 = vld [vmem:[%s1 + $0x88] sm:$0xff]
    %v51 = vld [vmem:[%s1 + $0x90] sm:$0xff]
    %v52 = vld [vmem:[%s1 + $0x98] sm:$0xff]
    %v53 = vld [vmem:[%s1 + $0xa0] sm:$0xff]
    %v54 = vld [vmem:[%s1 + $0xa8] sm:$0xff]
    %v55 = vld [vmem:[%s1 + $0xb0] sm:$0xff]
    %v56 = vld [vmem:[%s1 + $0xb8] sm:$0xff]
    %v57 = vld [vmem:[%s1 + $0xc0] sm:$0xff]
    %v58 = vld [vmem:[%s1 + $0xc8] sm:$0xff]
    %v59 = vld [vmem:[%s1 + $0xd0] sm:$0xff]
    %v60 = vld [vmem:[%s1 + $0xd8] sm:$0xff]
    %v61 = vld [vmem:[%s1 + $0xe0] sm:$0xff]
    %v62 = vld [vmem:[%s1 + $0xe8] sm:$0xff]
    %v63 = vld [vmem:[%s1 + $0xf0] sm:$0xff]
    %v64 = vld [vmem:[%s1 + $0xf8] sm:$0xff]
    %v65 = vld [vmem:[%s1 + $0x100] sm:$0xff]
    %v66 = vld [vmem:[%s1 + $0x108] sm:$0xff]
    %v67 = vld [vmem:[%s1 + $0x110] sm:$0xff]
    %v68 = vld [vmem:[%s1 + $0x118] sm:$0xff]
    %v69 = vld [vmem:[%s1 + $0x120] sm:$0xff]
    %v70 = vld [vmem:[%s1 + $0x128] sm:$0xff]
    %v71 = vld [vmem:[%s1 + $0x130] sm:$0xff]
    %v72 = vld [vmem:[%s1 + $0x138] sm:$0xff]
    %v73 = vld [vmem:[%s1 + $0x140] sm:$0xff]
    %v74 = vld [vmem:[%s1 + $0x148] sm:$0xff]
    %v75 = vld [vmem:[%s1 + $0x150] sm:$0xff]
    %v76 = vld [vmem:[%s1 + $0x158] sm:$0xff]
    %v77 = vld [vmem:[%s1 + $0x160] sm:$0xff]
    %v78 = vld [vmem:[%s1 + $0x168] sm:$0xff]
    %v79 = vld [vmem:[%s1 + $0x170] sm:$0xff]
    %v80 = vld [vmem:[%s1 + $0x178] sm:$0xff]
    %v81 = vld [vmem:[%s1 + $0x180] sm:$0xff]
    %v82 = vld [vmem:[%s1 + $0x188] sm:$0xff]
    %v83 = vld [vmem:[%s1 + $0x190] sm:$0xff]
    %v84 = vld [vmem:[%s1 + $0x198] sm:$0xff]
    %v85 = vld [vmem:[%s1 + $0x1a0] sm:$0xff]
    %v86 = vld [vmem:[%s1 + $0x1a8] sm:$0xff]
    %v87 = vld [vmem:[%s1 + $0x1b0] sm:$0xff]
    %v88 = vld [vmem:[%s1 + $0x1b8] sm:$0xff]
    %v89 = vld [vmem:[%s1 + $0x1c0] sm:$0xff]
    %v90 = vld [vmem:[%s1 + $0x1c8] sm:$0xff]
    %v91 = vld [vmem:[%s1 + $0x1d0] sm:$0xff]
    %v92 = vld [vmem:[%s1 + $0x1d8] sm:$0xff]
    %v93 = vld [vmem:[%s1 + $0x1e0] sm:$0xff]
    %v94 = vld [vmem:[%s1 + $0x1e8] sm:$0xff]
    %v95 = vld [vmem:[%s1 + $0x1f0] sm:$0xff]
    %v96 = vld [vmem:[%s1 + $0x1f8] sm:$0xff]
    %v97 = vld [vmem:[%s1 + $0x200] sm:$0xff]
    %v98 = vld [vmem:[%s1 + $0x208] sm:$0xff]
    %v99 = vld [vmem:[%s1 + $0x210] sm:$0xff]
    %v100 = vld [vmem:[%s1 + $0x218] sm:$0xff]
    %v101 = vld [vmem:[%s1 + $0x220] sm:$0xff]
    %v102 = vld [vmem:[%s1 + $0x228] sm:$0xff]
    %v103 = vld [vmem:[%s1 + $0x230] sm:$0xff]
    %v104 = vld [vmem:[%s1 + $0x238] sm:$0xff]
    %v105 = vld [vmem:[%s1 + $0x240] sm:$0xff]
    %v106 = vld [vmem:[%s1 + $0x248] sm:$0xff]
    %v107 = vld [vmem:[%s1 + $0x250] sm:$0xff]
    %v108 = vld [vmem:[%s1 + $0x258] sm:$0xff]
    %v109 = vld [vmem:[%s1 + $0x260] sm:$0xff]
    %v110 = vld [vmem:[%s1 + $0x268] sm:$0xff]
    %v111 = vld [vmem:[%s1 + $0x270] sm:$0xff]
    %v112 = vld [vmem:[%s1 + $0x278] sm:$0xff]
    %v113 = vld [vmem:[%s1 + $0x280] sm:$0xff]
    %v114 = vld [vmem:[%s1 + $0x288] sm:$0xff]
    %v115 = vld [vmem:[%s1 + $0x290] sm:$0xff]
    %v116 = vld [vmem:[%s1 + $0x298] sm:$0xff]
    %v117 = vld [vmem:[%s1 + $0x2a0] sm:$0xff]
    %v118 = vld [vmem:[%s1 + $0x2a8] sm:$0xff]
    %v119 = vld [vmem:[%s1 + $0x2b0] sm:$0xff]
    %v120 = vld [vmem:[%s1 + $0x2b8] sm:$0xff]
    %v121 = vld [vmem:[%s1 + $0x2c0] sm:$0xff]
    %v122 = vld [vmem:[%s1 + $0x2c8] sm:$0xff]
    %v123 = vld [vmem:[%s1 + $0x2d0] sm:$0xff]
    %v124 = vld [vmem:[%s1 + $0x2d8] sm:$0xff]
    %v125 = vld [vmem:[%s1 + $0x2e0] sm:$0xff]
    %v126 = vld [vmem:[%s1 + $0x2e8] sm:$0xff]
    %v127 = vld [vmem:[%s1 + $0x2f0] sm:$0xff]
    %v128 = vld [vmem:[%s1 + $0x2f8] sm:$0xff]
    %v129 = vld [vmem:[%s1 + $0x300] sm:$0xff]
    %v130 = vld [vmem:[%s1 + $0x308] sm:$0xff]
    %v131 = vld [vmem:[%s1 + $0x310] sm:$0xff]
    %v132 = vld [vmem:[%s1 + $0x318] sm:$0xff]
    %v133 = vld [vmem:[%s1 + $0x320] sm:$0xff]
    %v134 = vld [vmem:[%s1 + $0x328] sm:$0xff]
    %v135 = vld [vmem:[%s1 + $0x330] sm:$0xff]
    %v136 = vld [vmem:[%s1 + $0x338] sm:$0xff]
    %v137 = vld [vmem:[%s1 + $0x340] sm:$0xff]
    %v138 = vld [vmem:[%s1 + $0x348] sm:$0xff]
    %v139 = vld [vmem:[%s1 + $0x350] sm:$0xff]
    %v140 = vld [vmem:[%s1 + $0x358] sm:$0xff]
    %v141 = vld [vmem:[%s1 + $0x360] sm:$0xff]
    %v142 = vld [vmem:[%s1 + $0x368] sm:$0xff]
    %v143 = vld [vmem:[%s1 + $0x370] sm:$0xff]
    %v144 = vld [vmem:[%s1 + $0x378] sm:$0xff]
    %v145 = vld [vmem:[%s1 + $0x380] sm:$0xff]
    %v146 = vld [vmem:[%s1 + $0x388] sm:$0xff]
    %v147 = vld [vmem:[%s1 + $0x390] sm:$0xff]
    %v148 = vld [vmem:[%s1 + $0x398] sm:$0xff]
    %v149 = vld [vmem:[%s1 + $0x3a0] sm:$0xff]
    %v150 = vld [vmem:[%s1 + $0x3a8] sm:$0xff]
    %v151 = vld [vmem:[%s1 + $0x3b0] sm:$0xff]
    %v152 = vld [vmem:[%s1 + $0x3b8] sm:$0xff]
    %v153 = vld [vmem:[%s1 + $0x3c0] sm:$0xff]
    %v154 = vld [vmem:[%s1 + $0x3c8] sm:$0xff]
    %v155 = vld [vmem:[%s1 + $0x3d0] sm:$0xff]
    %v156 = vld [vmem:[%s1 + $0x3d8] sm:$0xff]
    %v157 = vld [vmem:[%s1 + $0x3e0] sm:$0xff]
    %v158 = vld [vmem:[%s1 + $0x3e8] sm:$0xff]
    %v159 = vld [vmem:[%s1 + $0x3f0] sm:$0xff]
    %v160 = vld [vmem:[%s1 + $0x3f8] sm:$0xff]
    %v161 = vld [vmem:[%s1 + $0x400] sm:$0xff]
    %v162 = vld [vmem:[%s1 + $0x408] sm:$0xff]
    %v163 = vld [vmem:[%s1 + $0x410] sm:$0xff]
    %v164 = vld [vmem:[%s1 + $0x418] sm:$0xff]
    %v165 = vld [vmem:[%s1 + $0x420] sm:$0xff]
    %v166 = vld [vmem:[%s1 + $0x428] sm:$0xff]
    %v167 = vld [vmem:[%s1 + $0x430] sm:$0xff]
    %v168 = vld [vmem:[%s1 + $0x438] sm:$0xff]
    %v169 = vld [vmem:[%s1 + $0x440] sm:$0xff]
    %v170 = vld [vmem:[%s1 + $0x448] sm:$0xff]
    %v171 = vld [vmem:[%s1 + $0x450] sm:$0xff]
    %v172 = vld [vmem:[%s1 + $0x458] sm:$0xff]
    %v173 = vld [vmem:[%s1 + $0x460] sm:$0xff]
    %v174 = vld [vmem:[%s1 + $0x468] sm:$0xff]
    %v175 = vld [vmem:[%s1 + $0x470] sm:$0xff]
    %v176 = vld [vmem:[%s1 + $0x478] sm:$0xff]
    %v177 = vld [vmem:[%s1 + $0x480] sm:$0xff]
    %v178 = vld [vmem:[%s1 + $0x488] sm:$0xff]
    %v179 = vld [vmem:[%s1 + $0x490] sm:$0xff]
    %v180 = vld [vmem:[%s1 + $0x498] sm:$0xff]
    %v181 = vld [vmem:[%s1 + $0x4a0] sm:$0xff]
    %v182 = vld [vmem:[%s1 + $0x4a8] sm:$0xff]
    %v183 = vld [vmem:[%s1 + $0x4b0] sm:$0xff]
    %v184 = vld [vmem:[%s1 + $0x4b8] sm:$0xff]
    %v185 = vld [vmem:[%s1 + $0x4c0] sm:$0xff]
    %v186 = vld [vmem:[%s1 + $0x4c8] sm:$0xff]
    %v187 = vld [vmem:[%s1 + $0x4d0] sm:$0xff]
    %v188 = vld [vmem:[%s1 + $0x4d8] sm:$0xff]
    %v189 = vld [vmem:[%s1 + $0x4e0] sm:$0xff]
    %v190 = vld [vmem:[%s1 + $0x4e8] sm:$0xff]
    %v191 = vld [vmem:[%s1 + $0x4f0] sm:$0xff]
    %v192 = vld [vmem:[%s1 + $0x4f8] sm:$0xff]
    %v193 = vld [vmem:[%s1 + $0x500] sm:$0xff]
    %v194 = vld [vmem:[%s1 + $0x508] sm:$0xff]
    %v195 = vld [vmem:[%s1 + $0x510] sm:$0xff]
    %v196 = vld [vmem:[%s1 + $0x518] sm:$0xff]
    %v197 = vld [vmem:[%s1 + $0x520] sm:$0xff]
    %v198 = vld [vmem:[%s1 + $0x528] sm:$0xff]
    %v199 = vld [vmem:[%s1 + $0x530] sm:$0xff]
    %v200 = vld [vmem:[%s1 + $0x538] sm:$0xff]
    %v201 = vld [vmem:[%s1 + $0x540] sm:$0xff]
    %v202 = vld [vmem:[%s1 + $0x548] sm:$0xff]
    %v203 = vld [vmem:[%s1 + $0x550] sm:$0xff]
    %v204 = vld [vmem:[%s1 + $0x558] sm:$0xff]
    %v205 = vld [vmem:[%s1 + $0x560] sm:$0xff]
    %v206 = vld [vmem:[%s1 + $0x568] sm:$0xff]
    %v207 = vld [vmem:[%s1 + $0x570] sm:$0xff]
    %v208 = vld [vmem:[%s1 + $0x578] sm:$0xff]
    %v209 = vld [vmem:[%s1 + $0x580] sm:$0xff]
    %v210 = vld [vmem:[%s1 + $0x588] sm:$0xff]
    %v211 = vld [vmem:[%s1 + $0x590] sm:$0xff]
    %v212 = vld [vmem:[%s1 + $0x598] sm:$0xff]
    %v213 = vld [vmem:[%s1 + $0x5a0] sm:$0xff]
    %v214 = vld [vmem:[%s1 + $0x5a8] sm:$0xff]
    %v215 = vld [vmem:[%s1 + $0x5b0] sm:$0xff]
    %v216 = vld [vmem:[%s1 + $0x5b8] sm:$0xff]
    %v217 = vld [vmem:[%s1 + $0x5c0] sm:$0xff]
    %v218 = vld [vmem:[%s1 + $0x5c8] sm:$0xff]
    %v219 = vld [vmem:[%s1 + $0x5d0] sm:$0xff]
    %v220 = vld [vmem:[%s1 + $0x5d8] sm:$0xff]
    %v221 = vld [vmem:[%s1 + $0x5e0] sm:$0xff]
    %v222 = vld [vmem:[%s1 + $0x5e8] sm:$0xff]
    %v223 = vld [vmem:[%s1 + $0x5f0] sm:$0xff]
    %v224 = vld [vmem:[%s1 + $0x5f8] sm:$0xff]
    %v225 = vld [vmem:[%s1 + $0x600] sm:$0xff]
    %v226 = vld [vmem:[%s1 + $0x608] sm:$0xff]
    %v227 = vld [vmem:[%s1 + $0x610] sm:$0xff]
    %v228 = vld [vmem:[%s1 + $0x618] sm:$0xff]
    %v229 = vld [vmem:[%s1 + $0x620] sm:$0xff]
    %v230 = vld [vmem:[%s1 + $0x628] sm:$0xff]
    %v231 = vld [vmem:[%s1 + $0x630] sm:$0xff]
    %v232 = vld [vmem:[%s1 + $0x638] sm:$0xff]
    %v233 = vld [vmem:[%s1 + $0x640] sm:$0xff]
    %v234 = vld [vmem:[%s1 + $0x648] sm:$0xff]
    %v235 = vld [vmem:[%s1 + $0x650] sm:$0xff]
    %v236 = vld [vmem:[%s1 + $0x658] sm:$0xff]
    %v237 = vld [vmem:[%s1 + $0x660] sm:$0xff]
    %v238 = vld [vmem:[%s1 + $0x668] sm:$0xff]
    %v239 = vld [vmem:[%s1 + $0x670] sm:$0xff]
    %v240 = vld [vmem:[%s1 + $0x678] sm:$0xff]
    %v241 = vld [vmem:[%s1 + $0x680] sm:$0xff]
    %v242 = vld [vmem:[%s1 + $0x688] sm:$0xff]
    %v243 = vld [vmem:[%s1 + $0x690] sm:$0xff]
    %v244 = vld [vmem:[%s1 + $0x698] sm:$0xff]
    %v245 = vld [vmem:[%s1 + $0x6a0] sm:$0xff]
    %v246 = vld [vmem:[%s1 + $0x6a8] sm:$0xff]
    %v247 = vld [vmem:[%s1 + $0x6b0] sm:$0xff]
    %v248 = vld [vmem:[%s1 + $0x6b8] sm:$0xff]
    %v249 = vld [vmem:[%s1 + $0x6c0] sm:$0xff]
    %v250 = vld [vmem:[%s1 + $0x6c8] sm:$0xff]
    %v251 = vld [vmem:[%s1 + $0x6d0] sm:$0xff]
    %v252 = vld [vmem:[%s1 + $0x6d8] sm:$0xff]
    %v253 = vld [vmem:[%s1 + $0x6e0] sm:$0xff]
    %v254 = vld [vmem:[%s1 + $0x6e8] sm:$0xff]
    %v255 = vld [vmem:[%s1 + $0x6f0] sm:$0xff]
    %v256 = vld [vmem:[%s1 + $0x6f8] sm:$0xff]
    %v257 = vld [vmem:[%s1 + $0x700] sm:$0xff]
    %v258 = vld [vmem:[%s1 + $0x708] sm:$0xff]
    %v259 = vld [vmem:[%s1 + $0x710] sm:$0xff]
    %v260 = vld [vmem:[%s1 + $0x718] sm:$0xff]
    %v261 = vld [vmem:[%s1 + $0x720] sm:$0xff]
    %v262 = vld [vmem:[%s1 + $0x728] sm:$0xff]
    %v263 = vld [vmem:[%s1 + $0x730] sm:$0xff]
    %v264 = vld [vmem:[%s1 + $0x738] sm:$0xff]
    %v265 = vld [vmem:[%s1 + $0x740] sm:$0xff]
    %v266 = vld [vmem:[%s1 + $0x748] sm:$0xff]
    %v267 = vld [vmem:[%s1 + $0x750] sm:$0xff]
    %v268 = vld [vmem:[%s1 + $0x758] sm:$0xff]
    %v269 = vld [vmem:[%s1 + $0x760] sm:$0xff]
    %v270 = vld [vmem:[%s1 + $0x768] sm:$0xff]
    %v271 = vld [vmem:[%s1 + $0x770] sm:$0xff]
    %v272 = vld [vmem:[%s1 + $0x778] sm:$0xff]
    %v273 = vld [vmem:[%s1 + $0x780] sm:$0xff]
    %v274 = vld [vmem:[%s1 + $0x788] sm:$0xff]
    %v275 = vld [vmem:[%s1 + $0x790] sm:$0xff]
    %v276 = vld [vmem:[%s1 + $0x798] sm:$0xff]
    %v277 = vld [vmem:[%s1 + $0x7a0] sm:$0xff]
    %v278 = vld [vmem:[%s1 + $0x7a8] sm:$0xff]
    %v279 = vld [vmem:[%s1 + $0x7b0] sm:$0xff]
    %v280 = vld [vmem:[%s1 + $0x7b8] sm:$0xff]
    %v281 = vld [vmem:[%s1 + $0x7c0] sm:$0xff]
    %v282 = vld [vmem:[%s1 + $0x7c8] sm:$0xff]
    %v283 = vld [vmem:[%s1 + $0x7d0] sm:$0xff]
    %v284 = vld [vmem:[%s1 + $0x7d8] sm:$0xff]
    %v285 = vld [vmem:[%s1 + $0x7e0] sm:$0xff]
    %v286 = vld [vmem:[%s1 + $0x7e8] sm:$0xff]
    %v287 = vld [vmem:[%s1 + $0x7f0] sm:$0xff]
    %v288 = vld [vmem:[%s1 + $0x7f8] sm:$0xff]
    %v289 = vld [vmem:[%s1 + $0x800] sm:$0xff]
    %v290 = vld [vmem:[%s1 + $0x808] sm:$0xff]
    %v291 = vld [vmem:[%s1 + $0x810] sm:$0xff]
    %v292 = vld [vmem:[%s1 + $0x818] sm:$0xff]
    %v293 = vld [vmem:[%s1 + $0x820] sm:$0xff]
    %v294 = vld [vmem:[%s1 + $0x828] sm:$0xff]
    %v295 = vld [vmem:[%s1 + $0x830] sm:$0xff]
    %v296 = vld [vmem:[%s1 + $0x838] sm:$0xff]
    %v297 = vld [vmem:[%s1 + $0x840] sm:$0xff]
    %v298 = vld [vmem:[%s1 + $0x848] sm:$0xff]
    %v299 = vld [vmem:[%s1 + $0x850] sm:$0xff]
    %v300 = vld [vmem:[%s1 + $0x858] sm:$0xff]
    %v301 = vld [vmem:[%s1 + $0x860] sm:$0xff]
    %v302 = vld [vmem:[%s1 + $0x868] sm:$0xff]
    %v303 = vld [vmem:[%s1 + $0x870] sm:$0xff]
    %v304 = vld [vmem:[%s1 + $0x878] sm:$0xff]
    %v305 = vld [vmem:[%s1 + $0x880] sm:$0xff]
    %v306 = vld [vmem:[%s1 + $0x888] sm:$0xff]
    %v307 = vld [vmem:[%s1 + $0x890] sm:$0xff]
    %v308 = vld [vmem:[%s1 + $0x898] sm:$0xff]
    %v309 = vld [vmem:[%s1 + $0x8a0] sm:$0xff]
    %v310 = vld [vmem:[%s1 + $0x8a8] sm:$0xff]
    %v311 = vld [vmem:[%s1 + $0x8b0] sm:$0xff]
    %v312 = vld [vmem:[%s1 + $0x8b8] sm:$0xff]
    %v313 = vld [vmem:[%s1 + $0x8c0] sm:$0xff]
    %v314 = vld [vmem:[%s1 + $0x8c8] sm:$0xff]
    %v315 = vld [vmem:[%s1 + $0x8d0] sm:$0xff]
    %v316 = vld [vmem:[%s1 + $0x8d8] sm:$0xff]
    %v317 = vld [vmem:[%s1 + $0x8e0] sm:$0xff]
    %v318 = vld [vmem:[%s1 + $0x8e8] sm:$0xff]
    %v319 = vld [vmem:[%s1 + $0x8f0] sm:$0xff]
    %v320 = vld [vmem:[%s1 + $0x8f8] sm:$0xff]
    %v321 = vld [vmem:[%s1 + $0x900] sm:$0xff]
    %v322 = vld [vmem:[%s1 + $0x908] sm:$0xff]
    %v323 = vld [vmem:[%s1 + $0x910] sm:$0xff]
    %v324 = vld [vmem:[%s1 + $0x918] sm:$0xff]
    %v325 = vld [vmem:[%s1 + $0x920] sm:$0xff]
    %v326 = vld [vmem:[%s1 + $0x928] sm:$0xff]
    %v327 = vld [vmem:[%s1 + $0x930] sm:$0xff]
    %v328 = vld [vmem:[%s1 + $0x938] sm:$0xff]
    %v329 = vld [vmem:[%s1 + $0x940] sm:$0xff]
    %v330 = vld [vmem:[%s1 + $0x948] sm:$0xff]
    %v331 = vld [vmem:[%s1 + $0x950] sm:$0xff]
    %v332 = vld [vmem:[%s1 + $0x958] sm:$0xff]
    %v333 = vld [vmem:[%s1 + $0x960] sm:$0xff]
    %v334 = vld [vmem:[%s1 + $0x968] sm:$0xff]
    %v335 = vld [vmem:[%s1 + $0x970] sm:$0xff]
    %v336 = vld [vmem:[%s1 + $0x978] sm:$0xff]
    %v337 = vld [vmem:[%s1 + $0x980] sm:$0xff]
    %v338 = vld [vmem:[%s1 + $0x988] sm:$0xff]
    %v339 = vld [vmem:[%s1 + $0x990] sm:$0xff]
    %v340 = vld [vmem:[%s1 + $0x998] sm:$0xff]
    %v341 = vld [vmem:[%s1 + $0x9a0] sm:$0xff]
    %v342 = vld [vmem:[%s1 + $0x9a8] sm:$0xff]
    %v343 = vld [vmem:[%s1 + $0x9b0] sm:$0xff]
    %v344 = vld [vmem:[%s1 + $0x9b8] sm:$0xff]
    %v345 = vld [vmem:[%s1 + $0x9c0] sm:$0xff]
    %v346 = vld [vmem:[%s1 + $0x9c8] sm:$0xff]
    %v347 = vld [vmem:[%s1 + $0x9d0] sm:$0xff]
    %v348 = vld [vmem:[%s1 + $0x9d8] sm:$0xff]
    %v349 = vld [vmem:[%s1 + $0x9e0] sm:$0xff]
    %v350 = vld [vmem:[%s1 + $0x9e8] sm:$0xff]
    %v351 = vld [vmem:[%s1 + $0x9f0] sm:$0xff]
    %v352 = vld [vmem:[%s1 + $0x9f8] sm:$0xff]
    %v353 = vld [vmem:[%s1 + $0xa00] sm:$0xff]
    %v354 = vld [vmem:[%s1 + $0xa08] sm:$0xff]
    %v355 = vld [vmem:[%s1 + $0xa10] sm:$0xff]
    %v356 = vld [vmem:[%s1 + $0xa18] sm:$0xff]
    %v357 = vld [vmem:[%s1 + $0xa20] sm:$0xff]
    %v358 = vld [vmem:[%s1 + $0xa28] sm:$0xff]
    %v359 = vld [vmem:[%s1 + $0xa30] sm:$0xff]
    %v360 = vld [vmem:[%s1 + $0xa38] sm:$0xff]
    %v361 = vld [vmem:[%s1 + $0xa40] sm:$0xff]
    %v362 = vld [vmem:[%s1 + $0xa48] sm:$0xff]
    %v363 = vld [vmem:[%s1 + $0xa50] sm:$0xff]
    %v364 = vld [vmem:[%s1 + $0xa58] sm:$0xff]
    %v365 = vld [vmem:[%s1 + $0xa60] sm:$0xff]
    %v366 = vld [vmem:[%s1 + $0xa68] sm:$0xff]
    %v367 = vld [vmem:[%s1 + $0xa70] sm:$0xff]
    %v368 = vld [vmem:[%s1 + $0xa78] sm:$0xff]
    %v369 = vld [vmem:[%s1 + $0xa80] sm:$0xff]
    %v370 = vld [vmem:[%s1 + $0xa88] sm:$0xff]
    %v371 = vld [vmem:[%s1 + $0xa90] sm:$0xff]
    %v372 = vld [vmem:[%s1 + $0xa98] sm:$0xff]
    %v373 = vld [vmem:[%s1 + $0xaa0] sm:$0xff]
    %v374 = vld [vmem:[%s1 + $0xaa8] sm:$0xff]
    %v375 = vld [vmem:[%s1 + $0xab0] sm:$0xff]
    %v376 = vld [vmem:[%s1 + $0xab8] sm:$0xff]
    %v377 = vld [vmem:[%s1 + $0xac0] sm:$0xff]
    %v378 = vld [vmem:[%s1 + $0xac8] sm:$0xff]
    %v379 = vld [vmem:[%s1 + $0xad0] sm:$0xff]
    %v380 = vld [vmem:[%s1 + $0xad8] sm:$0xff]
    %v381 = vld [vmem:[%s1 + $0xae0] sm:$0xff]
    %v382 = vld [vmem:[%s1 + $0xae8] sm:$0xff]
    %v383 = vld [vmem:[%s1 + $0xaf0] sm:$0xff]
    %v384 = vld [vmem:[%s1 + $0xaf8] sm:$0xff]
    %v385 = vld [vmem:[%s1 + $0xb00] sm:$0xff]
    %v386 = vld [vmem:[%s1 + $0xb08] sm:$0xff]
    %v387 = vld [vmem:[%s1 + $0xb10] sm:$0xff]
    %v388 = vld [vmem:[%s1 + $0xb18] sm:$0xff]
    %v389 = vld [vmem:[%s1 + $0xb20] sm:$0xff]
    %v390 = vld [vmem:[%s1 + $0xb28] sm:$0xff]
    %v391 = vld [vmem:[%s1 + $0xb30] sm:$0xff]
    %v392 = vld [vmem:[%s1 + $0xb38] sm:$0xff]
    %v393 = vld [vmem:[%s1 + $0xb40] sm:$0xff]
    %v394 = vld [vmem:[%s1 + $0xb48] sm:$0xff]
    %v395 = vld [vmem:[%s1 + $0xb50] sm:$0xff]
    %v396 = vld [vmem:[%s1 + $0xb58] sm:$0xff]
    %v397 = vld [vmem:[%s1 + $0xb60] sm:$0xff]
    %v398 = vld [vmem:[%s1 + $0xb68] sm:$0xff]
    %v399 = vld [vmem:[%s1 + $0xb70] sm:$0xff]
    %v400 = vld [vmem:[%s1 + $0xb78] sm:$0xff]
    %v401 = vld [vmem:[%s1 + $0xb80] sm:$0xff]
    %v402 = vld [vmem:[%s1 + $0xb88] sm:$0xff]
    %v403 = vld [vmem:[%s1 + $0xb90] sm:$0xff]
    %v404 = vld [vmem:[%s1 + $0xb98] sm:$0xff]
    %v405 = vld [vmem:[%s1 + $0xba0] sm:$0xff]
    %v406 = vld [vmem:[%s1 + $0xba8] sm:$0xff]
    %v407 = vld [vmem:[%s1 + $0xbb0] sm:$0xff]
    %v408 = vld [vmem:[%s1 + $0xbb8] sm:$0xff]
    %v409 = vld [vmem:[%s1 + $0xbc0] sm:$0xff]
    %v410 = vld [vmem:[%s1 + $0xbc8] sm:$0xff]
    %v411 = vld [vmem:[%s1 + $0xbd0] sm:$0xff]
    %v412 = vld [vmem:[%s1 + $0xbd8] sm:$0xff]
    %v413 = vld [vmem:[%s1 + $0xbe0] sm:$0xff]
    %v414 = vld [vmem:[%s1 + $0xbe8] sm:$0xff]
    %v415 = vld [vmem:[%s1 + $0xbf0] sm:$0xff]
    %v416 = vld [vmem:[%s1 + $0xbf8] sm:$0xff]
    %v417 = vld [vmem:[%s1 + $0xc00] sm:$0xff]
    %v418 = vld [vmem:[%s1 + $0xc08] sm:$0xff]
    %v419 = vld [vmem:[%s1 + $0xc10] sm:$0xff]
    %v420 = vld [vmem:[%s1 + $0xc18] sm:$0xff]
    %v421 = vld [vmem:[%s1 + $0xc20] sm:$0xff]
    %v422 = vld [vmem:[%s1 + $0xc28] sm:$0xff]
    %v423 = vld [vmem:[%s1 + $0xc30] sm:$0xff]
    %v424 = vld [vmem:[%s1 + $0xc38] sm:$0xff]
    %v425 = vld [vmem:[%s1 + $0xc40] sm:$0xff]
    %v426 = vld [vmem:[%s1 + $0xc48] sm:$0xff]
    %v427 = vld [vmem:[%s1 + $0xc50] sm:$0xff]
    %v428 = vld [vmem:[%s1 + $0xc58] sm:$0xff]
    %v429 = vld [vmem:[%s1 + $0xc60] sm:$0xff]
    %v430 = vld [vmem:[%s1 + $0xc68] sm:$0xff]
    %v431 = vld [vmem:[%s1 + $0xc70] sm:$0xff]
    %v432 = vld [vmem:[%s1 + $0xc78] sm:$0xff]
    %v433 = vld [vmem:[%s1 + $0xc80] sm:$0xff]
    %v434 = vld [vmem:[%s1 + $0xc88] sm:$0xff]
    %v435 = vld [vmem:[%s1 + $0xc90] sm:$0xff]
    %v436 = vld [vmem:[%s1 + $0xc98] sm:$0xff]
    %v437 = vld [vmem:[%s1 + $0xca0] sm:$0xff]
    %v438 = vld [vmem:[%s1 + $0xca8] sm:$0xff]
    %v439 = vld [vmem:[%s1 + $0xcb0] sm:$0xff]
    %v440 = vld [vmem:[%s1 + $0xcb8] sm:$0xff]
    %v441 = vld [vmem:[%s1 + $0xcc0] sm:$0xff]
    %v442 = vld [vmem:[%s1 + $0xcc8] sm:$0xff]
    %v443 = vld [vmem:[%s1 + $0xcd0] sm:$0xff]
    %v444 = vld [vmem:[%s1 + $0xcd8] sm:$0xff]
    %v445 = vld [vmem:[%s1 + $0xce0] sm:$0xff]
    %v446 = vld [vmem:[%s1 + $0xce8] sm:$0xff]
    %v447 = vld [vmem:[%s1 + $0xcf0] sm:$0xff]
    %v448 = vld [vmem:[%s1 + $0xcf8] sm:$0xff]
    %v449 = vld [vmem:[%s1 + $0xd00] sm:$0xff]
    %v450 = vld [vmem:[%s1 + $0xd08] sm:$0xff]
    %v451 = vld [vmem:[%s1 + $0xd10] sm:$0xff]
    %v452 = vld [vmem:[%s1 + $0xd18] sm:$0xff]
    %v453 = vld [vmem:[%s1 + $0xd20] sm:$0xff]
    %v454 = vld [vmem:[%s1 + $0xd28] sm:$0xff]
    %v455 = vld [vmem:[%s1 + $0xd30] sm:$0xff]
    %v456 = vld [vmem:[%s1 + $0xd38] sm:$0xff]
    %v457 = vld [vmem:[%s1 + $0xd40] sm:$0xff]
    %v458 = vld [vmem:[%s1 + $0xd48] sm:$0xff]
    %v459 = vld [vmem:[%s1 + $0xd50] sm:$0xff]
    %v460 = vld [vmem:[%s1 + $0xd58] sm:$0xff]
    %v461 = vld [vmem:[%s1 + $0xd60] sm:$0xff]
    %v462 = vld [vmem:[%s1 + $0xd68] sm:$0xff]
    %v463 = vld [vmem:[%s1 + $0xd70] sm:$0xff]
    %v464 = vld [vmem:[%s1 + $0xd78] sm:$0xff]
    %v465 = vld [vmem:[%s1 + $0xd80] sm:$0xff]
    %v466 = vld [vmem:[%s1 + $0xd88] sm:$0xff]
    %v467 = vld [vmem:[%s1 + $0xd90] sm:$0xff]
    %v468 = vld [vmem:[%s1 + $0xd98] sm:$0xff]
    %v469 = vld [vmem:[%s1 + $0xda0] sm:$0xff]
    %v470 = vld [vmem:[%s1 + $0xda8] sm:$0xff]
    %v471 = vld [vmem:[%s1 + $0xdb0] sm:$0xff]
    %v472 = vld [vmem:[%s1 + $0xdb8] sm:$0xff]
    %v473 = vld [vmem:[%s1 + $0xdc0] sm:$0xff]
    %v474 = vld [vmem:[%s1 + $0xdc8] sm:$0xff]
    %v475 = vld [vmem:[%s1 + $0xdd0] sm:$0xff]
    %v476 = vld [vmem:[%s1 + $0xdd8] sm:$0xff]
    %v477 = vld [vmem:[%s1 + $0xde0] sm:$0xff]
    %v478 = vld [vmem:[%s1 + $0xde8] sm:$0xff]
    %v479 = vld [vmem:[%s1 + $0xdf0] sm:$0xff]
    %v480 = vld [vmem:[%s1 + $0xdf8] sm:$0xff]
    %v481 = vld [vmem:[%s1 + $0xe00] sm:$0xff]
    %v482 = vld [vmem:[%s1 + $0xe08] sm:$0xff]
    %v483 = vld [vmem:[%s1 + $0xe10] sm:$0xff]
    %v484 = vld [vmem:[%s1 + $0xe18] sm:$0xff]
    %v485 = vld [vmem:[%s1 + $0xe20] sm:$0xff]
    %v486 = vld [vmem:[%s1 + $0xe28] sm:$0xff]
    %v487 = vld [vmem:[%s1 + $0xe30] sm:$0xff]
    %v488 = vld [vmem:[%s1 + $0xe38] sm:$0xff]
    %v489 = vld [vmem:[%s1 + $0xe40] sm:$0xff]
    %v490 = vld [vmem:[%s1 + $0xe48] sm:$0xff]
    %v491 = vld [vmem:[%s1 + $0xe50] sm:$0xff]
    %v492 = vld [vmem:[%s1 + $0xe58] sm:$0xff]
    %v493 = vld [vmem:[%s1 + $0xe60] sm:$0xff]
    %v494 = vld [vmem:[%s1 + $0xe68] sm:$0xff]
    %v495 = vld [vmem:[%s1 + $0xe70] sm:$0xff]
    %v496 = vld [vmem:[%s1 + $0xe78] sm:$0xff]
    %v497 = vld [vmem:[%s1 + $0xe80] sm:$0xff]
    %v498 = vld [vmem:[%s1 + $0xe88] sm:$0xff]
    %v499 = vld [vmem:[%s1 + $0xe90] sm:$0xff]
    %v500 = vld [vmem:[%s1 + $0xe98] sm:$0xff]
    %v501 = vld [vmem:[%s1 + $0xea0] sm:$0xff]
    %v502 = vld [vmem:[%s1 + $0xea8] sm:$0xff]
    %v503 = vld [vmem:[%s1 + $0xeb0] sm:$0xff]
    %v504 = vld [vmem:[%s1 + $0xeb8] sm:$0xff]
    %v505 = vld [vmem:[%s1 + $0xec0] sm:$0xff]
    %v506 = vld [vmem:[%s1 + $0xec8] sm:$0xff]
    %v507 = vld [vmem:[%s1 + $0xed0] sm:$0xff]
    %v508 = vld [vmem:[%s1 + $0xed8] sm:$0xff]
    %v509 = vld [vmem:[%s1 + $0xee0] sm:$0xff]
    %v510 = vld [vmem:[%s1 + $0xee8] sm:$0xff]
    %v511 = vld [vmem:[%s1 + $0xef0] sm:$0xff]
    %v512 = vld [vmem:[%s1 + $0xef8] sm:$0xff]
    %v513 = vld [vmem:[%s1 + $0xf00] sm:$0xff]
    %v514 = vld [vmem:[%s1 + $0xf08] sm:$0xff]
    %v515 = vld [vmem:[%s1 + $0xf10] sm:$0xff]
    %v516 = vld [vmem:[%s1 + $0xf18] sm:$0xff]
    %v517 = vld [vmem:[%s1 + $0xf20] sm:$0xff]
    %v518 = vld [vmem:[%s1 + $0xf28] sm:$0xff]
    %v519 = vld [vmem:[%s1 + $0xf30] sm:$0xff]
    %v520 = vld [vmem:[%s1 + $0xf38] sm:$0xff]
    %v521 = vld [vmem:[%s1 + $0xf40] sm:$0xff]
    %v522 = vld [vmem:[%s1 + $0xf48] sm:$0xff]
    %v523 = vld [vmem:[%s1 + $0xf50] sm:$0xff]
    %v524 = vld [vmem:[%s1 + $0xf58] sm:$0xff]
    %v525 = vld [vmem:[%s1 + $0xf60] sm:$0xff]
    %v526 = vld [vmem:[%s1 + $0xf68] sm:$0xff]
    %v527 = vld [vmem:[%s1 + $0xf70] sm:$0xff]
    %v528 = vld [vmem:[%s1 + $0xf78] sm:$0xff]
    %v529 = vld [vmem:[%s1 + $0xf80] sm:$0xff]
    %v530 = vld [vmem:[%s1 + $0xf88] sm:$0xff]
    %v531 = vld [vmem:[%s1 + $0xf90] sm:$0xff]
    %v532 = vld [vmem:[%s1 + $0xf98] sm:$0xff]
    %v533 = vld [vmem:[%s1 + $0xfa0] sm:$0xff]
    %v534 = vld [vmem:[%s1 + $0xfa8] sm:$0xff]
    %v535 = vld [vmem:[%s1 + $0xfb0] sm:$0xff]
    %v536 = vld [vmem:[%s1 + $0xfb8] sm:$0xff]
    %v537 = vld [vmem:[%s1 + $0xfc0] sm:$0xff]
    %v538 = vld [vmem:[%s1 + $0xfc8] sm:$0xff]
    %v539 = vld [vmem:[%s1 + $0xfd0] sm:$0xff]
    %v540 = vld [vmem:[%s1 + $0xfd8] sm:$0xff]
    %v541 = vld [vmem:[%s1 + $0xfe0] sm:$0xff]
    %v542 = vld [vmem:[%s1 + $0xfe8] sm:$0xff]
    %v543 = vld [vmem:[%s1 + $0xff0] sm:$0xff]
    %v544 = vld [vmem:[%s1 + $0xff8] sm:$0xff]
    %v545 = vld [vmem:[%s1 + $0x1000] sm:$0xff]
    %v546 = vld [vmem:[%s1 + $0x1008] sm:$0xff]
    %v547 = vld [vmem:[%s1 + $0x1010] sm:$0xff]
    %v548 = vld [vmem:[%s1 + $0x1018] sm:$0xff]
    %v549 = vld [vmem:[%s1 + $0x1020] sm:$0xff]
    %v550 = vld [vmem:[%s1 + $0x1028] sm:$0xff]
    %v551 = vld [vmem:[%s1 + $0x1030] sm:$0xff]
    %v552 = vld [vmem:[%s1 + $0x1038] sm:$0xff]
    %v553 = vld [vmem:[%s1 + $0x1040] sm:$0xff]
    %v554 = vld [vmem:[%s1 + $0x1048] sm:$0xff]
    %v555 = vld [vmem:[%s1 + $0x1050] sm:$0xff]
    %v556 = vld [vmem:[%s1 + $0x1058] sm:$0xff]
    %v557 = vld [vmem:[%s1 + $0x1060] sm:$0xff]
    %v558 = vld [vmem:[%s1 + $0x1068] sm:$0xff]
    %v559 = vld [vmem:[%s1 + $0x1070] sm:$0xff]
    %v560 = vld [vmem:[%s1 + $0x1078] sm:$0xff]
    %v561 = vld [vmem:[%s1 + $0x1080] sm:$0xff]
    %v562 = vld [vmem:[%s1 + $0x1088] sm:$0xff]
    %v563 = vld [vmem:[%s1 + $0x1090] sm:$0xff]
    %v564 = vld [vmem:[%s1 + $0x1098] sm:$0xff]
    %v565 = vld [vmem:[%s1 + $0x10a0] sm:$0xff]
    %v566 = vld [vmem:[%s1 + $0x10a8] sm:$0xff]
    %v567 = vld [vmem:[%s1 + $0x10b0] sm:$0xff]
    %v568 = vld [vmem:[%s1 + $0x10b8] sm:$0xff]
    %v569 = vld [vmem:[%s1 + $0x10c0] sm:$0xff]
    %v570 = vld [vmem:[%s1 + $0x10c8] sm:$0xff]
    %v571 = vld [vmem:[%s1 + $0x10d0] sm:$0xff]
    %v572 = vld [vmem:[%s1 + $0x10d8] sm:$0xff]
    %v573 = vld [vmem:[%s1 + $0x10e0] sm:$0xff]
    %v574 = vld [vmem:[%s1 + $0x10e8] sm:$0xff]
    %v575 = vld [vmem:[%s1 + $0x10f0] sm:$0xff]
    %v576 = vld [vmem:[%s1 + $0x10f8] sm:$0xff]
    %v577 = vld [vmem:[%s1 + $0x1100] sm:$0xff]
    %v578 = vld [vmem:[%s1 + $0x1108] sm:$0xff]
    %v579 = vld [vmem:[%s1 + $0x1110] sm:$0xff]
    %v580 = vld [vmem:[%s1 + $0x1118] sm:$0xff]
    %v581 = vld [vmem:[%s1 + $0x1120] sm:$0xff]
    %v582 = vld [vmem:[%s1 + $0x1128] sm:$0xff]
    %v583 = vld [vmem:[%s1 + $0x1130] sm:$0xff]
    %v584 = vld [vmem:[%s1 + $0x1138] sm:$0xff]
    %v585 = vld [vmem:[%s1 + $0x1140] sm:$0xff]
    %v586 = vld [vmem:[%s1 + $0x1148] sm:$0xff]
    %v587 = vld [vmem:[%s1 + $0x1150] sm:$0xff]
    %v588 = vld [vmem:[%s1 + $0x1158] sm:$0xff]
    %v589 = vld [vmem:[%s1 + $0x1160] sm:$0xff]
    %v590 = vld [vmem:[%s1 + $0x1168] sm:$0xff]
    %v591 = vld [vmem:[%s1 + $0x1170] sm:$0xff]
    %v592 = vld [vmem:[%s1 + $0x1178] sm:$0xff]
    %v593 = vld [vmem:[%s1 + $0x1180] sm:$0xff]
    %v594 = vld [vmem:[%s1 + $0x1188] sm:$0xff]
    %v595 = vld [vmem:[%s1 + $0x1190] sm:$0xff]
    %v596 = vld [vmem:[%s1 + $0x1198] sm:$0xff]
    %v597 = vld [vmem:[%s1 + $0x11a0] sm:$0xff]
    %v598 = vld [vmem:[%s1 + $0x11a8] sm:$0xff]
    %v599 = vld [vmem:[%s1 + $0x11b0] sm:$0xff]
    %v600 = vld [vmem:[%s1 + $0x11b8] sm:$0xff]
    %v601 = vld [vmem:[%s1 + $0x11c0] sm:$0xff]
    %v602 = vld [vmem:[%s1 + $0x11c8] sm:$0xff]
    %v603 = vld [vmem:[%s1 + $0x11d0] sm:$0xff]
    %v604 = vld [vmem:[%s1 + $0x11d8] sm:$0xff]
    %v605 = vld [vmem:[%s1 + $0x11e0] sm:$0xff]
    %v606 = vld [vmem:[%s1 + $0x11e8] sm:$0xff]
    %v607 = vld [vmem:[%s1 + $0x11f0] sm:$0xff]
    %v608 = vld [vmem:[%s1 + $0x11f8] sm:$0xff]
    %v609 = vld [vmem:[%s1 + $0x1200] sm:$0xff]
    %v610 = vld [vmem:[%s1 + $0x1208] sm:$0xff]
    %v611 = vld [vmem:[%s1 + $0x1210] sm:$0xff]
    %v612 = vld [vmem:[%s1 + $0x1218] sm:$0xff]
    %v613 = vld [vmem:[%s1 + $0x1220] sm:$0xff]
    %v614 = vld [vmem:[%s1 + $0x1228] sm:$0xff]
    %v615 = vld [vmem:[%s1 + $0x1230] sm:$0xff]
    %v616 = vld [vmem:[%s1 + $0x1238] sm:$0xff]
    %v617 = vld [vmem:[%s1 + $0x1240] sm:$0xff]
    %v618 = vld [vmem:[%s1 + $0x1248] sm:$0xff]
    %v619 = vld [vmem:[%s1 + $0x1250] sm:$0xff]
    %v620 = vld [vmem:[%s1 + $0x1258] sm:$0xff]
    %v621 = vld [vmem:[%s1 + $0x1260] sm:$0xff]
    %v622 = vld [vmem:[%s1 + $0x1268] sm:$0xff]
    %v623 = vld [vmem:[%s1 + $0x1270] sm:$0xff]
    %v624 = vld [vmem:[%s1 + $0x1278] sm:$0xff]
    %v625 = vld [vmem:[%s1 + $0x1280] sm:$0xff]
    %v626 = vld [vmem:[%s1 + $0x1288] sm:$0xff]
    %v627 = vld [vmem:[%s1 + $0x1290] sm:$0xff]
    %v628 = vld [vmem:[%s1 + $0x1298] sm:$0xff]
    %v629 = vld [vmem:[%s1 + $0x12a0] sm:$0xff]
    %v630 = vld [vmem:[%s1 + $0x12a8] sm:$0xff]
    %v631 = vld [vmem:[%s1 + $0x12b0] sm:$0xff]
    %v632 = vld [vmem:[%s1 + $0x12b8] sm:$0xff]
    %v633 = vld [vmem:[%s1 + $0x12c0] sm:$0xff]
    %v634 = vld [vmem:[%s1 + $0x12c8] sm:$0xff]
    %v635 = vld [vmem:[%s1 + $0x12d0] sm:$0xff]
    %v636 = vld [vmem:[%s1 + $0x12d8] sm:$0xff]
    %v637 = vld [vmem:[%s1 + $0x12e0] sm:$0xff]
    %v638 = vld [vmem:[%s1 + $0x12e8] sm:$0xff]
    %v639 = vld [vmem:[%s1 + $0x12f0] sm:$0xff]
    %v640 = vld [vmem:[%s1 + $0x12f8] sm:$0xff]
    %v641 = vld [vmem:[%s1 + $0x1300] sm:$0xff]
    %v642 = vld [vmem:[%s1 + $0x1308] sm:$0xff]
    %v643 = vld [vmem:[%s1 + $0x1310] sm:$0xff]
    %v644 = vld [vmem:[%s1 + $0x1318] sm:$0xff]
    %v645 = vld [vmem:[%s1 + $0x1320] sm:$0xff]
    %v646 = vld [vmem:[%s1 + $0x1328] sm:$0xff]
    %v647 = vld [vmem:[%s1 + $0x1330] sm:$0xff]
    %v648 = vld [vmem:[%s1 + $0x1338] sm:$0xff]
    %v649 = vld [vmem:[%s1 + $0x1340] sm:$0xff]
    %v650 = vld [vmem:[%s1 + $0x1348] sm:$0xff]
    %v651 = vld [vmem:[%s1 + $0x1350] sm:$0xff]
    %v652 = vld [vmem:[%s1 + $0x1358] sm:$0xff]
    %v653 = vld [vmem:[%s1 + $0x1360] sm:$0xff]
    %v654 = vld [vmem:[%s1 + $0x1368] sm:$0xff]
    %v655 = vld [vmem:[%s1 + $0x1370] sm:$0xff]
    %v656 = vld [vmem:[%s1 + $0x1378] sm:$0xff]
    %v657 = vld [vmem:[%s1 + $0x1380] sm:$0xff]
    %v658 = vld [vmem:[%s1 + $0x1388] sm:$0xff]
    %v659 = vld [vmem:[%s1 + $0x1390] sm:$0xff]
    %v660 = vld [vmem:[%s1 + $0x1398] sm:$0xff]
    %v661 = vld [vmem:[%s1 + $0x13a0] sm:$0xff]
    %v662 = vld [vmem:[%s1 + $0x13a8] sm:$0xff]
    %v663 = vld [vmem:[%s1 + $0x13b0] sm:$0xff]
    %v664 = vld [vmem:[%s1 + $0x13b8] sm:$0xff]
    %v665 = vld [vmem:[%s1 + $0x13c0] sm:$0xff]
    %v666 = vld [vmem:[%s1 + $0x13c8] sm:$0xff]
    %v667 = vld [vmem:[%s1 + $0x13d0] sm:$0xff]
    %v668 = vld [vmem:[%s1 + $0x13d8] sm:$0xff]
    %v669 = vld [vmem:[%s1 + $0x13e0] sm:$0xff]
    %v670 = vld [vmem:[%s1 + $0x13e8] sm:$0xff]
    %v671 = vld [vmem:[%s1 + $0x13f0] sm:$0xff]
    %v672 = vld [vmem:[%s1 + $0x13f8] sm:$0xff]
    %v673 = vld [vmem:[%s1 + $0x1400] sm:$0xff]
    %v674 = vld [vmem:[%s1 + $0x1408] sm:$0xff]
    %v675 = vld [vmem:[%s1 + $0x1410] sm:$0xff]
    %v676 = vld [vmem:[%s1 + $0x1418] sm:$0xff]
    %v677 = vld [vmem:[%s1 + $0x1420] sm:$0xff]
    %v678 = vld [vmem:[%s1 + $0x1428] sm:$0xff]
    %v679 = vld [vmem:[%s1 + $0x1430] sm:$0xff]
    %v680 = vld [vmem:[%s1 + $0x1438] sm:$0xff]
    %v681 = vld [vmem:[%s1 + $0x1440] sm:$0xff]
    %v682 = vld [vmem:[%s1 + $0x1448] sm:$0xff]
    %v683 = vld [vmem:[%s1 + $0x1450] sm:$0xff]
    %v684 = vld [vmem:[%s1 + $0x1458] sm:$0xff]
    %v685 = vld [vmem:[%s1 + $0x1460] sm:$0xff]
    %v686 = vld [vmem:[%s1 + $0x1468] sm:$0xff]
    %v687 = vld [vmem:[%s1 + $0x1470] sm:$0xff]
    %v688 = vld [vmem:[%s1 + $0x1478] sm:$0xff]
    %v689 = vld [vmem:[%s1 + $0x1480] sm:$0xff]
    %v690 = vld [vmem:[%s1 + $0x1488] sm:$0xff]
    %v691 = vld [vmem:[%s1 + $0x1490] sm:$0xff]
    %v692 = vld [vmem:[%s1 + $0x1498] sm:$0xff]
    %v693 = vld [vmem:[%s1 + $0x14a0] sm:$0xff]
    %v694 = vld [vmem:[%s1 + $0x14a8] sm:$0xff]
    %v695 = vld [vmem:[%s1 + $0x14b0] sm:$0xff]
    %v696 = vld [vmem:[%s1 + $0x14b8] sm:$0xff]
    %v697 = vld [vmem:[%s1 + $0x14c0] sm:$0xff]
    %v698 = vld [vmem:[%s1 + $0x14c8] sm:$0xff]
    %v699 = vld [vmem:[%s1 + $0x14d0] sm:$0xff]
    %v700 = vld [vmem:[%s1 + $0x14d8] sm:$0xff]
    %v701 = vld [vmem:[%s1 + $0x14e0] sm:$0xff]
    %v702 = vld [vmem:[%s1 + $0x14e8] sm:$0xff]
    %v703 = vld [vmem:[%s1 + $0x14f0] sm:$0xff]
    %v704 = vld [vmem:[%s1 + $0x14f8] sm:$0xff]
    %v705 = vld [vmem:[%s1 + $0x1500] sm:$0xff]
    %v706 = vld [vmem:[%s1 + $0x1508] sm:$0xff]
    %v707 = vld [vmem:[%s1 + $0x1510] sm:$0xff]
    %v708 = vld [vmem:[%s1 + $0x1518] sm:$0xff]
    %v709 = vld [vmem:[%s1 + $0x1520] sm:$0xff]
    %v710 = vld [vmem:[%s1 + $0x1528] sm:$0xff]
    %v711 = vld [vmem:[%s1 + $0x1530] sm:$0xff]
    %v712 = vld [vmem:[%s1 + $0x1538] sm:$0xff]
    %v713 = vld [vmem:[%s1 + $0x1540] sm:$0xff]
    %v714 = vld [vmem:[%s1 + $0x1548] sm:$0xff]
    %v715 = vld [vmem:[%s1 + $0x1550] sm:$0xff]
    %v716 = vld [vmem:[%s1 + $0x1558] sm:$0xff]
    %v717 = vld [vmem:[%s1 + $0x1560] sm:$0xff]
    %v718 = vld [vmem:[%s1 + $0x1568] sm:$0xff]
    %v719 = vld [vmem:[%s1 + $0x1570] sm:$0xff]
    %v720 = vld [vmem:[%s1 + $0x1578] sm:$0xff]
    %v721 = vld [vmem:[%s1 + $0x1580] sm:$0xff]
    %v722 = vld [vmem:[%s1 + $0x1588] sm:$0xff]
    %v723 = vld [vmem:[%s1 + $0x1590] sm:$0xff]
    %v724 = vld [vmem:[%s1 + $0x1598] sm:$0xff]
    %v725 = vld [vmem:[%s1 + $0x15a0] sm:$0xff]
    %v726 = vld [vmem:[%s1 + $0x15a8] sm:$0xff]
    %v727 = vld [vmem:[%s1 + $0x15b0] sm:$0xff]
    %v728 = vld [vmem:[%s1 + $0x15b8] sm:$0xff]
    %v729 = vld [vmem:[%s1 + $0x15c0] sm:$0xff]
    %v730 = vld [vmem:[%s1 + $0x15c8] sm:$0xff]
    %v731 = vld [vmem:[%s1 + $0x15d0] sm:$0xff]
    %v732 = vld [vmem:[%s1 + $0x15d8] sm:$0xff]
    %v733 = vld [vmem:[%s1 + $0x15e0] sm:$0xff]
    %v734 = vld [vmem:[%s1 + $0x15e8] sm:$0xff]
    %v735 = vld [vmem:[%s1 + $0x15f0] sm:$0xff]
    %v736 = vld [vmem:[%s1 + $0x15f8] sm:$0xff]
    %v737 = vld [vmem:[%s1 + $0x1600] sm:$0xff]
    %v738 = vld [vmem:[%s1 + $0x1608] sm:$0xff]
    %v739 = vld [vmem:[%s1 + $0x1610] sm:$0xff]
    %v740 = vld [vmem:[%s1 + $0x1618] sm:$0xff]
    %v741 = vld [vmem:[%s1 + $0x1620] sm:$0xff]
    %v742 = vld [vmem:[%s1 + $0x1628] sm:$0xff]
    %v743 = vld [vmem:[%s1 + $0x1630] sm:$0xff]
    %v744 = vld [vmem:[%s1 + $0x1638] sm:$0xff]
    %v745 = vld [vmem:[%s1 + $0x1640] sm:$0xff]
    %v746 = vld [vmem:[%s1 + $0x1648] sm:$0xff]
    %v747 = vld [vmem:[%s1 + $0x1650] sm:$0xff]
    %v748 = vld [vmem:[%s1 + $0x1658] sm:$0xff]
    %v749 = vld [vmem:[%s1 + $0x1660] sm:$0xff]
    %v750 = vld [vmem:[%s1 + $0x1668] sm:$0xff]
    %v751 = vld [vmem:[%s1 + $0x1670] sm:$0xff]
    %v752 = vld [vmem:[%s1 + $0x1678] sm:$0xff]
    %v753 = vld [vmem:[%s1 + $0x1680] sm:$0xff]
    %v754 = vld [vmem:[%s1 + $0x1688] sm:$0xff]
    %v755 = vld [vmem:[%s1 + $0x1690] sm:$0xff]
    %v756 = vld [vmem:[%s1 + $0x1698] sm:$0xff]
    %v757 = vld [vmem:[%s1 + $0x16a0] sm:$0xff]
    %v758 = vld [vmem:[%s1 + $0x16a8] sm:$0xff]
    %v759 = vld [vmem:[%s1 + $0x16b0] sm:$0xff]
    %v760 = vld [vmem:[%s1 + $0x16b8] sm:$0xff]
    %v761 = vld [vmem:[%s1 + $0x16c0] sm:$0xff]
    %v762 = vld [vmem:[%s1 + $0x16c8] sm:$0xff]
    %v763 = vld [vmem:[%s1 + $0x16d0] sm:$0xff]
    %v764 = vld [vmem:[%s1 + $0x16d8] sm:$0xff]
    %v765 = vld [vmem:[%s1 + $0x16e0] sm:$0xff]
    %v766 = vld [vmem:[%s1 + $0x16e8] sm:$0xff]
    %v767 = vld [vmem:[%s1 + $0x16f0] sm:$0xff]
    %v768 = vld [vmem:[%s1 + $0x16f8] sm:$0xff]
    %v769 = vld [vmem:[%s1 + $0x1700] sm:$0xff]
    %v770 = vld [vmem:[%s1 + $0x1708] sm:$0xff]
    %v771 = vld [vmem:[%s1 + $0x1710] sm:$0xff]
    %v772 = vld [vmem:[%s1 + $0x1718] sm:$0xff]
    %v773 = vld [vmem:[%s1 + $0x1720] sm:$0xff]
    %v774 = vld [vmem:[%s1 + $0x1728] sm:$0xff]
    %v775 = vld [vmem:[%s1 + $0x1730] sm:$0xff]
    %v776 = vld [vmem:[%s1 + $0x1738] sm:$0xff]
    %v777 = vld [vmem:[%s1 + $0x1740] sm:$0xff]
    %v778 = vld [vmem:[%s1 + $0x1748] sm:$0xff]
    %v779 = vld [vmem:[%s1 + $0x1750] sm:$0xff]
    %v780 = vld [vmem:[%s1 + $0x1758] sm:$0xff]
    %v781 = vld [vmem:[%s1 + $0x1760] sm:$0xff]
    %v782 = vld [vmem:[%s1 + $0x1768] sm:$0xff]
    %v783 = vld [vmem:[%s1 + $0x1770] sm:$0xff]
    %v784 = vld [vmem:[%s1 + $0x1778] sm:$0xff]
    %v785 = vld [vmem:[%s1 + $0x1780] sm:$0xff]
    %v786 = vld [vmem:[%s1 + $0x1788] sm:$0xff]
    %v787 = vld [vmem:[%s1 + $0x1790] sm:$0xff]
    %v788 = vld [vmem:[%s1 + $0x1798] sm:$0xff]
    %v789 = vld [vmem:[%s1 + $0x17a0] sm:$0xff]
    %v790 = vld [vmem:[%s1 + $0x17a8] sm:$0xff]
    %v791 = vld [vmem:[%s1 + $0x17b0] sm:$0xff]
    %v792 = vld [vmem:[%s1 + $0x17b8] sm:$0xff]
    %v793 = vld [vmem:[%s1 + $0x17c0] sm:$0xff]
    %v794 = vld [vmem:[%s1 + $0x17c8] sm:$0xff]
    %v795 = vld [vmem:[%s1 + $0x17d0] sm:$0xff]
    %v796 = vld [vmem:[%s1 + $0x17d8] sm:$0xff]
    %v797 = vld [vmem:[%s1 + $0x17e0] sm:$0xff]
    %v798 = vld [vmem:[%s1 + $0x17e8] sm:$0xff]
    %v799 = vld [vmem:[%s1 + $0x17f0] sm:$0xff]
    %v800 = vld [vmem:[%s1 + $0x17f8] sm:$0xff]
    %v801 = vld [vmem:[%s1 + $0x1800] sm:$0xff]
    %v802 = vld [vmem:[%s1 + $0x1808] sm:$0xff]
    %v803 = vld [vmem:[%s1 + $0x1810] sm:$0xff]
    %v804 = vld [vmem:[%s1 + $0x1818] sm:$0xff]
    %v805 = vld [vmem:[%s1 + $0x1820] sm:$0xff]
    %v806 = vld [vmem:[%s1 + $0x1828] sm:$0xff]
    %v807 = vld [vmem:[%s1 + $0x1830] sm:$0xff]
    %v808 = vld [vmem:[%s1 + $0x1838] sm:$0xff]
    %v809 = vld [vmem:[%s1 + $0x1840] sm:$0xff]
    %v810 = vld [vmem:[%s1 + $0x1848] sm:$0xff]
    %v811 = vld [vmem:[%s1 + $0x1850] sm:$0xff]
    %v812 = vld [vmem:[%s1 + $0x1858] sm:$0xff]
    %v813 = vld [vmem:[%s1 + $0x1860] sm:$0xff]
    %v814 = vld [vmem:[%s1 + $0x1868] sm:$0xff]
    %v815 = vld [vmem:[%s1 + $0x1870] sm:$0xff]
    %v816 = vld [vmem:[%s1 + $0x1878] sm:$0xff]
    %v817 = vld [vmem:[%s1 + $0x1880] sm:$0xff]
    %v818 = vld [vmem:[%s1 + $0x1888] sm:$0xff]
    %v819 = vld [vmem:[%s1 + $0x1890] sm:$0xff]
    %v820 = vld [vmem:[%s1 + $0x1898] sm:$0xff]
    %v821 = vld [vmem:[%s1 + $0x18a0] sm:$0xff]
    %v822 = vld [vmem:[%s1 + $0x18a8] sm:$0xff]
    %v823 = vld [vmem:[%s1 + $0x18b0] sm:$0xff]
    %v824 = vld [vmem:[%s1 + $0x18b8] sm:$0xff]
    %v825 = vld [vmem:[%s1 + $0x18c0] sm:$0xff]
    %v826 = vld [vmem:[%s1 + $0x18c8] sm:$0xff]
    %v827 = vld [vmem:[%s1 + $0x18d0] sm:$0xff]
    %v828 = vld [vmem:[%s1 + $0x18d8] sm:$0xff]
    %v829 = vld [vmem:[%s1 + $0x18e0] sm:$0xff]
    %v830 = vld [vmem:[%s1 + $0x18e8] sm:$0xff]
    %v831 = vld [vmem:[%s1 + $0x18f0] sm:$0xff]
    %v832 = vld [vmem:[%s1 + $0x18f8] sm:$0xff]
    %v833 = vld [vmem:[%s1 + $0x1900] sm:$0xff]
    %v834 = vld [vmem:[%s1 + $0x1908] sm:$0xff]
    %v835 = vld [vmem:[%s1 + $0x1910] sm:$0xff]
    %v836 = vld [vmem:[%s1 + $0x1918] sm:$0xff]
    %v837 = vld [vmem:[%s1 + $0x1920] sm:$0xff]
    %v838 = vld [vmem:[%s1 + $0x1928] sm:$0xff]
    %v839 = vld [vmem:[%s1 + $0x1930] sm:$0xff]
    %v840 = vld [vmem:[%s1 + $0x1938] sm:$0xff]
    %v841 = vld [vmem:[%s1 + $0x1940] sm:$0xff]
    %v842 = vld [vmem:[%s1 + $0x1948] sm:$0xff]
    %v843 = vld [vmem:[%s1 + $0x1950] sm:$0xff]
    %v844 = vld [vmem:[%s1 + $0x1958] sm:$0xff]
    %v845 = vld [vmem:[%s1 + $0x1960] sm:$0xff]
    %v846 = vld [vmem:[%s1 + $0x1968] sm:$0xff]
    %v847 = vld [vmem:[%s1 + $0x1970] sm:$0xff]
    %v848 = vld [vmem:[%s1 + $0x1978] sm:$0xff]
    %v849 = vld [vmem:[%s1 + $0x1980] sm:$0xff]
    %v850 = vld [vmem:[%s1 + $0x1988] sm:$0xff]
    %v851 = vld [vmem:[%s1 + $0x1990] sm:$0xff]
    %v852 = vld [vmem:[%s1 + $0x1998] sm:$0xff]
    %v853 = vld [vmem:[%s1 + $0x19a0] sm:$0xff]
    %v854 = vld [vmem:[%s1 + $0x19a8] sm:$0xff]
    %v855 = vld [vmem:[%s1 + $0x19b0] sm:$0xff]
    %v856 = vld [vmem:[%s1 + $0x19b8] sm:$0xff]
    %v857 = vld [vmem:[%s1 + $0x19c0] sm:$0xff]
    %v858 = vld [vmem:[%s1 + $0x19c8] sm:$0xff]
    %v859 = vld [vmem:[%s1 + $0x19d0] sm:$0xff]
    %v860 = vld [vmem:[%s1 + $0x19d8] sm:$0xff]
    %v861 = vld [vmem:[%s1 + $0x19e0] sm:$0xff]
    %v862 = vld [vmem:[%s1 + $0x19e8] sm:$0xff]
    %v863 = vld [vmem:[%s1 + $0x19f0] sm:$0xff]
    %v864 = vld [vmem:[%s1 + $0x19f8] sm:$0xff]
    %v865 = vld [vmem:[%s1 + $0x1a00] sm:$0xff]
    %v866 = vld [vmem:[%s1 + $0x1a08] sm:$0xff]
    %v867 = vld [vmem:[%s1 + $0x1a10] sm:$0xff]
    %v868 = vld [vmem:[%s1 + $0x1a18] sm:$0xff]
    %v869 = vld [vmem:[%s1 + $0x1a20] sm:$0xff]
    %v870 = vld [vmem:[%s1 + $0x1a28] sm:$0xff]
    %v871 = vld [vmem:[%s1 + $0x1a30] sm:$0xff]
    %v872 = vld [vmem:[%s1 + $0x1a38] sm:$0xff]
    %v873 = vld [vmem:[%s1 + $0x1a40] sm:$0xff]
    %v874 = vld [vmem:[%s1 + $0x1a48] sm:$0xff]
    %v875 = vld [vmem:[%s1 + $0x1a50] sm:$0xff]
    %v876 = vld [vmem:[%s1 + $0x1a58] sm:$0xff]
    %v877 = vld [vmem:[%s1 + $0x1a60] sm:$0xff]
    %v878 = vld [vmem:[%s1 + $0x1a68] sm:$0xff]
    %v879 = vld [vmem:[%s1 + $0x1a70] sm:$0xff]
    %v880 = vld [vmem:[%s1 + $0x1a78] sm:$0xff]
    %v881 = vld [vmem:[%s1 + $0x1a80] sm:$0xff]
    %v882 = vld [vmem:[%s1 + $0x1a88] sm:$0xff]
    %v883 = vld [vmem:[%s1 + $0x1a90] sm:$0xff]
    %v884 = vld [vmem:[%s1 + $0x1a98] sm:$0xff]
    %v885 = vld [vmem:[%s1 + $0x1aa0] sm:$0xff]
    %v886 = vld [vmem:[%s1 + $0x1aa8] sm:$0xff]
    %v887 = vld [vmem:[%s1 + $0x1ab0] sm:$0xff]
    %v888 = vld [vmem:[%s1 + $0x1ab8] sm:$0xff]
    %v889 = vld [vmem:[%s1 + $0x1ac0] sm:$0xff]
    %v890 = vld [vmem:[%s1 + $0x1ac8] sm:$0xff]
    %v891 = vld [vmem:[%s1 + $0x1ad0] sm:$0xff]
    %v892 = vld [vmem:[%s1 + $0x1ad8] sm:$0xff]
    %v893 = vld [vmem:[%s1 + $0x1ae0] sm:$0xff]
    %v894 = vld [vmem:[%s1 + $0x1ae8] sm:$0xff]
    %v895 = vld [vmem:[%s1 + $0x1af0] sm:$0xff]
    %v896 = vld [vmem:[%s1 + $0x1af8] sm:$0xff]
    %v897 = vld [vmem:[%s1 + $0x1b00] sm:$0xff]
    %v898 = vld [vmem:[%s1 + $0x1b08] sm:$0xff]
    %v899 = vld [vmem:[%s1 + $0x1b10] sm:$0xff]
    %v900 = vld [vmem:[%s1 + $0x1b18] sm:$0xff]
    %v901 = vld [vmem:[%s1 + $0x1b20] sm:$0xff]
    %v902 = vld [vmem:[%s1 + $0x1b28] sm:$0xff]
    %v903 = vld [vmem:[%s1 + $0x1b30] sm:$0xff]
    %v904 = vld [vmem:[%s1 + $0x1b38] sm:$0xff]
    %v905 = vld [vmem:[%s1 + $0x1b40] sm:$0xff]
    %v906 = vld [vmem:[%s1 + $0x1b48] sm:$0xff]
    %v907 = vld [vmem:[%s1 + $0x1b50] sm:$0xff]
    %v908 = vld [vmem:[%s1 + $0x1b58] sm:$0xff]
    %v909 = vld [vmem:[%s1 + $0x1b60] sm:$0xff]
    %v910 = vld [vmem:[%s1 + $0x1b68] sm:$0xff]
    %v911 = vld [vmem:[%s1 + $0x1b70] sm:$0xff]
    %v912 = vld [vmem:[%s1 + $0x1b78] sm:$0xff]
    %v913 = vld [vmem:[%s1 + $0x1b80] sm:$0xff]
    %v914 = vld [vmem:[%s1 + $0x1b88] sm:$0xff]
    %v915 = vld [vmem:[%s1 + $0x1b90] sm:$0xff]
    %v916 = vld [vmem:[%s1 + $0x1b98] sm:$0xff]
    %v917 = vld [vmem:[%s1 + $0x1ba0] sm:$0xff]
    %v918 = vld [vmem:[%s1 + $0x1ba8] sm:$0xff]
    %v919 = vld [vmem:[%s1 + $0x1bb0] sm:$0xff]
    %v920 = vld [vmem:[%s1 + $0x1bb8] sm:$0xff]
    %v921 = vld [vmem:[%s1 + $0x1bc0] sm:$0xff]
    %v922 = vld [vmem:[%s1 + $0x1bc8] sm:$0xff]
    %v923 = vld [vmem:[%s1 + $0x1bd0] sm:$0xff]
    %v924 = vld [vmem:[%s1 + $0x1bd8] sm:$0xff]
    %v925 = vld [vmem:[%s1 + $0x1be0] sm:$0xff]
    %v926 = vld [vmem:[%s1 + $0x1be8] sm:$0xff]
    %v927 = vld [vmem:[%s1 + $0x1bf0] sm:$0xff]
    %v928 = vld [vmem:[%s1 + $0x1bf8] sm:$0xff]
    %v929 = vld [vmem:[%s1 + $0x1c00] sm:$0xff]
    %v930 = vld [vmem:[%s1 + $0x1c08] sm:$0xff]
    %v931 = vld [vmem:[%s1 + $0x1c10] sm:$0xff]
    %v932 = vld [vmem:[%s1 + $0x1c18] sm:$0xff]
    %v933 = vld [vmem:[%s1 + $0x1c20] sm:$0xff]
    %v934 = vld [vmem:[%s1 + $0x1c28] sm:$0xff]
    %v935 = vld [vmem:[%s1 + $0x1c30] sm:$0xff]
    %v936 = vld [vmem:[%s1 + $0x1c38] sm:$0xff]
    %v937 = vld [vmem:[%s1 + $0x1c40] sm:$0xff]
    %v938 = vld [vmem:[%s1 + $0x1c48] sm:$0xff]
    %v939 = vld [vmem:[%s1 + $0x1c50] sm:$0xff]
    %v940 = vld [vmem:[%s1 + $0x1c58] sm:$0xff]
    %v941 = vld [vmem:[%s1 + $0x1c60] sm:$0xff]
    %v942 = vld [vmem:[%s1 + $0x1c68] sm:$0xff]
    %v943 = vld [vmem:[%s1 + $0x1c70] sm:$0xff]
    %v944 = vld [vmem:[%s1 + $0x1c78] sm:$0xff]
    %v945 = vld [vmem:[%s1 + $0x1c80] sm:$0xff]
    %v946 = vld [vmem:[%s1 + $0x1c88] sm:$0xff]
    %v947 = vld [vmem:[%s1 + $0x1c90] sm:$0xff]
    %v948 = vld [vmem:[%s1 + $0x1c98] sm:$0xff]
    %v949 = vld [vmem:[%s1 + $0x1ca0] sm:$0xff]
    %v950 = vld [vmem:[%s1 + $0x1ca8] sm:$0xff]
    %v951 = vld [vmem:[%s1 + $0x1cb0] sm:$0xff]
    %v952 = vld [vmem:[%s1 + $0x1cb8] sm:$0xff]
    %v953 = vld [vmem:[%s1 + $0x1cc0] sm:$0xff]
    %v954 = vld [vmem:[%s1 + $0x1cc8] sm:$0xff]
    %v955 = vld [vmem:[%s1 + $0x1cd0] sm:$0xff]
    %v956 = vld [vmem:[%s1 + $0x1cd8] sm:$0xff]
    %v957 = vld [vmem:[%s1 + $0x1ce0] sm:$0xff]
    %v958 = vld [vmem:[%s1 + $0x1ce8] sm:$0xff]
    %v959 = vld [vmem:[%s1 + $0x1cf0] sm:$0xff]
    %v960 = vld [vmem:[%s1 + $0x1cf8] sm:$0xff]
    %v961 = vld [vmem:[%s1 + $0x1d00] sm:$0xff]
    %v962 = vld [vmem:[%s1 + $0x1d08] sm:$0xff]
    %v963 = vld [vmem:[%s1 + $0x1d10] sm:$0xff]
    %v964 = vld [vmem:[%s1 + $0x1d18] sm:$0xff]
    %v965 = vld [vmem:[%s1 + $0x1d20] sm:$0xff]
    %v966 = vld [vmem:[%s1 + $0x1d28] sm:$0xff]
    %v967 = vld [vmem:[%s1 + $0x1d30] sm:$0xff]
    %v968 = vld [vmem:[%s1 + $0x1d38] sm:$0xff]
    %v969 = vld [vmem:[%s1 + $0x1d40] sm:$0xff]
    %v970 = vld [vmem:[%s1 + $0x1d48] sm:$0xff]
    %v971 = vld [vmem:[%s1 + $0x1d50] sm:$0xff]
    %v972 = vld [vmem:[%s1 + $0x1d58] sm:$0xff]
    %v973 = vld [vmem:[%s1 + $0x1d60] sm:$0xff]
    %v974 = vld [vmem:[%s1 + $0x1d68] sm:$0xff]
    %v975 = vld [vmem:[%s1 + $0x1d70] sm:$0xff]
    %v976 = vld [vmem:[%s1 + $0x1d78] sm:$0xff]
    %v977 = vld [vmem:[%s1 + $0x1d80] sm:$0xff]
    %v978 = vld [vmem:[%s1 + $0x1d88] sm:$0xff]
    %v979 = vld [vmem:[%s1 + $0x1d90] sm:$0xff]
    %v980 = vld [vmem:[%s1 + $0x1d98] sm:$0xff]
    %v981 = vld [vmem:[%s1 + $0x1da0] sm:$0xff]
    %v982 = vld [vmem:[%s1 + $0x1da8] sm:$0xff]
    %v983 = vld [vmem:[%s1 + $0x1db0] sm:$0xff]
    %v984 = vld [vmem:[%s1 + $0x1db8] sm:$0xff]
    %v985 = vld [vmem:[%s1 + $0x1dc0] sm:$0xff]
    %v986 = vld [vmem:[%s1 + $0x1dc8] sm:$0xff]
    %v987 = vld [vmem:[%s1 + $0x1dd0] sm:$0xff]
    %v988 = vld [vmem:[%s1 + $0x1dd8] sm:$0xff]
    %v989 = vld [vmem:[%s1 + $0x1de0] sm:$0xff]
    %v990 = vld [vmem:[%s1 + $0x1de8] sm:$0xff]
    %v991 = vld [vmem:[%s1 + $0x1df0] sm:$0xff]
    %v992 = vld [vmem:[%s1 + $0x1df8] sm:$0xff]
    %v993 = vld [vmem:[%s1 + $0x1e00] sm:$0xff]
    %v994 = vld [vmem:[%s1 + $0x1e08] sm:$0xff]
    %v995 = vld [vmem:[%s1 + $0x1e10] sm:$0xff]
    %v996 = vld [vmem:[%s1 + $0x1e18] sm:$0xff]
    %v997 = vld [vmem:[%s1 + $0x1e20] sm:$0xff]
    %v998 = vld [vmem:[%s1 + $0x1e28] sm:$0xff]
    %v999 = vld [vmem:[%s1 + $0x1e30] sm:$0xff]
    %v1000 = vld [vmem:[%s1 + $0x1e38] sm:$0xff]
    %v1001 = vld [vmem:[%s1 + $0x1e40] sm:$0xff]
    %v1002 = vld [vmem:[%s1 + $0x1e48] sm:$0xff]
    %v1003 = vld [vmem:[%s1 + $0x1e50] sm:$0xff]
    %v1004 = vld [vmem:[%s1 + $0x1e58] sm:$0xff]
    %v1005 = vld [vmem:[%s1 + $0x1e60] sm:$0xff]
    %v1006 = vld [vmem:[%s1 + $0x1e68] sm:$0xff]
    %v1007 = vld [vmem:[%s1 + $0x1e70] sm:$0xff]
    %v1008 = vld [vmem:[%s1 + $0x1e78] sm:$0xff]
    %v1009 = vld [vmem:[%s1 + $0x1e80] sm:$0xff]
    %v1010 = vld [vmem:[%s1 + $0x1e88] sm:$0xff]
    %v1011 = vld [vmem:[%s1 + $0x1e90] sm:$0xff]
    %v1012 = vld [vmem:[%s1 + $0x1e98] sm:$0xff]
    %v1013 = vld [vmem:[%s1 + $0x1ea0] sm:$0xff]
    %v1014 = vld [vmem:[%s1 + $0x1ea8] sm:$0xff]
    %v1015 = vld [vmem:[%s1 + $0x1eb0] sm:$0xff]
    %v1016 = vld [vmem:[%s1 + $0x1eb8] sm:$0xff]
    %v1017 = vld [vmem:[%s1 + $0x1ec0] sm:$0xff]
    %v1018 = vld [vmem:[%s1 + $0x1ec8] sm:$0xff]
    %v1019 = vld [vmem:[%s1 + $0x1ed0] sm:$0xff]
    %v1020 = vld [vmem:[%s1 + $0x1ed8] sm:$0xff]
    %v1021 = vld [vmem:[%s1 + $0x1ee0] sm:$0xff]
    %v1022 = vld [vmem:[%s1 + $0x1ee8] sm:$0xff]
    %v1023 = vld [vmem:[%s1 + $0x1ef0] sm:$0xff]
    %v1024 = vld [vmem:[%s1 + $0x1ef8] sm:$0xff]
    %v1025 = vld [vmem:[%s1 + $0x1f00] sm:$0xff]
    %v1026 = vld [vmem:[%s1 + $0x1f08] sm:$0xff]
    %v1027 = vld [vmem:[%s1 + $0x1f10] sm:$0xff]
    %v1028 = vld [vmem:[%s1 + $0x1f18] sm:$0xff]
    %v1029 = vld [vmem:[%s1 + $0x1f20] sm:$0xff]
    %v1030 = vld [vmem:[%s1 + $0x1f28] sm:$0xff]
    %v1031 = vld [vmem:[%s1 + $0x1f30] sm:$0xff]
    %v1032 = vld [vmem:[%s1 + $0x1f38] sm:$0xff]
    %v1033 = vld [vmem:[%s1 + $0x1f40] sm:$0xff]
    %v1034 = vld [vmem:[%s1 + $0x1f48] sm:$0xff]
    %v1035 = vld [vmem:[%s1 + $0x1f50] sm:$0xff]
    %v1036 = vld [vmem:[%s1 + $0x1f58] sm:$0xff]
    %v1037 = vld [vmem:[%s1 + $0x1f60] sm:$0xff]
    %v1038 = vld [vmem:[%s1 + $0x1f68] sm:$0xff]
    %v1039 = vld [vmem:[%s1 + $0x1f70] sm:$0xff]
    %v1040 = vld [vmem:[%s1 + $0x1f78] sm:$0xff]
    %v1041 = vld [vmem:[%s1 + $0x1f80] sm:$0xff]
    %v1042 = vld [vmem:[%s1 + $0x1f88] sm:$0xff]
    %v1043 = vld [vmem:[%s1 + $0x1f90] sm:$0xff]
    %v1044 = vld [vmem:[%s1 + $0x1f98] sm:$0xff]
    %v1045 = vld [vmem:[%s1 + $0x1fa0] sm:$0xff]
    %v1046 = vld [vmem:[%s1 + $0x1fa8] sm:$0xff]
    %v1047 = vld [vmem:[%s1 + $0x1fb0] sm:$0xff]
    %v1048 = vld [vmem:[%s1 + $0x1fb8] sm:$0xff]
    %v1049 = vld [vmem:[%s1 + $0x1fc0] sm:$0xff]
    %v1050 = vld [vmem:[%s1 + $0x1fc8] sm:$0xff]
    %v1051 = vld [vmem:[%s1 + $0x1fd0] sm:$0xff]
    %v1052 = vld [vmem:[%s1 + $0x1fd8] sm:$0xff]
    %v1053 = vld [vmem:[%s1 + $0x1fe0] sm:$0xff]
    %v1054 = vld [vmem:[%s1 + $0x1fe8] sm:$0xff]
    %v1055 = vld [vmem:[%s1 + $0x1ff0] sm:$0xff]
    %v1056 = vld [vmem:[%s1 + $0x1ff8] sm:$0xff]
    %v1057 = vld [vmem:[%s1 + $0x2000] sm:$0xff]
    %v1058 = vld [vmem:[%s1 + $0x2008] sm:$0xff]
    %v1059 = vld [vmem:[%s1 + $0x2010] sm:$0xff]
    %v1060 = vld [vmem:[%s1 + $0x2018] sm:$0xff]
    %v1061 = vld [vmem:[%s1 + $0x2020] sm:$0xff]
    %v1062 = vld [vmem:[%s1 + $0x2028] sm:$0xff]
    %v1063 = vld [vmem:[%s1 + $0x2030] sm:$0xff]
    %v1064 = vld [vmem:[%s1 + $0x2038] sm:$0xff]
    %v1065 = vld [vmem:[%s1 + $0x2040] sm:$0xff]
    %v1066 = vld [vmem:[%s1 + $0x2048] sm:$0xff]
    %v1067 = vld [vmem:[%s1 + $0x2050] sm:$0xff]
    %v1068 = vld [vmem:[%s1 + $0x2058] sm:$0xff]
    %v1069 = vld [vmem:[%s1 + $0x2060] sm:$0xff]
    %v1070 = vld [vmem:[%s1 + $0x2068] sm:$0xff]
    %v1071 = vld [vmem:[%s1 + $0x2070] sm:$0xff]
    %v1072 = vld [vmem:[%s1 + $0x2078] sm:$0xff]
    %v1073 = vld [vmem:[%s1 + $0x2080] sm:$0xff]
    %v1074 = vld [vmem:[%s1 + $0x2088] sm:$0xff]
    %v1075 = vld [vmem:[%s1 + $0x2090] sm:$0xff]
    %v1076 = vld [vmem:[%s1 + $0x2098] sm:$0xff]
    %v1077 = vld [vmem:[%s1 + $0x20a0] sm:$0xff]
    %v1078 = vld [vmem:[%s1 + $0x20a8] sm:$0xff]
    %v1079 = vld [vmem:[%s1 + $0x20b0] sm:$0xff]
    %v1080 = vld [vmem:[%s1 + $0x20b8] sm:$0xff]
    %v1081 = vld [vmem:[%s1 + $0x20c0] sm:$0xff]
    %v1082 = vld [vmem:[%s1 + $0x20c8] sm:$0xff]
    %v1083 = vld [vmem:[%s1 + $0x20d0] sm:$0xff]
    %v1084 = vld [vmem:[%s1 + $0x20d8] sm:$0xff]
    %v1085 = vld [vmem:[%s1 + $0x20e0] sm:$0xff]
    %v1086 = vld [vmem:[%s1 + $0x20e8] sm:$0xff]
    %v1087 = vld [vmem:[%s1 + $0x20f0] sm:$0xff]
    %v1088 = vld [vmem:[%s1 + $0x20f8] sm:$0xff]
    %v1089 = vld [vmem:[%s1 + $0x2100] sm:$0xff]
    %v1090 = vld [vmem:[%s1 + $0x2108] sm:$0xff]
    %v1091 = vld [vmem:[%s1 + $0x2110] sm:$0xff]
    %v1092 = vld [vmem:[%s1 + $0x2118] sm:$0xff]
    %v1093 = vld [vmem:[%s1 + $0x2120] sm:$0xff]
    %v1094 = vld [vmem:[%s1 + $0x2128] sm:$0xff]
    %v1095 = vld [vmem:[%s1 + $0x2130] sm:$0xff]
    %v1096 = vld [vmem:[%s1 + $0x2138] sm:$0xff]
    %v1097 = vld [vmem:[%s1 + $0x2140] sm:$0xff]
    %v1098 = vld [vmem:[%s1 + $0x2148] sm:$0xff]
    %v1099 = vld [vmem:[%s1 + $0x2150] sm:$0xff]
    %v1100 = vld [vmem:[%s1 + $0x2158] sm:$0xff]
    %v1101 = vld [vmem:[%s1 + $0x2160] sm:$0xff]
    %v1102 = vld [vmem:[%s1 + $0x2168] sm:$0xff]
    %v1103 = vld [vmem:[%s1 + $0x2170] sm:$0xff]
    %v1104 = vld [vmem:[%s1 + $0x2178] sm:$0xff]
    %v1105 = vld [vmem:[%s1 + $0x2180] sm:$0xff]
    %v1106 = vld [vmem:[%s1 + $0x2188] sm:$0xff]
    %v1107 = vld [vmem:[%s1 + $0x2190] sm:$0xff]
    %v1108 = vld [vmem:[%s1 + $0x2198] sm:$0xff]
    %v1109 = vld [vmem:[%s1 + $0x21a0] sm:$0xff]
    %v1110 = vld [vmem:[%s1 + $0x21a8] sm:$0xff]
    %v1111 = vld [vmem:[%s1 + $0x21b0] sm:$0xff]
    %v1112 = vld [vmem:[%s1 + $0x21b8] sm:$0xff]
    %v1113 = vld [vmem:[%s1 + $0x21c0] sm:$0xff]
    %v1114 = vld [vmem:[%s1 + $0x21c8] sm:$0xff]
    %v1115 = vld [vmem:[%s1 + $0x21d0] sm:$0xff]
    %v1116 = vld [vmem:[%s1 + $0x21d8] sm:$0xff]
    %v1117 = vld [vmem:[%s1 + $0x21e0] sm:$0xff]
    %v1118 = vld [vmem:[%s1 + $0x21e8] sm:$0xff]
    %v1119 = vld [vmem:[%s1 + $0x21f0] sm:$0xff]
    %v1120 = vld [vmem:[%s1 + $0x21f8] sm:$0xff]
    %v1121 = vld [vmem:[%s1 + $0x2200] sm:$0xff]
    %v1122 = vld [vmem:[%s1 + $0x2208] sm:$0xff]
    %v1123 = vld [vmem:[%s1 + $0x2210] sm:$0xff]
    %v1124 = vld [vmem:[%s1 + $0x2218] sm:$0xff]
    %v1125 = vld [vmem:[%s1 + $0x2220] sm:$0xff]
    %v1126 = vld [vmem:[%s1 + $0x2228] sm:$0xff]
    %v1127 = vld [vmem:[%s1 + $0x2230] sm:$0xff]
    %v1128 = vld [vmem:[%s1 + $0x2238] sm:$0xff]
    %v1129 = vld [vmem:[%s1 + $0x2240] sm:$0xff]
    %v1130 = vld [vmem:[%s1 + $0x2248] sm:$0xff]
    %v1131 = vld [vmem:[%s1 + $0x2250] sm:$0xff]
    %v1132 = vld [vmem:[%s1 + $0x2258] sm:$0xff]
    %v1133 = vld [vmem:[%s1 + $0x2260] sm:$0xff]
    %v1134 = vld [vmem:[%s1 + $0x2268] sm:$0xff]
    %v1135 = vld [vmem:[%s1 + $0x2270] sm:$0xff]
    %v1136 = vld [vmem:[%s1 + $0x2278] sm:$0xff]
    %v1137 = vld [vmem:[%s1 + $0x2280] sm:$0xff]
    %v1138 = vld [vmem:[%s1 + $0x2288] sm:$0xff]
    %v1139 = vld [vmem:[%s1 + $0x2290] sm:$0xff]
    %v1140 = vld [vmem:[%s1 + $0x2298] sm:$0xff]
    %v1141 = vld [vmem:[%s1 + $0x22a0] sm:$0xff]
    %v1142 = vld [vmem:[%s1 + $0x22a8] sm:$0xff]
    %v1143 = vld [vmem:[%s1 + $0x22b0] sm:$0xff]
    %v1144 = vld [vmem:[%s1 + $0x22b8] sm:$0xff]
    %v1145 = vld [vmem:[%s1 + $0x22c0] sm:$0xff]
    %v1146 = vld [vmem:[%s1 + $0x22c8] sm:$0xff]
    %v1147 = vld [vmem:[%s1 + $0x22d0] sm:$0xff]
    %v1148 = vld [vmem:[%s1 + $0x22d8] sm:$0xff]
    %v1149 = vld [vmem:[%s1 + $0x22e0] sm:$0xff]
    %v1150 = vld [vmem:[%s1 + $0x22e8] sm:$0xff]
    %v1151 = vld [vmem:[%s1 + $0x22f0] sm:$0xff]
    %v1152 = vld [vmem:[%s1 + $0x22f8] sm:$0xff]
    %v1153 = vld [vmem:[%s1 + $0x2300] sm:$0xff]
    %v1154 = vld [vmem:[%s1 + $0x2308] sm:$0xff]
    %v1155 = vld [vmem:[%s1 + $0x2310] sm:$0xff]
    %v1156 = vld [vmem:[%s1 + $0x2318] sm:$0xff]
    %v1157 = vld [vmem:[%s1 + $0x2320] sm:$0xff]
    %v1158 = vld [vmem:[%s1 + $0x2328] sm:$0xff]
    %v1159 = vld [vmem:[%s1 + $0x2330] sm:$0xff]
    %v1160 = vld [vmem:[%s1 + $0x2338] sm:$0xff]
    %v1161 = vld [vmem:[%s1 + $0x2340] sm:$0xff]
    %v1162 = vld [vmem:[%s1 + $0x2348] sm:$0xff]
    %v1163 = vld [vmem:[%s1 + $0x2350] sm:$0xff]
    %v1164 = vld [vmem:[%s1 + $0x2358] sm:$0xff]
    %v1165 = vld [vmem:[%s1 + $0x2360] sm:$0xff]
    %v1166 = vld [vmem:[%s1 + $0x2368] sm:$0xff]
    %v1167 = vld [vmem:[%s1 + $0x2370] sm:$0xff]
    %v1168 = vld [vmem:[%s1 + $0x2378] sm:$0xff]
    %v1169 = vld [vmem:[%s1 + $0x2380] sm:$0xff]
    %v1170 = vld [vmem:[%s1 + $0x2388] sm:$0xff]
    %v1171 = vld [vmem:[%s1 + $0x2390] sm:$0xff]
    %v1172 = vld [vmem:[%s1 + $0x2398] sm:$0xff]
    %v1173 = vld [vmem:[%s1 + $0x23a0] sm:$0xff]
    %v1174 = vld [vmem:[%s1 + $0x23a8] sm:$0xff]
    %v1175 = vld [vmem:[%s1 + $0x23b0] sm:$0xff]
    %v1176 = vld [vmem:[%s1 + $0x23b8] sm:$0xff]
    %v1177 = vld [vmem:[%s1 + $0x23c0] sm:$0xff]
    %v1178 = vld [vmem:[%s1 + $0x23c8] sm:$0xff]
    %v1179 = vld [vmem:[%s1 + $0x23d0] sm:$0xff]
    %v1180 = vld [vmem:[%s1 + $0x23d8] sm:$0xff]
    %v1181 = vld [vmem:[%s1 + $0x23e0] sm:$0xff]
    %v1182 = vld [vmem:[%s1 + $0x23e8] sm:$0xff]
    %v1183 = vld [vmem:[%s1 + $0x23f0] sm:$0xff]
    %v1184 = vld [vmem:[%s1 + $0x23f8] sm:$0xff]
    %v1185 = vld [vmem:[%s2] sm:$0x1]
    %v1187 = vlaneseq
    %v1188 = vshrl.u32 %v1187, 7
    %v1189 = vsub.s32 0, %v1188
    %v1190 = vrot.slane %v1185, %v1189
    %v1210 = vcombine.high %v15, %v15
    %v1212 = vunpack.c.l.s4 1983009808
    %v1213 = vunpack.c.0.s8 %v1212
    %v1214 = vlaneseq
    %v1215 = vshrl.u32 %v1214, 7
    %v1216 = vsub.s32 %v1213, %v1215
    %v1217 = vrot.slane %v15, %v1216
    %v1219 = vunpack.c.l.s4 1983009808
    %v1220 = vunpack.c.0.s8 %v1219
    %v1221 = vlaneseq
    %v1222 = vshrl.u32 %v1221, 7
    %v1223 = vsub.s32 %v1220, %v1222
    %v1224 = vrot.slane %v1210, %v1223
    %v1225 = vcombine.high %v1217, %v1217
    %v1226 = vcombine.high %v1224, %v1224
    %v1227 = vcombine.high %v16, %v16
    %v1229 = vunpack.c.l.s4 1983009808
    %v1230 = vunpack.c.0.s8 %v1229
    %v1231 = vlaneseq
    %v1232 = vshrl.u32 %v1231, 7
    %v1233 = vsub.s32 %v1230, %v1232
    %v1234 = vrot.slane %v16, %v1233
    %v1236 = vunpack.c.l.s4 1983009808
    %v1237 = vunpack.c.0.s8 %v1236
    %v1238 = vlaneseq
    %v1239 = vshrl.u32 %v1238, 7
    %v1240 = vsub.s32 %v1237, %v1239
    %v1241 = vrot.slane %v1227, %v1240
    %v1242 = vcombine.high %v1234, %v1234
    %v1243 = vcombine.high %v1241, %v1241
    %v1244 = vcombine.high %v17, %v17
    %v1246 = vunpack.c.l.s4 1983009808
    %v1247 = vunpack.c.0.s8 %v1246
    %v1248 = vlaneseq
    %v1249 = vshrl.u32 %v1248, 7
    %v1250 = vsub.s32 %v1247, %v1249
    %v1251 = vrot.slane %v17, %v1250
    %v1253 = vunpack.c.l.s4 1983009808
    %v1254 = vunpack.c.0.s8 %v1253
    %v1255 = vlaneseq
    %v1256 = vshrl.u32 %v1255, 7
    %v1257 = vsub.s32 %v1254, %v1256
    %v1258 = vrot.slane %v1244, %v1257
    %v1259 = vcombine.high %v1251, %v1251
    %v1260 = vcombine.high %v1258, %v1258
    %v1261 = vcombine.high %v18, %v18
    %v1263 = vunpack.c.l.s4 1983009808
    %v1264 = vunpack.c.0.s8 %v1263
    %v1265 = vlaneseq
    %v1266 = vshrl.u32 %v1265, 7
    %v1267 = vsub.s32 %v1264, %v1266
    %v1268 = vrot.slane %v18, %v1267
    %v1270 = vunpack.c.l.s4 1983009808
    %v1271 = vunpack.c.0.s8 %v1270
    %v1272 = vlaneseq
    %v1273 = vshrl.u32 %v1272, 7
    %v1274 = vsub.s32 %v1271, %v1273
    %v1275 = vrot.slane %v1261, %v1274
    %v1276 = vcombine.high %v1268, %v1268
    %v1277 = vcombine.high %v1275, %v1275
    %v1278 = vcombine.high %v19, %v19
    %v1280 = vunpack.c.l.s4 1983009808
    %v1281 = vunpack.c.0.s8 %v1280
    %v1282 = vlaneseq
    %v1283 = vshrl.u32 %v1282, 7
    %v1284 = vsub.s32 %v1281, %v1283
    %v1285 = vrot.slane %v19, %v1284
    %v1287 = vunpack.c.l.s4 1983009808
    %v1288 = vunpack.c.0.s8 %v1287
    %v1289 = vlaneseq
    %v1290 = vshrl.u32 %v1289, 7
    %v1291 = vsub.s32 %v1288, %v1290
    %v1292 = vrot.slane %v1278, %v1291
    %v1293 = vcombine.high %v1285, %v1285
    %v1294 = vcombine.high %v1292, %v1292
    %v1295 = vcombine.high %v20, %v20
    %v1297 = vunpack.c.l.s4 1983009808
    %v1298 = vunpack.c.0.s8 %v1297
    %v1299 = vlaneseq
    %v1300 = vshrl.u32 %v1299, 7
    %v1301 = vsub.s32 %v1298, %v1300
    %v1302 = vrot.slane %v20, %v1301
    %v1304 = vunpack.c.l.s4 1983009808
    %v1305 = vunpack.c.0.s8 %v1304
    %v1306 = vlaneseq
    %v1307 = vshrl.u32 %v1306, 7
    %v1308 = vsub.s32 %v1305, %v1307
    %v1309 = vrot.slane %v1295, %v1308
    %v1310 = vcombine.high %v1302, %v1302
    %v1311 = vcombine.high %v1309, %v1309
    %v1312 = vcombine.high %v21, %v21
    %v1314 = vunpack.c.l.s4 1983009808
    %v1315 = vunpack.c.0.s8 %v1314
    %v1316 = vlaneseq
    %v1317 = vshrl.u32 %v1316, 7
    %v1318 = vsub.s32 %v1315, %v1317
    %v1319 = vrot.slane %v21, %v1318
    %v1321 = vunpack.c.l.s4 1983009808
    %v1322 = vunpack.c.0.s8 %v1321
    %v1323 = vlaneseq
    %v1324 = vshrl.u32 %v1323, 7
    %v1325 = vsub.s32 %v1322, %v1324
    %v1326 = vrot.slane %v1312, %v1325
    %v1327 = vcombine.high %v1319, %v1319
    %v1328 = vcombine.high %v1326, %v1326
    %v1329 = vcombine.high %v22, %v22
    %v1331 = vunpack.c.l.s4 1983009808
    %v1332 = vunpack.c.0.s8 %v1331
    %v1333 = vlaneseq
    %v1334 = vshrl.u32 %v1333, 7
    %v1335 = vsub.s32 %v1332, %v1334
    %v1336 = vrot.slane %v22, %v1335
    %v1338 = vunpack.c.l.s4 1983009808
    %v1339 = vunpack.c.0.s8 %v1338
    %v1340 = vlaneseq
    %v1341 = vshrl.u32 %v1340, 7
    %v1342 = vsub.s32 %v1339, %v1341
    %v1343 = vrot.slane %v1329, %v1342
    %v1344 = vcombine.high %v1336, %v1336
    %v1345 = vcombine.high %v1343, %v1343
    %v1346 = vcombine.high %v23, %v23
    %v1348 = vunpack.c.l.s4 1983009808
    %v1349 = vunpack.c.0.s8 %v1348
    %v1350 = vlaneseq
    %v1351 = vshrl.u32 %v1350, 7
    %v1352 = vsub.s32 %v1349, %v1351
    %v1353 = vrot.slane %v23, %v1352
    %v1355 = vunpack.c.l.s4 1983009808
    %v1356 = vunpack.c.0.s8 %v1355
    %v1357 = vlaneseq
    %v1358 = vshrl.u32 %v1357, 7
    %v1359 = vsub.s32 %v1356, %v1358
    %v1360 = vrot.slane %v1346, %v1359
    %v1361 = vcombine.high %v1353, %v1353
    %v1362 = vcombine.high %v1360, %v1360
    %v1363 = vcombine.high %v24, %v24
    %v1365 = vunpack.c.l.s4 1983009808
    %v1366 = vunpack.c.0.s8 %v1365
    %v1367 = vlaneseq
    %v1368 = vshrl.u32 %v1367, 7
    %v1369 = vsub.s32 %v1366, %v1368
    %v1370 = vrot.slane %v24, %v1369
    %v1372 = vunpack.c.l.s4 1983009808
    %v1373 = vunpack.c.0.s8 %v1372
    %v1374 = vlaneseq
    %v1375 = vshrl.u32 %v1374, 7
    %v1376 = vsub.s32 %v1373, %v1375
    %v1377 = vrot.slane %v1363, %v1376
    %v1378 = vcombine.high %v1370, %v1370
    %v1379 = vcombine.high %v1377, %v1377
    %v1380 = vcombine.high %v25, %v25
    %v1382 = vunpack.c.l.s4 1983009808
    %v1383 = vunpack.c.0.s8 %v1382
    %v1384 = vlaneseq
    %v1385 = vshrl.u32 %v1384, 7
    %v1386 = vsub.s32 %v1383, %v1385
    %v1387 = vrot.slane %v25, %v1386
    %v1389 = vunpack.c.l.s4 1983009808
    %v1390 = vunpack.c.0.s8 %v1389
    %v1391 = vlaneseq
    %v1392 = vshrl.u32 %v1391, 7
    %v1393 = vsub.s32 %v1390, %v1392
    %v1394 = vrot.slane %v1380, %v1393
    %v1395 = vcombine.high %v1387, %v1387
    %v1396 = vcombine.high %v1394, %v1394
    %v1397 = vcombine.high %v26, %v26
    %v1399 = vunpack.c.l.s4 1983009808
    %v1400 = vunpack.c.0.s8 %v1399
    %v1401 = vlaneseq
    %v1402 = vshrl.u32 %v1401, 7
    %v1403 = vsub.s32 %v1400, %v1402
    %v1404 = vrot.slane %v26, %v1403
    %v1406 = vunpack.c.l.s4 1983009808
    %v1407 = vunpack.c.0.s8 %v1406
    %v1408 = vlaneseq
    %v1409 = vshrl.u32 %v1408, 7
    %v1410 = vsub.s32 %v1407, %v1409
    %v1411 = vrot.slane %v1397, %v1410
    %v1412 = vcombine.high %v1404, %v1404
    %v1413 = vcombine.high %v1411, %v1411
    %v1414 = vcombine.high %v27, %v27
    %v1416 = vunpack.c.l.s4 1983009808
    %v1417 = vunpack.c.0.s8 %v1416
    %v1418 = vlaneseq
    %v1419 = vshrl.u32 %v1418, 7
    %v1420 = vsub.s32 %v1417, %v1419
    %v1421 = vrot.slane %v27, %v1420
    %v1423 = vunpack.c.l.s4 1983009808
    %v1424 = vunpack.c.0.s8 %v1423
    %v1425 = vlaneseq
    %v1426 = vshrl.u32 %v1425, 7
    %v1427 = vsub.s32 %v1424, %v1426
    %v1428 = vrot.slane %v1414, %v1427
    %v1429 = vcombine.high %v1421, %v1421
    %v1430 = vcombine.high %v1428, %v1428
    %v1431 = vcombine.high %v28, %v28
    %v1433 = vunpack.c.l.s4 1983009808
    %v1434 = vunpack.c.0.s8 %v1433
    %v1435 = vlaneseq
    %v1436 = vshrl.u32 %v1435, 7
    %v1437 = vsub.s32 %v1434, %v1436
    %v1438 = vrot.slane %v28, %v1437
    %v1440 = vunpack.c.l.s4 1983009808
    %v1441 = vunpack.c.0.s8 %v1440
    %v1442 = vlaneseq
    %v1443 = vshrl.u32 %v1442, 7
    %v1444 = vsub.s32 %v1441, %v1443
    %v1445 = vrot.slane %v1431, %v1444
    %v1446 = vcombine.high %v1438, %v1438
    %v1447 = vcombine.high %v1445, %v1445
    %v1448 = vcombine.high %v29, %v29
    %v1450 = vunpack.c.l.s4 1983009808
    %v1451 = vunpack.c.0.s8 %v1450
    %v1452 = vlaneseq
    %v1453 = vshrl.u32 %v1452, 7
    %v1454 = vsub.s32 %v1451, %v1453
    %v1455 = vrot.slane %v29, %v1454
    %v1457 = vunpack.c.l.s4 1983009808
    %v1458 = vunpack.c.0.s8 %v1457
    %v1459 = vlaneseq
    %v1460 = vshrl.u32 %v1459, 7
    %v1461 = vsub.s32 %v1458, %v1460
    %v1462 = vrot.slane %v1448, %v1461
    %v1463 = vcombine.high %v1455, %v1455
    %v1464 = vcombine.high %v1462, %v1462
    %v1465 = vcombine.high %v30, %v30
    %v1467 = vunpack.c.l.s4 1983009808
    %v1468 = vunpack.c.0.s8 %v1467
    %v1469 = vlaneseq
    %v1470 = vshrl.u32 %v1469, 7
    %v1471 = vsub.s32 %v1468, %v1470
    %v1472 = vrot.slane %v30, %v1471
    %v1474 = vunpack.c.l.s4 1983009808
    %v1475 = vunpack.c.0.s8 %v1474
    %v1476 = vlaneseq
    %v1477 = vshrl.u32 %v1476, 7
    %v1478 = vsub.s32 %v1475, %v1477
    %v1479 = vrot.slane %v1465, %v1478
    %v1480 = vcombine.high %v1472, %v1472
    %v1481 = vcombine.high %v1479, %v1479
    %v1482 = vcombine.high %v31, %v31
    %v1484 = vunpack.c.l.s4 1983009808
    %v1485 = vunpack.c.0.s8 %v1484
    %v1486 = vlaneseq
    %v1487 = vshrl.u32 %v1486, 7
    %v1488 = vsub.s32 %v1485, %v1487
    %v1489 = vrot.slane %v31, %v1488
    %v1491 = vunpack.c.l.s4 1983009808
    %v1492 = vunpack.c.0.s8 %v1491
    %v1493 = vlaneseq
    %v1494 = vshrl.u32 %v1493, 7
    %v1495 = vsub.s32 %v1492, %v1494
    %v1496 = vrot.slane %v1482, %v1495
    %v1497 = vcombine.high %v1489, %v1489
    %v1498 = vcombine.high %v1496, %v1496
    %v1499 = vcombine.high %v32, %v32
    %v1501 = vunpack.c.l.s4 1983009808
    %v1502 = vunpack.c.0.s8 %v1501
    %v1503 = vlaneseq
    %v1504 = vshrl.u32 %v1503, 7
    %v1505 = vsub.s32 %v1502, %v1504
    %v1506 = vrot.slane %v32, %v1505
    %v1508 = vunpack.c.l.s4 1983009808
    %v1509 = vunpack.c.0.s8 %v1508
    %v1510 = vlaneseq
    %v1511 = vshrl.u32 %v1510, 7
    %v1512 = vsub.s32 %v1509, %v1511
    %v1513 = vrot.slane %v1499, %v1512
    %v1514 = vcombine.high %v1506, %v1506
    %v1515 = vcombine.high %v1513, %v1513
    %1588 = vmatprep.subr.mxu0 0.0
    %1589 = vmatpush1.msra.mxu0 %v33
    %1590 = vmatprep.subr.mxu0 0.0
    %1591 = vmatpush1.msra.mxu0 %v34
    %1592 = vmatprep.subr.mxu0 0.0
    %1593 = vmatpush1.msra.mxu0 %v35
    %1594 = vmatprep.subr.mxu0 0.0
    %1595 = vmatpush1.msra.mxu0 %v36
    %1596 = vmatprep.subr.mxu0 0.0
    %1597 = vmatpush1.msra.mxu0 %v37
    %1598 = vmatprep.subr.mxu0 0.0
    %1599 = vmatpush1.msra.mxu0 %v38
    %1600 = vmatprep.subr.mxu0 0.0
    %1601 = vmatpush1.msra.mxu0 %v39
    %1602 = vmatprep.subr.mxu0 0.0
    %1603 = vmatpush1.msra.mxu0 %v40
    %1604 = vmatprep.subr.mxu0 0.0
    %1605 = vmatpush1.msra.mxu0 %v41
    %1606 = vmatprep.subr.mxu0 0.0
    %1607 = vmatpush1.msra.mxu0 %v42
    %1608 = vmatprep.subr.mxu0 0.0
    %1609 = vmatpush1.msra.mxu0 %v43
    %1610 = vmatprep.subr.mxu0 0.0
    %1611 = vmatpush1.msra.mxu0 %v44
    %1612 = vmatprep.subr.mxu0 0.0
    %1613 = vmatpush1.msra.mxu0 %v45
    %1614 = vmatprep.subr.mxu0 0.0
    %1615 = vmatpush1.msra.mxu0 %v46
    %1616 = vmatprep.subr.mxu0 0.0
    %1617 = vmatpush1.msra.mxu0 %v47
    %1618 = vmatprep.subr.mxu0 0.0
    %1619 = vmatpush1.msra.mxu0 %v48
    %1620 = vmatprep.subr.mxu0 0.0
    %1621 = vmatpush1.msra.mxu0 %v49
    %1622 = vmatprep.subr.mxu0 0.0
    %1623 = vmatpush1.msra.mxu0 %v50
    %1624 = vmatprep.subr.mxu0 0.0
    %1625 = vmatpush1.msra.mxu0 %v51
    %1626 = vmatprep.subr.mxu0 0.0
    %1627 = vmatpush1.msra.mxu0 %v52
    %1628 = vmatprep.subr.mxu0 0.0
    %1629 = vmatpush1.msra.mxu0 %v53
    %1630 = vmatprep.subr.mxu0 0.0
    %1631 = vmatpush1.msra.mxu0 %v54
    %1632 = vmatprep.subr.mxu0 0.0
    %1633 = vmatpush1.msra.mxu0 %v55
    %1634 = vmatprep.subr.mxu0 0.0
    %1635 = vmatpush1.msra.mxu0 %v56
    %1636 = vmatprep.subr.mxu0 0.0
    %1637 = vmatpush1.msra.mxu0 %v57
    %1638 = vmatprep.subr.mxu0 0.0
    %1639 = vmatpush1.msra.mxu0 %v58
    %1640 = vmatprep.subr.mxu0 0.0
    %1641 = vmatpush1.msra.mxu0 %v59
    %1642 = vmatprep.subr.mxu0 0.0
    %1643 = vmatpush1.msra.mxu0 %v60
    %1644 = vmatprep.subr.mxu0 0.0
    %1645 = vmatpush1.msra.mxu0 %v61
    %1646 = vmatprep.subr.mxu0 0.0
    %1647 = vmatpush1.msra.mxu0 %v62
    %1648 = vmatprep.subr.mxu0 0.0
    %1649 = vmatpush1.msra.mxu0 %v63
    %1650 = vmatprep.subr.mxu0 0.0
    %1651 = vmatpush1.msra.mxu0 %v64
    %1652 = vmatprep.mubr.f32.mxu0 %v1225
    %1653 = vmatmul.mubr.f32.gmra.mrb[0].mxu0 %v1217
    %v1654 = vpop.f32.mrb[0].mxu0
    %v1655 = vadd.f32 %v1190, %v1654
    %v1656 = vpop.f32.mrb[0].mxu0
    %1657 = vdwg.mxu0
    %1658 = vmatprep.subr.mxu0 0.0
    %1659 = vmatpush1.msra.mxu0 %v65
    %1660 = vmatprep.subr.mxu0 0.0
    %1661 = vmatpush1.msra.mxu0 %v66
    %1662 = vmatprep.subr.mxu0 0.0
    %1663 = vmatpush1.msra.mxu0 %v67
    %1664 = vmatprep.subr.mxu0 0.0
    %1665 = vmatpush1.msra.mxu0 %v68
    %1666 = vmatprep.subr.mxu0 0.0
    %1667 = vmatpush1.msra.mxu0 %v69
    %1668 = vmatprep.subr.mxu0 0.0
    %1669 = vmatpush1.msra.mxu0 %v70
    %1670 = vmatprep.subr.mxu0 0.0
    %1671 = vmatpush1.msra.mxu0 %v71
    %1672 = vmatprep.subr.mxu0 0.0
    %1673 = vmatpush1.msra.mxu0 %v72
    %1674 = vmatprep.subr.mxu0 0.0
    %1675 = vmatpush1.msra.mxu0 %v73
    %1676 = vmatprep.subr.mxu0 0.0
    %1677 = vmatpush1.msra.mxu0 %v74
    %1678 = vmatprep.subr.mxu0 0.0
    %1679 = vmatpush1.msra.mxu0 %v75
    %1680 = vmatprep.subr.mxu0 0.0
    %1681 = vmatpush1.msra.mxu0 %v76
    %1682 = vmatprep.subr.mxu0 0.0
    %1683 = vmatpush1.msra.mxu0 %v77
    %1684 = vmatprep.subr.mxu0 0.0
    %1685 = vmatpush1.msra.mxu0 %v78
    %1686 = vmatprep.subr.mxu0 0.0
    %1687 = vmatpush1.msra.mxu0 %v79
    %1688 = vmatprep.subr.mxu0 0.0
    %1689 = vmatpush1.msra.mxu0 %v80
    %1690 = vmatprep.subr.mxu0 0.0
    %1691 = vmatpush1.msra.mxu0 %v81
    %1692 = vmatprep.subr.mxu0 0.0
    %1693 = vmatpush1.msra.mxu0 %v82
    %1694 = vmatprep.subr.mxu0 0.0
    %1695 = vmatpush1.msra.mxu0 %v83
    %1696 = vmatprep.subr.mxu0 0.0
    %1697 = vmatpush1.msra.mxu0 %v84
    %1698 = vmatprep.subr.mxu0 0.0
    %1699 = vmatpush1.msra.mxu0 %v85
    %1700 = vmatprep.subr.mxu0 0.0
    %1701 = vmatpush1.msra.mxu0 %v86
    %1702 = vmatprep.subr.mxu0 0.0
    %1703 = vmatpush1.msra.mxu0 %v87
    %1704 = vmatprep.subr.mxu0 0.0
    %1705 = vmatpush1.msra.mxu0 %v88
    %1706 = vmatprep.subr.mxu0 0.0
    %1707 = vmatpush1.msra.mxu0 %v89
    %1708 = vmatprep.subr.mxu0 0.0
    %1709 = vmatpush1.msra.mxu0 %v90
    %1710 = vmatprep.subr.mxu0 0.0
    %1711 = vmatpush1.msra.mxu0 %v91
    %1712 = vmatprep.subr.mxu0 0.0
    %1713 = vmatpush1.msra.mxu0 %v92
    %1714 = vmatprep.subr.mxu0 0.0
    %1715 = vmatpush1.msra.mxu0 %v93
    %1716 = vmatprep.subr.mxu0 0.0
    %1717 = vmatpush1.msra.mxu0 %v94
    %1718 = vmatprep.subr.mxu0 0.0
    %1719 = vmatpush1.msra.mxu0 %v95
    %1720 = vmatprep.subr.mxu0 0.0
    %1721 = vmatpush1.msra.mxu0 %v96
    %1722 = vmatprep.mubr.f32.mxu0 %v1226
    %1723 = vmatmul.mubr.f32.gmra.mrb[0].mxu0 %v1224
    %v1724 = vpop.f32.mrb[0].mxu0
    %v1725 = vadd.f32 %v1655, %v1724
    %v1726 = vpop.f32.mrb[0].mxu0
    %1727 = vdwg.mxu0
    %1728 = vmatprep.subr.mxu0 0.0
    %1729 = vmatpush1.msra.mxu0 %v97
    %1730 = vmatprep.subr.mxu0 0.0
    %1731 = vmatpush1.msra.mxu0 %v98
    %1732 = vmatprep.subr.mxu0 0.0
    %1733 = vmatpush1.msra.mxu0 %v99
    %1734 = vmatprep.subr.mxu0 0.0
    %1735 = vmatpush1.msra.mxu0 %v100
    %1736 = vmatprep.subr.mxu0 0.0
    %1737 = vmatpush1.msra.mxu0 %v101
    %1738 = vmatprep.subr.mxu0 0.0
    %1739 = vmatpush1.msra.mxu0 %v102
    %1740 = vmatprep.subr.mxu0 0.0
    %1741 = vmatpush1.msra.mxu0 %v103
    %1742 = vmatprep.subr.mxu0 0.0
    %1743 = vmatpush1.msra.mxu0 %v104
    %1744 = vmatprep.subr.mxu0 0.0
    %1745 = vmatpush1.msra.mxu0 %v105
    %1746 = vmatprep.subr.mxu0 0.0
    %1747 = vmatpush1.msra.mxu0 %v106
    %1748 = vmatprep.subr.mxu0 0.0
    %1749 = vmatpush1.msra.mxu0 %v107
    %1750 = vmatprep.subr.mxu0 0.0
    %1751 = vmatpush1.msra.mxu0 %v108
    %1752 = vmatprep.subr.mxu0 0.0
    %1753 = vmatpush1.msra.mxu0 %v109
    %1754 = vmatprep.subr.mxu0 0.0
    %1755 = vmatpush1.msra.mxu0 %v110
    %1756 = vmatprep.subr.mxu0 0.0
    %1757 = vmatpush1.msra.mxu0 %v111
    %1758 = vmatprep.subr.mxu0 0.0
    %1759 = vmatpush1.msra.mxu0 %v112
    %1760 = vmatprep.subr.mxu0 0.0
    %1761 = vmatpush1.msra.mxu0 %v113
    %1762 = vmatprep.subr.mxu0 0.0
    %1763 = vmatpush1.msra.mxu0 %v114
    %1764 = vmatprep.subr.mxu0 0.0
    %1765 = vmatpush1.msra.mxu0 %v115
    %1766 = vmatprep.subr.mxu0 0.0
    %1767 = vmatpush1.msra.mxu0 %v116
    %1768 = vmatprep.subr.mxu0 0.0
    %1769 = vmatpush1.msra.mxu0 %v117
    %1770 = vmatprep.subr.mxu0 0.0
    %1771 = vmatpush1.msra.mxu0 %v118
    %1772 = vmatprep.subr.mxu0 0.0
    %1773 = vmatpush1.msra.mxu0 %v119
    %1774 = vmatprep.subr.mxu0 0.0
    %1775 = vmatpush1.msra.mxu0 %v120
    %1776 = vmatprep.subr.mxu0 0.0
    %1777 = vmatpush1.msra.mxu0 %v121
    %1778 = vmatprep.subr.mxu0 0.0
    %1779 = vmatpush1.msra.mxu0 %v122
    %1780 = vmatprep.subr.mxu0 0.0
    %1781 = vmatpush1.msra.mxu0 %v123
    %1782 = vmatprep.subr.mxu0 0.0
    %1783 = vmatpush1.msra.mxu0 %v124
    %1784 = vmatprep.subr.mxu0 0.0
    %1785 = vmatpush1.msra.mxu0 %v125
    %1786 = vmatprep.subr.mxu0 0.0
    %1787 = vmatpush1.msra.mxu0 %v126
    %1788 = vmatprep.subr.mxu0 0.0
    %1789 = vmatpush1.msra.mxu0 %v127
    %1790 = vmatprep.subr.mxu0 0.0
    %1791 = vmatpush1.msra.mxu0 %v128
    %1792 = vmatprep.mubr.f32.mxu0 %v1242
    %1793 = vmatmul.mubr.f32.gmra.mrb[0].mxu0 %v1234
    %v1794 = vpop.f32.mrb[0].mxu0
    %v1795 = vadd.f32 %v1725, %v1794
    %v1796 = vpop.f32.mrb[0].mxu0
    %1797 = vdwg.mxu0
    %1798 = vmatprep.subr.mxu0 0.0
    %1799 = vmatpush1.msra.mxu0 %v129
    %1800 = vmatprep.subr.mxu0 0.0
    %1801 = vmatpush1.msra.mxu0 %v130
    %1802 = vmatprep.subr.mxu0 0.0
    %1803 = vmatpush1.msra.mxu0 %v131
    %1804 = vmatprep.subr.mxu0 0.0
    %1805 = vmatpush1.msra.mxu0 %v132
    %1806 = vmatprep.subr.mxu0 0.0
    %1807 = vmatpush1.msra.mxu0 %v133
    %1808 = vmatprep.subr.mxu0 0.0
    %1809 = vmatpush1.msra.mxu0 %v134
    %1810 = vmatprep.subr.mxu0 0.0
    %1811 = vmatpush1.msra.mxu0 %v135
    %1812 = vmatprep.subr.mxu0 0.0
    %1813 = vmatpush1.msra.mxu0 %v136
    %1814 = vmatprep.subr.mxu0 0.0
    %1815 = vmatpush1.msra.mxu0 %v137
    %1816 = vmatprep.subr.mxu0 0.0
    %1817 = vmatpush1.msra.mxu0 %v138
    %1818 = vmatprep.subr.mxu0 0.0
    %1819 = vmatpush1.msra.mxu0 %v139
    %1820 = vmatprep.subr.mxu0 0.0
    %1821 = vmatpush1.msra.mxu0 %v140
    %1822 = vmatprep.subr.mxu0 0.0
    %1823 = vmatpush1.msra.mxu0 %v141
    %1824 = vmatprep.subr.mxu0 0.0
    %1825 = vmatpush1.msra.mxu0 %v142
    %1826 = vmatprep.subr.mxu0 0.0
    %1827 = vmatpush1.msra.mxu0 %v143
    %1828 = vmatprep.subr.mxu0 0.0
    %1829 = vmatpush1.msra.mxu0 %v144
    %1830 = vmatprep.subr.mxu0 0.0
    %1831 = vmatpush1.msra.mxu0 %v145
    %1832 = vmatprep.subr.mxu0 0.0
    %1833 = vmatpush1.msra.mxu0 %v146
    %1834 = vmatprep.subr.mxu0 0.0
    %1835 = vmatpush1.msra.mxu0 %v147
    %1836 = vmatprep.subr.mxu0 0.0
    %1837 = vmatpush1.msra.mxu0 %v148
    %1838 = vmatprep.subr.mxu0 0.0
    %1839 = vmatpush1.msra.mxu0 %v149
    %1840 = vmatprep.subr.mxu0 0.0
    %1841 = vmatpush1.msra.mxu0 %v150
    %1842 = vmatprep.subr.mxu0 0.0
    %1843 = vmatpush1.msra.mxu0 %v151
    %1844 = vmatprep.subr.mxu0 0.0
    %1845 = vmatpush1.msra.mxu0 %v152
    %1846 = vmatprep.subr.mxu0 0.0
    %1847 = vmatpush1.msra.mxu0 %v153
    %1848 = vmatprep.subr.mxu0 0.0
    %1849 = vmatpush1.msra.mxu0 %v154
    %1850 = vmatprep.subr.mxu0 0.0
    %1851 = vmatpush1.msra.mxu0 %v155
    %1852 = vmatprep.subr.mxu0 0.0
    %1853 = vmatpush1.msra.mxu0 %v156
    %1854 = vmatprep.subr.mxu0 0.0
    %1855 = vmatpush1.msra.mxu0 %v157
    %1856 = vmatprep.subr.mxu0 0.0
    %1857 = vmatpush1.msra.mxu0 %v158
    %1858 = vmatprep.subr.mxu0 0.0
    %1859 = vmatpush1.msra.mxu0 %v159
    %1860 = vmatprep.subr.mxu0 0.0
    %1861 = vmatpush1.msra.mxu0 %v160
    %1862 = vmatprep.mubr.f32.mxu0 %v1243
    %1863 = vmatmul.mubr.f32.gmra.mrb[0].mxu0 %v1241
    %v1864 = vpop.f32.mrb[0].mxu0
    %v1865 = vadd.f32 %v1795, %v1864
    %v1866 = vpop.f32.mrb[0].mxu0
    %1867 = vdwg.mxu0
    %1868 = vmatprep.subr.mxu0 0.0
    %1869 = vmatpush1.msra.mxu0 %v161
    %1870 = vmatprep.subr.mxu0 0.0
    %1871 = vmatpush1.msra.mxu0 %v162
    %1872 = vmatprep.subr.mxu0 0.0
    %1873 = vmatpush1.msra.mxu0 %v163
    %1874 = vmatprep.subr.mxu0 0.0
    %1875 = vmatpush1.msra.mxu0 %v164
    %1876 = vmatprep.subr.mxu0 0.0
    %1877 = vmatpush1.msra.mxu0 %v165
    %1878 = vmatprep.subr.mxu0 0.0
    %1879 = vmatpush1.msra.mxu0 %v166
    %1880 = vmatprep.subr.mxu0 0.0
    %1881 = vmatpush1.msra.mxu0 %v167
    %1882 = vmatprep.subr.mxu0 0.0
    %1883 = vmatpush1.msra.mxu0 %v168
    %1884 = vmatprep.subr.mxu0 0.0
    %1885 = vmatpush1.msra.mxu0 %v169
    %1886 = vmatprep.subr.mxu0 0.0
    %1887 = vmatpush1.msra.mxu0 %v170
    %1888 = vmatprep.subr.mxu0 0.0
    %1889 = vmatpush1.msra.mxu0 %v171
    %1890 = vmatprep.subr.mxu0 0.0
    %1891 = vmatpush1.msra.mxu0 %v172
    %1892 = vmatprep.subr.mxu0 0.0
    %1893 = vmatpush1.msra.mxu0 %v173
    %1894 = vmatprep.subr.mxu0 0.0
    %1895 = vmatpush1.msra.mxu0 %v174
    %1896 = vmatprep.subr.mxu0 0.0
    %1897 = vmatpush1.msra.mxu0 %v175
    %1898 = vmatprep.subr.mxu0 0.0
    %1899 = vmatpush1.msra.mxu0 %v176
    %1900 = vmatprep.subr.mxu0 0.0
    %1901 = vmatpush1.msra.mxu0 %v177
    %1902 = vmatprep.subr.mxu0 0.0
    %1903 = vmatpush1.msra.mxu0 %v178
    %1904 = vmatprep.subr.mxu0 0.0
    %1905 = vmatpush1.msra.mxu0 %v179
    %1906 = vmatprep.subr.mxu0 0.0
    %1907 = vmatpush1.msra.mxu0 %v180
    %1908 = vmatprep.subr.mxu0 0.0
    %1909 = vmatpush1.msra.mxu0 %v181
    %1910 = vmatprep.subr.mxu0 0.0
    %1911 = vmatpush1.msra.mxu0 %v182
    %1912 = vmatprep.subr.mxu0 0.0
    %1913 = vmatpush1.msra.mxu0 %v183
    %1914 = vmatprep.subr.mxu0 0.0
    %1915 = vmatpush1.msra.mxu0 %v184
    %1916 = vmatprep.subr.mxu0 0.0
    %1917 = vmatpush1.msra.mxu0 %v185
    %1918 = vmatprep.subr.mxu0 0.0
    %1919 = vmatpush1.msra.mxu0 %v186
    %1920 = vmatprep.subr.mxu0 0.0
    %1921 = vmatpush1.msra.mxu0 %v187
    %1922 = vmatprep.subr.mxu0 0.0
    %1923 = vmatpush1.msra.mxu0 %v188
    %1924 = vmatprep.subr.mxu0 0.0
    %1925 = vmatpush1.msra.mxu0 %v189
    %1926 = vmatprep.subr.mxu0 0.0
    %1927 = vmatpush1.msra.mxu0 %v190
    %1928 = vmatprep.subr.mxu0 0.0
    %1929 = vmatpush1.msra.mxu0 %v191
    %1930 = vmatprep.subr.mxu0 0.0
    %1931 = vmatpush1.msra.mxu0 %v192
    %1932 = vmatprep.mubr.f32.mxu0 %v1259
    %1933 = vmatmul.mubr.f32.gmra.mrb[0].mxu0 %v1251
    %v1934 = vpop.f32.mrb[0].mxu0
    %v1935 = vadd.f32 %v1865, %v1934
    %v1936 = vpop.f32.mrb[0].mxu0
    %1937 = vdwg.mxu0
    %1938 = vmatprep.subr.mxu0 0.0
    %1939 = vmatpush1.msra.mxu0 %v193
    %1940 = vmatprep.subr.mxu0 0.0
    %1941 = vmatpush1.msra.mxu0 %v194
    %1942 = vmatprep.subr.mxu0 0.0
    %1943 = vmatpush1.msra.mxu0 %v195
    %1944 = vmatprep.subr.mxu0 0.0
    %1945 = vmatpush1.msra.mxu0 %v196
    %1946 = vmatprep.subr.mxu0 0.0
    %1947 = vmatpush1.msra.mxu0 %v197
    %1948 = vmatprep.subr.mxu0 0.0
    %1949 = vmatpush1.msra.mxu0 %v198
    %1950 = vmatprep.subr.mxu0 0.0
    %1951 = vmatpush1.msra.mxu0 %v199
    %1952 = vmatprep.subr.mxu0 0.0
    %1953 = vmatpush1.msra.mxu0 %v200
    %1954 = vmatprep.subr.mxu0 0.0
    %1955 = vmatpush1.msra.mxu0 %v201
    %1956 = vmatprep.subr.mxu0 0.0
    %1957 = vmatpush1.msra.mxu0 %v202
    %1958 = vmatprep.subr.mxu0 0.0
    %1959 = vmatpush1.msra.mxu0 %v203
    %1960 = vmatprep.subr.mxu0 0.0
    %1961 = vmatpush1.msra.mxu0 %v204
    %1962 = vmatprep.subr.mxu0 0.0
    %1963 = vmatpush1.msra.mxu0 %v205
    %1964 = vmatprep.subr.mxu0 0.0
    %1965 = vmatpush1.msra.mxu0 %v206
    %1966 = vmatprep.subr.mxu0 0.0
    %1967 = vmatpush1.msra.mxu0 %v207
    %1968 = vmatprep.subr.mxu0 0.0
    %1969 = vmatpush1.msra.mxu0 %v208
    %1970 = vmatprep.subr.mxu0 0.0
    %1971 = vmatpush1.msra.mxu0 %v209
    %1972 = vmatprep.subr.mxu0 0.0
    %1973 = vmatpush1.msra.mxu0 %v210
    %1974 = vmatprep.subr.mxu0 0.0
    %1975 = vmatpush1.msra.mxu0 %v211
    %1976 = vmatprep.subr.mxu0 0.0
    %1977 = vmatpush1.msra.mxu0 %v212
    %1978 = vmatprep.subr.mxu0 0.0
    %1979 = vmatpush1.msra.mxu0 %v213
    %1980 = vmatprep.subr.mxu0 0.0
    %1981 = vmatpush1.msra.mxu0 %v214
    %1982 = vmatprep.subr.mxu0 0.0
    %1983 = vmatpush1.msra.mxu0 %v215
    %1984 = vmatprep.subr.mxu0 0.0
    %1985 = vmatpush1.msra.mxu0 %v216
    %1986 = vmatprep.subr.mxu0 0.0
    %1987 = vmatpush1.msra.mxu0 %v217
    %1988 = vmatprep.subr.mxu0 0.0
    %1989 = vmatpush1.msra.mxu0 %v218
    %1990 = vmatprep.subr.mxu0 0.0
    %1991 = vmatpush1.msra.mxu0 %v219
    %1992 = vmatprep.subr.mxu0 0.0
    %1993 = vmatpush1.msra.mxu0 %v220
    %1994 = vmatprep.subr.mxu0 0.0
    %1995 = vmatpush1.msra.mxu0 %v221
    %1996 = vmatprep.subr.mxu0 0.0
    %1997 = vmatpush1.msra.mxu0 %v222
    %1998 = vmatprep.subr.mxu0 0.0
    %1999 = vmatpush1.msra.mxu0 %v223
    %2000 = vmatprep.subr.mxu0 0.0
    %2001 = vmatpush1.msra.mxu0 %v224
    %2002 = vmatprep.mubr.f32.mxu0 %v1260
    %2003 = vmatmul.mubr.f32.gmra.mrb[0].mxu0 %v1258
    %v2004 = vpop.f32.mrb[0].mxu0
    %v2005 = vadd.f32 %v1935, %v2004
    %v2006 = vpop.f32.mrb[0].mxu0
    %2007 = vdwg.mxu0
    %2008 = vmatprep.subr.mxu0 0.0
    %2009 = vmatpush1.msra.mxu0 %v225
    %2010 = vmatprep.subr.mxu0 0.0
    %2011 = vmatpush1.msra.mxu0 %v226
    %2012 = vmatprep.subr.mxu0 0.0
    %2013 = vmatpush1.msra.mxu0 %v227
    %2014 = vmatprep.subr.mxu0 0.0
    %2015 = vmatpush1.msra.mxu0 %v228
    %2016 = vmatprep.subr.mxu0 0.0
    %2017 = vmatpush1.msra.mxu0 %v229
    %2018 = vmatprep.subr.mxu0 0.0
    %2019 = vmatpush1.msra.mxu0 %v230
    %2020 = vmatprep.subr.mxu0 0.0
    %2021 = vmatpush1.msra.mxu0 %v231
    %2022 = vmatprep.subr.mxu0 0.0
    %2023 = vmatpush1.msra.mxu0 %v232
    %2024 = vmatprep.subr.mxu0 0.0
    %2025 = vmatpush1.msra.mxu0 %v233
    %2026 = vmatprep.subr.mxu0 0.0
    %2027 = vmatpush1.msra.mxu0 %v234
    %2028 = vmatprep.subr.mxu0 0.0
    %2029 = vmatpush1.msra.mxu0 %v235
    %2030 = vmatprep.subr.mxu0 0.0
    %2031 = vmatpush1.msra.mxu0 %v236
    %2032 = vmatprep.subr.mxu0 0.0
    %2033 = vmatpush1.msra.mxu0 %v237
    %2034 = vmatprep.subr.mxu0 0.0
    %2035 = vmatpush1.msra.mxu0 %v238
    %2036 = vmatprep.subr.mxu0 0.0
    %2037 = vmatpush1.msra.mxu0 %v239
    %2038 = vmatprep.subr.mxu0 0.0
    %2039 = vmatpush1.msra.mxu0 %v240
    %2040 = vmatprep.subr.mxu0 0.0
    %2041 = vmatpush1.msra.mxu0 %v241
    %2042 = vmatprep.subr.mxu0 0.0
    %2043 = vmatpush1.msra.mxu0 %v242
    %2044 = vmatprep.subr.mxu0 0.0
    %2045 = vmatpush1.msra.mxu0 %v243
    %2046 = vmatprep.subr.mxu0 0.0
    %2047 = vmatpush1.msra.mxu0 %v244
    %2048 = vmatprep.subr.mxu0 0.0
    %2049 = vmatpush1.msra.mxu0 %v245
    %2050 = vmatprep.subr.mxu0 0.0
    %2051 = vmatpush1.msra.mxu0 %v246
    %2052 = vmatprep.subr.mxu0 0.0
    %2053 = vmatpush1.msra.mxu0 %v247
    %2054 = vmatprep.subr.mxu0 0.0
    %2055 = vmatpush1.msra.mxu0 %v248
    %2056 = vmatprep.subr.mxu0 0.0
    %2057 = vmatpush1.msra.mxu0 %v249
    %2058 = vmatprep.subr.mxu0 0.0
    %2059 = vmatpush1.msra.mxu0 %v250
    %2060 = vmatprep.subr.mxu0 0.0
    %2061 = vmatpush1.msra.mxu0 %v251
    %2062 = vmatprep.subr.mxu0 0.0
    %2063 = vmatpush1.msra.mxu0 %v252
    %2064 = vmatprep.subr.mxu0 0.0
    %2065 = vmatpush1.msra.mxu0 %v253
    %2066 = vmatprep.subr.mxu0 0.0
    %2067 = vmatpush1.msra.mxu0 %v254
    %2068 = vmatprep.subr.mxu0 0.0
    %2069 = vmatpush1.msra.mxu0 %v255
    %2070 = vmatprep.subr.mxu0 0.0
    %2071 = vmatpush1.msra.mxu0 %v256
    %2072 = vmatprep.mubr.f32.mxu0 %v1276
    %2073 = vmatmul.mubr.f32.gmra.mrb[0].mxu0 %v1268
    %v2074 = vpop.f32.mrb[0].mxu0
    %v2075 = vadd.f32 %v2005, %v2074
    %v2076 = vpop.f32.mrb[0].mxu0
    %2077 = vdwg.mxu0
    %2078 = vmatprep.subr.mxu0 0.0
    %2079 = vmatpush1.msra.mxu0 %v257
    %2080 = vmatprep.subr.mxu0 0.0
    %2081 = vmatpush1.msra.mxu0 %v258
    %2082 = vmatprep.subr.mxu0 0.0
    %2083 = vmatpush1.msra.mxu0 %v259
    %2084 = vmatprep.subr.mxu0 0.0
    %2085 = vmatpush1.msra.mxu0 %v260
    %2086 = vmatprep.subr.mxu0 0.0
    %2087 = vmatpush1.msra.mxu0 %v261
    %2088 = vmatprep.subr.mxu0 0.0
    %2089 = vmatpush1.msra.mxu0 %v262
    %2090 = vmatprep.subr.mxu0 0.0
    %2091 = vmatpush1.msra.mxu0 %v263
    %2092 = vmatprep.subr.mxu0 0.0
    %2093 = vmatpush1.msra.mxu0 %v264
    %2094 = vmatprep.subr.mxu0 0.0
    %2095 = vmatpush1.msra.mxu0 %v265
    %2096 = vmatprep.subr.mxu0 0.0
    %2097 = vmatpush1.msra.mxu0 %v266
    %2098 = vmatprep.subr.mxu0 0.0
    %2099 = vmatpush1.msra.mxu0 %v267
    %2100 = vmatprep.subr.mxu0 0.0
    %2101 = vmatpush1.msra.mxu0 %v268
    %2102 = vmatprep.subr.mxu0 0.0
    %2103 = vmatpush1.msra.mxu0 %v269
    %2104 = vmatprep.subr.mxu0 0.0
    %2105 = vmatpush1.msra.mxu0 %v270
    %2106 = vmatprep.subr.mxu0 0.0
    %2107 = vmatpush1.msra.mxu0 %v271
    %2108 = vmatprep.subr.mxu0 0.0
    %2109 = vmatpush1.msra.mxu0 %v272
    %2110 = vmatprep.subr.mxu0 0.0
    %2111 = vmatpush1.msra.mxu0 %v273
    %2112 = vmatprep.subr.mxu0 0.0
    %2113 = vmatpush1.msra.mxu0 %v274
    %2114 = vmatprep.subr.mxu0 0.0
    %2115 = vmatpush1.msra.mxu0 %v275
    %2116 = vmatprep.subr.mxu0 0.0
    %2117 = vmatpush1.msra.mxu0 %v276
    %2118 = vmatprep.subr.mxu0 0.0
    %2119 = vmatpush1.msra.mxu0 %v277
    %2120 = vmatprep.subr.mxu0 0.0
    %2121 = vmatpush1.msra.mxu0 %v278
    %2122 = vmatprep.subr.mxu0 0.0
    %2123 = vmatpush1.msra.mxu0 %v279
    %2124 = vmatprep.subr.mxu0 0.0
    %2125 = vmatpush1.msra.mxu0 %v280
    %2126 = vmatprep.subr.mxu0 0.0
    %2127 = vmatpush1.msra.mxu0 %v281
    %2128 = vmatprep.subr.mxu0 0.0
    %2129 = vmatpush1.msra.mxu0 %v282
    %2130 = vmatprep.subr.mxu0 0.0
    %2131 = vmatpush1.msra.mxu0 %v283
    %2132 = vmatprep.subr.mxu0 0.0
    %2133 = vmatpush1.msra.mxu0 %v284
    %2134 = vmatprep.subr.mxu0 0.0
    %2135 = vmatpush1.msra.mxu0 %v285
    %2136 = vmatprep.subr.mxu0 0.0
    %2137 = vmatpush1.msra.mxu0 %v286
    %2138 = vmatprep.subr.mxu0 0.0
    %2139 = vmatpush1.msra.mxu0 %v287
    %2140 = vmatprep.subr.mxu0 0.0
    %2141 = vmatpush1.msra.mxu0 %v288
    %2142 = vmatprep.mubr.f32.mxu0 %v1277
    %2143 = vmatmul.mubr.f32.gmra.mrb[0].mxu0 %v1275
    %v2144 = vpop.f32.mrb[0].mxu0
    %v2145 = vadd.f32 %v2075, %v2144
    %v2146 = vpop.f32.mrb[0].mxu0
    %2147 = vdwg.mxu0
    %2148 = vmatprep.subr.mxu0 0.0
    %2149 = vmatpush1.msra.mxu0 %v289
    %2150 = vmatprep.subr.mxu0 0.0
    %2151 = vmatpush1.msra.mxu0 %v290
    %2152 = vmatprep.subr.mxu0 0.0
    %2153 = vmatpush1.msra.mxu0 %v291
    %2154 = vmatprep.subr.mxu0 0.0
    %2155 = vmatpush1.msra.mxu0 %v292
    %2156 = vmatprep.subr.mxu0 0.0
    %2157 = vmatpush1.msra.mxu0 %v293
    %2158 = vmatprep.subr.mxu0 0.0
    %2159 = vmatpush1.msra.mxu0 %v294
    %2160 = vmatprep.subr.mxu0 0.0
    %2161 = vmatpush1.msra.mxu0 %v295
    %2162 = vmatprep.subr.mxu0 0.0
    %2163 = vmatpush1.msra.mxu0 %v296
    %2164 = vmatprep.subr.mxu0 0.0
    %2165 = vmatpush1.msra.mxu0 %v297
    %2166 = vmatprep.subr.mxu0 0.0
    %2167 = vmatpush1.msra.mxu0 %v298
    %2168 = vmatprep.subr.mxu0 0.0
    %2169 = vmatpush1.msra.mxu0 %v299
    %2170 = vmatprep.subr.mxu0 0.0
    %2171 = vmatpush1.msra.mxu0 %v300
    %2172 = vmatprep.subr.mxu0 0.0
    %2173 = vmatpush1.msra.mxu0 %v301
    %2174 = vmatprep.subr.mxu0 0.0
    %2175 = vmatpush1.msra.mxu0 %v302
    %2176 = vmatprep.subr.mxu0 0.0
    %2177 = vmatpush1.msra.mxu0 %v303
    %2178 = vmatprep.subr.mxu0 0.0
    %2179 = vmatpush1.msra.mxu0 %v304
    %2180 = vmatprep.subr.mxu0 0.0
    %2181 = vmatpush1.msra.mxu0 %v305
    %2182 = vmatprep.subr.mxu0 0.0
    %2183 = vmatpush1.msra.mxu0 %v306
    %2184 = vmatprep.subr.mxu0 0.0
    %2185 = vmatpush1.msra.mxu0 %v307
    %2186 = vmatprep.subr.mxu0 0.0
    %2187 = vmatpush1.msra.mxu0 %v308
    %2188 = vmatprep.subr.mxu0 0.0
    %2189 = vmatpush1.msra.mxu0 %v309
    %2190 = vmatprep.subr.mxu0 0.0
    %2191 = vmatpush1.msra.mxu0 %v310
    %2192 = vmatprep.subr.mxu0 0.0
    %2193 = vmatpush1.msra.mxu0 %v311
    %2194 = vmatprep.subr.mxu0 0.0
    %2195 = vmatpush1.msra.mxu0 %v312
    %2196 = vmatprep.subr.mxu0 0.0
    %2197 = vmatpush1.msra.mxu0 %v313
    %2198 = vmatprep.subr.mxu0 0.0
    %2199 = vmatpush1.msra.mxu0 %v314
    %2200 = vmatprep.subr.mxu0 0.0
    %2201 = vmatpush1.msra.mxu0 %v315
    %2202 = vmatprep.subr.mxu0 0.0
    %2203 = vmatpush1.msra.mxu0 %v316
    %2204 = vmatprep.subr.mxu0 0.0
    %2205 = vmatpush1.msra.mxu0 %v317
    %2206 = vmatprep.subr.mxu0 0.0
    %2207 = vmatpush1.msra.mxu0 %v318
    %2208 = vmatprep.subr.mxu0 0.0
    %2209 = vmatpush1.msra.mxu0 %v319
    %2210 = vmatprep.subr.mxu0 0.0
    %2211 = vmatpush1.msra.mxu0 %v320
    %2212 = vmatprep.mubr.f32.mxu0 %v1293
    %2213 = vmatmul.mubr.f32.gmra.mrb[0].mxu0 %v1285
    %v2214 = vpop.f32.mrb[0].mxu0
    %v2215 = vadd.f32 %v2145, %v2214
    %v2216 = vpop.f32.mrb[0].mxu0
    %2217 = vdwg.mxu0
    %2218 = vmatprep.subr.mxu0 0.0
    %2219 = vmatpush1.msra.mxu0 %v321
    %2220 = vmatprep.subr.mxu0 0.0
    %2221 = vmatpush1.msra.mxu0 %v322
    %2222 = vmatprep.subr.mxu0 0.0
    %2223 = vmatpush1.msra.mxu0 %v323
    %2224 = vmatprep.subr.mxu0 0.0
    %2225 = vmatpush1.msra.mxu0 %v324
    %2226 = vmatprep.subr.mxu0 0.0
    %2227 = vmatpush1.msra.mxu0 %v325
    %2228 = vmatprep.subr.mxu0 0.0
    %2229 = vmatpush1.msra.mxu0 %v326
    %2230 = vmatprep.subr.mxu0 0.0
    %2231 = vmatpush1.msra.mxu0 %v327
    %2232 = vmatprep.subr.mxu0 0.0
    %2233 = vmatpush1.msra.mxu0 %v328
    %2234 = vmatprep.subr.mxu0 0.0
    %2235 = vmatpush1.msra.mxu0 %v329
    %2236 = vmatprep.subr.mxu0 0.0
    %2237 = vmatpush1.msra.mxu0 %v330
    %2238 = vmatprep.subr.mxu0 0.0
    %2239 = vmatpush1.msra.mxu0 %v331
    %2240 = vmatprep.subr.mxu0 0.0
    %2241 = vmatpush1.msra.mxu0 %v332
    %2242 = vmatprep.subr.mxu0 0.0
    %2243 = vmatpush1.msra.mxu0 %v333
    %2244 = vmatprep.subr.mxu0 0.0
    %2245 = vmatpush1.msra.mxu0 %v334
    %2246 = vmatprep.subr.mxu0 0.0
    %2247 = vmatpush1.msra.mxu0 %v335
    %2248 = vmatprep.subr.mxu0 0.0
    %2249 = vmatpush1.msra.mxu0 %v336
    %2250 = vmatprep.subr.mxu0 0.0
    %2251 = vmatpush1.msra.mxu0 %v337
    %2252 = vmatprep.subr.mxu0 0.0
    %2253 = vmatpush1.msra.mxu0 %v338
    %2254 = vmatprep.subr.mxu0 0.0
    %2255 = vmatpush1.msra.mxu0 %v339
    %2256 = vmatprep.subr.mxu0 0.0
    %2257 = vmatpush1.msra.mxu0 %v340
    %2258 = vmatprep.subr.mxu0 0.0
    %2259 = vmatpush1.msra.mxu0 %v341
    %2260 = vmatprep.subr.mxu0 0.0
    %2261 = vmatpush1.msra.mxu0 %v342
    %2262 = vmatprep.subr.mxu0 0.0
    %2263 = vmatpush1.msra.mxu0 %v343
    %2264 = vmatprep.subr.mxu0 0.0
    %2265 = vmatpush1.msra.mxu0 %v344
    %2266 = vmatprep.subr.mxu0 0.0
    %2267 = vmatpush1.msra.mxu0 %v345
    %2268 = vmatprep.subr.mxu0 0.0
    %2269 = vmatpush1.msra.mxu0 %v346
    %2270 = vmatprep.subr.mxu0 0.0
    %2271 = vmatpush1.msra.mxu0 %v347
    %2272 = vmatprep.subr.mxu0 0.0
    %2273 = vmatpush1.msra.mxu0 %v348
    %2274 = vmatprep.subr.mxu0 0.0
    %2275 = vmatpush1.msra.mxu0 %v349
    %2276 = vmatprep.subr.mxu0 0.0
    %2277 = vmatpush1.msra.mxu0 %v350
    %2278 = vmatprep.subr.mxu0 0.0
    %2279 = vmatpush1.msra.mxu0 %v351
    %2280 = vmatprep.subr.mxu0 0.0
    %2281 = vmatpush1.msra.mxu0 %v352
    %2282 = vmatprep.mubr.f32.mxu0 %v1294
    %2283 = vmatmul.mubr.f32.gmra.mrb[0].mxu0 %v1292
    %v2284 = vpop.f32.mrb[0].mxu0
    %v2285 = vadd.f32 %v2215, %v2284
    %v2286 = vpop.f32.mrb[0].mxu0
    %2287 = vdwg.mxu0
    %2288 = vmatprep.subr.mxu0 0.0
    %2289 = vmatpush1.msra.mxu0 %v353
    %2290 = vmatprep.subr.mxu0 0.0
    %2291 = vmatpush1.msra.mxu0 %v354
    %2292 = vmatprep.subr.mxu0 0.0
    %2293 = vmatpush1.msra.mxu0 %v355
    %2294 = vmatprep.subr.mxu0 0.0
    %2295 = vmatpush1.msra.mxu0 %v356
    %2296 = vmatprep.subr.mxu0 0.0
    %2297 = vmatpush1.msra.mxu0 %v357
    %2298 = vmatprep.subr.mxu0 0.0
    %2299 = vmatpush1.msra.mxu0 %v358
    %2300 = vmatprep.subr.mxu0 0.0
    %2301 = vmatpush1.msra.mxu0 %v359
    %2302 = vmatprep.subr.mxu0 0.0
    %2303 = vmatpush1.msra.mxu0 %v360
    %2304 = vmatprep.subr.mxu0 0.0
    %2305 = vmatpush1.msra.mxu0 %v361
    %2306 = vmatprep.subr.mxu0 0.0
    %2307 = vmatpush1.msra.mxu0 %v362
    %2308 = vmatprep.subr.mxu0 0.0
    %2309 = vmatpush1.msra.mxu0 %v363
    %2310 = vmatprep.subr.mxu0 0.0
    %2311 = vmatpush1.msra.mxu0 %v364
    %2312 = vmatprep.subr.mxu0 0.0
    %2313 = vmatpush1.msra.mxu0 %v365
    %2314 = vmatprep.subr.mxu0 0.0
    %2315 = vmatpush1.msra.mxu0 %v366
    %2316 = vmatprep.subr.mxu0 0.0
    %2317 = vmatpush1.msra.mxu0 %v367
    %2318 = vmatprep.subr.mxu0 0.0
    %2319 = vmatpush1.msra.mxu0 %v368
    %2320 = vmatprep.subr.mxu0 0.0
    %2321 = vmatpush1.msra.mxu0 %v369
    %2322 = vmatprep.subr.mxu0 0.0
    %2323 = vmatpush1.msra.mxu0 %v370
    %2324 = vmatprep.subr.mxu0 0.0
    %2325 = vmatpush1.msra.mxu0 %v371
    %2326 = vmatprep.subr.mxu0 0.0
    %2327 = vmatpush1.msra.mxu0 %v372
    %2328 = vmatprep.subr.mxu0 0.0
    %2329 = vmatpush1.msra.mxu0 %v373
    %2330 = vmatprep.subr.mxu0 0.0
    %2331 = vmatpush1.msra.mxu0 %v374
    %2332 = vmatprep.subr.mxu0 0.0
    %2333 = vmatpush1.msra.mxu0 %v375
    %2334 = vmatprep.subr.mxu0 0.0
    %2335 = vmatpush1.msra.mxu0 %v376
    %2336 = vmatprep.subr.mxu0 0.0
    %2337 = vmatpush1.msra.mxu0 %v377
    %2338 = vmatprep.subr.mxu0 0.0
    %2339 = vmatpush1.msra.mxu0 %v378
    %2340 = vmatprep.subr.mxu0 0.0
    %2341 = vmatpush1.msra.mxu0 %v379
    %2342 = vmatprep.subr.mxu0 0.0
    %2343 = vmatpush1.msra.mxu0 %v380
    %2344 = vmatprep.subr.mxu0 0.0
    %2345 = vmatpush1.msra.mxu0 %v381
    %2346 = vmatprep.subr.mxu0 0.0
    %2347 = vmatpush1.msra.mxu0 %v382
    %2348 = vmatprep.subr.mxu0 0.0
    %2349 = vmatpush1.msra.mxu0 %v383
    %2350 = vmatprep.subr.mxu0 0.0
    %2351 = vmatpush1.msra.mxu0 %v384
    %2352 = vmatprep.mubr.f32.mxu0 %v1310
    %2353 = vmatmul.mubr.f32.gmra.mrb[0].mxu0 %v1302
    %v2354 = vpop.f32.mrb[0].mxu0
    %v2355 = vadd.f32 %v2285, %v2354
    %v2356 = vpop.f32.mrb[0].mxu0
    %2357 = vdwg.mxu0
    %2358 = vmatprep.subr.mxu0 0.0
    %2359 = vmatpush1.msra.mxu0 %v385
    %2360 = vmatprep.subr.mxu0 0.0
    %2361 = vmatpush1.msra.mxu0 %v386
    %2362 = vmatprep.subr.mxu0 0.0
    %2363 = vmatpush1.msra.mxu0 %v387
    %2364 = vmatprep.subr.mxu0 0.0
    %2365 = vmatpush1.msra.mxu0 %v388
    %2366 = vmatprep.subr.mxu0 0.0
    %2367 = vmatpush1.msra.mxu0 %v389
    %2368 = vmatprep.subr.mxu0 0.0
    %2369 = vmatpush1.msra.mxu0 %v390
    %2370 = vmatprep.subr.mxu0 0.0
    %2371 = vmatpush1.msra.mxu0 %v391
    %2372 = vmatprep.subr.mxu0 0.0
    %2373 = vmatpush1.msra.mxu0 %v392
    %2374 = vmatprep.subr.mxu0 0.0
    %2375 = vmatpush1.msra.mxu0 %v393
    %2376 = vmatprep.subr.mxu0 0.0
    %2377 = vmatpush1.msra.mxu0 %v394
    %2378 = vmatprep.subr.mxu0 0.0
    %2379 = vmatpush1.msra.mxu0 %v395
    %2380 = vmatprep.subr.mxu0 0.0
    %2381 = vmatpush1.msra.mxu0 %v396
    %2382 = vmatprep.subr.mxu0 0.0
    %2383 = vmatpush1.msra.mxu0 %v397
    %2384 = vmatprep.subr.mxu0 0.0
    %2385 = vmatpush1.msra.mxu0 %v398
    %2386 = vmatprep.subr.mxu0 0.0
    %2387 = vmatpush1.msra.mxu0 %v399
    %2388 = vmatprep.subr.mxu0 0.0
    %2389 = vmatpush1.msra.mxu0 %v400
    %2390 = vmatprep.subr.mxu0 0.0
    %2391 = vmatpush1.msra.mxu0 %v401
    %2392 = vmatprep.subr.mxu0 0.0
    %2393 = vmatpush1.msra.mxu0 %v402
    %2394 = vmatprep.subr.mxu0 0.0
    %2395 = vmatpush1.msra.mxu0 %v403
    %2396 = vmatprep.subr.mxu0 0.0
    %2397 = vmatpush1.msra.mxu0 %v404
    %2398 = vmatprep.subr.mxu0 0.0
    %2399 = vmatpush1.msra.mxu0 %v405
    %2400 = vmatprep.subr.mxu0 0.0
    %2401 = vmatpush1.msra.mxu0 %v406
    %2402 = vmatprep.subr.mxu0 0.0
    %2403 = vmatpush1.msra.mxu0 %v407
    %2404 = vmatprep.subr.mxu0 0.0
    %2405 = vmatpush1.msra.mxu0 %v408
    %2406 = vmatprep.subr.mxu0 0.0
    %2407 = vmatpush1.msra.mxu0 %v409
    %2408 = vmatprep.subr.mxu0 0.0
    %2409 = vmatpush1.msra.mxu0 %v410
    %2410 = vmatprep.subr.mxu0 0.0
    %2411 = vmatpush1.msra.mxu0 %v411
    %2412 = vmatprep.subr.mxu0 0.0
    %2413 = vmatpush1.msra.mxu0 %v412
    %2414 = vmatprep.subr.mxu0 0.0
    %2415 = vmatpush1.msra.mxu0 %v413
    %2416 = vmatprep.subr.mxu0 0.0
    %2417 = vmatpush1.msra.mxu0 %v414
    %2418 = vmatprep.subr.mxu0 0.0
    %2419 = vmatpush1.msra.mxu0 %v415
    %2420 = vmatprep.subr.mxu0 0.0
    %2421 = vmatpush1.msra.mxu0 %v416
    %2422 = vmatprep.mubr.f32.mxu0 %v1311
    %2423 = vmatmul.mubr.f32.gmra.mrb[0].mxu0 %v1309
    %v2424 = vpop.f32.mrb[0].mxu0
    %v2425 = vadd.f32 %v2355, %v2424
    %v2426 = vpop.f32.mrb[0].mxu0
    %2427 = vdwg.mxu0
    %2428 = vmatprep.subr.mxu0 0.0
    %2429 = vmatpush1.msra.mxu0 %v417
    %2430 = vmatprep.subr.mxu0 0.0
    %2431 = vmatpush1.msra.mxu0 %v418
    %2432 = vmatprep.subr.mxu0 0.0
    %2433 = vmatpush1.msra.mxu0 %v419
    %2434 = vmatprep.subr.mxu0 0.0
    %2435 = vmatpush1.msra.mxu0 %v420
    %2436 = vmatprep.subr.mxu0 0.0
    %2437 = vmatpush1.msra.mxu0 %v421
    %2438 = vmatprep.subr.mxu0 0.0
    %2439 = vmatpush1.msra.mxu0 %v422
    %2440 = vmatprep.subr.mxu0 0.0
    %2441 = vmatpush1.msra.mxu0 %v423
    %2442 = vmatprep.subr.mxu0 0.0
    %2443 = vmatpush1.msra.mxu0 %v424
    %2444 = vmatprep.subr.mxu0 0.0
    %2445 = vmatpush1.msra.mxu0 %v425
    %2446 = vmatprep.subr.mxu0 0.0
    %2447 = vmatpush1.msra.mxu0 %v426
    %2448 = vmatprep.subr.mxu0 0.0
    %2449 = vmatpush1.msra.mxu0 %v427
    %2450 = vmatprep.subr.mxu0 0.0
    %2451 = vmatpush1.msra.mxu0 %v428
    %2452 = vmatprep.subr.mxu0 0.0
    %2453 = vmatpush1.msra.mxu0 %v429
    %2454 = vmatprep.subr.mxu0 0.0
    %2455 = vmatpush1.msra.mxu0 %v430
    %2456 = vmatprep.subr.mxu0 0.0
    %2457 = vmatpush1.msra.mxu0 %v431
    %2458 = vmatprep.subr.mxu0 0.0
    %2459 = vmatpush1.msra.mxu0 %v432
    %2460 = vmatprep.subr.mxu0 0.0
    %2461 = vmatpush1.msra.mxu0 %v433
    %2462 = vmatprep.subr.mxu0 0.0
    %2463 = vmatpush1.msra.mxu0 %v434
    %2464 = vmatprep.subr.mxu0 0.0
    %2465 = vmatpush1.msra.mxu0 %v435
    %2466 = vmatprep.subr.mxu0 0.0
    %2467 = vmatpush1.msra.mxu0 %v436
    %2468 = vmatprep.subr.mxu0 0.0
    %2469 = vmatpush1.msra.mxu0 %v437
    %2470 = vmatprep.subr.mxu0 0.0
    %2471 = vmatpush1.msra.mxu0 %v438
    %2472 = vmatprep.subr.mxu0 0.0
    %2473 = vmatpush1.msra.mxu0 %v439
    %2474 = vmatprep.subr.mxu0 0.0
    %2475 = vmatpush1.msra.mxu0 %v440
    %2476 = vmatprep.subr.mxu0 0.0
    %2477 = vmatpush1.msra.mxu0 %v441
    %2478 = vmatprep.subr.mxu0 0.0
    %2479 = vmatpush1.msra.mxu0 %v442
    %2480 = vmatprep.subr.mxu0 0.0
    %2481 = vmatpush1.msra.mxu0 %v443
    %2482 = vmatprep.subr.mxu0 0.0
    %2483 = vmatpush1.msra.mxu0 %v444
    %2484 = vmatprep.subr.mxu0 0.0
    %2485 = vmatpush1.msra.mxu0 %v445
    %2486 = vmatprep.subr.mxu0 0.0
    %2487 = vmatpush1.msra.mxu0 %v446
    %2488 = vmatprep.subr.mxu0 0.0
    %2489 = vmatpush1.msra.mxu0 %v447
    %2490 = vmatprep.subr.mxu0 0.0
    %2491 = vmatpush1.msra.mxu0 %v448
    %2492 = vmatprep.mubr.f32.mxu0 %v1327
    %2493 = vmatmul.mubr.f32.gmra.mrb[0].mxu0 %v1319
    %v2494 = vpop.f32.mrb[0].mxu0
    %v2495 = vadd.f32 %v2425, %v2494
    %v2496 = vpop.f32.mrb[0].mxu0
    %2497 = vdwg.mxu0
    %2498 = vmatprep.subr.mxu0 0.0
    %2499 = vmatpush1.msra.mxu0 %v449
    %2500 = vmatprep.subr.mxu0 0.0
    %2501 = vmatpush1.msra.mxu0 %v450
    %2502 = vmatprep.subr.mxu0 0.0
    %2503 = vmatpush1.msra.mxu0 %v451
    %2504 = vmatprep.subr.mxu0 0.0
    %2505 = vmatpush1.msra.mxu0 %v452
    %2506 = vmatprep.subr.mxu0 0.0
    %2507 = vmatpush1.msra.mxu0 %v453
    %2508 = vmatprep.subr.mxu0 0.0
    %2509 = vmatpush1.msra.mxu0 %v454
    %2510 = vmatprep.subr.mxu0 0.0
    %2511 = vmatpush1.msra.mxu0 %v455
    %2512 = vmatprep.subr.mxu0 0.0
    %2513 = vmatpush1.msra.mxu0 %v456
    %2514 = vmatprep.subr.mxu0 0.0
    %2515 = vmatpush1.msra.mxu0 %v457
    %2516 = vmatprep.subr.mxu0 0.0
    %2517 = vmatpush1.msra.mxu0 %v458
    %2518 = vmatprep.subr.mxu0 0.0
    %2519 = vmatpush1.msra.mxu0 %v459
    %2520 = vmatprep.subr.mxu0 0.0
    %2521 = vmatpush1.msra.mxu0 %v460
    %2522 = vmatprep.subr.mxu0 0.0
    %2523 = vmatpush1.msra.mxu0 %v461
    %2524 = vmatprep.subr.mxu0 0.0
    %2525 = vmatpush1.msra.mxu0 %v462
    %2526 = vmatprep.subr.mxu0 0.0
    %2527 = vmatpush1.msra.mxu0 %v463
    %2528 = vmatprep.subr.mxu0 0.0
    %2529 = vmatpush1.msra.mxu0 %v464
    %2530 = vmatprep.subr.mxu0 0.0
    %2531 = vmatpush1.msra.mxu0 %v465
    %2532 = vmatprep.subr.mxu0 0.0
    %2533 = vmatpush1.msra.mxu0 %v466
    %2534 = vmatprep.subr.mxu0 0.0
    %2535 = vmatpush1.msra.mxu0 %v467
    %2536 = vmatprep.subr.mxu0 0.0
    %2537 = vmatpush1.msra.mxu0 %v468
    %2538 = vmatprep.subr.mxu0 0.0
    %2539 = vmatpush1.msra.mxu0 %v469
    %2540 = vmatprep.subr.mxu0 0.0
    %2541 = vmatpush1.msra.mxu0 %v470
    %2542 = vmatprep.subr.mxu0 0.0
    %2543 = vmatpush1.msra.mxu0 %v471
    %2544 = vmatprep.subr.mxu0 0.0
    %2545 = vmatpush1.msra.mxu0 %v472
    %2546 = vmatprep.subr.mxu0 0.0
    %2547 = vmatpush1.msra.mxu0 %v473
    %2548 = vmatprep.subr.mxu0 0.0
    %2549 = vmatpush1.msra.mxu0 %v474
    %2550 = vmatprep.subr.mxu0 0.0
    %2551 = vmatpush1.msra.mxu0 %v475
    %2552 = vmatprep.subr.mxu0 0.0
    %2553 = vmatpush1.msra.mxu0 %v476
    %2554 = vmatprep.subr.mxu0 0.0
    %2555 = vmatpush1.msra.mxu0 %v477
    %2556 = vmatprep.subr.mxu0 0.0
    %2557 = vmatpush1.msra.mxu0 %v478
    %2558 = vmatprep.subr.mxu0 0.0
    %2559 = vmatpush1.msra.mxu0 %v479
    %2560 = vmatprep.subr.mxu0 0.0
    %2561 = vmatpush1.msra.mxu0 %v480
    %2562 = vmatprep.mubr.f32.mxu0 %v1328
    %2563 = vmatmul.mubr.f32.gmra.mrb[0].mxu0 %v1326
    %v2564 = vpop.f32.mrb[0].mxu0
    %v2565 = vadd.f32 %v2495, %v2564
    %v2566 = vpop.f32.mrb[0].mxu0
    %2567 = vdwg.mxu0
    %2568 = vmatprep.subr.mxu0 0.0
    %2569 = vmatpush1.msra.mxu0 %v481
    %2570 = vmatprep.subr.mxu0 0.0
    %2571 = vmatpush1.msra.mxu0 %v482
    %2572 = vmatprep.subr.mxu0 0.0
    %2573 = vmatpush1.msra.mxu0 %v483
    %2574 = vmatprep.subr.mxu0 0.0
    %2575 = vmatpush1.msra.mxu0 %v484
    %2576 = vmatprep.subr.mxu0 0.0
    %2577 = vmatpush1.msra.mxu0 %v485
    %2578 = vmatprep.subr.mxu0 0.0
    %2579 = vmatpush1.msra.mxu0 %v486
    %2580 = vmatprep.subr.mxu0 0.0
    %2581 = vmatpush1.msra.mxu0 %v487
    %2582 = vmatprep.subr.mxu0 0.0
    %2583 = vmatpush1.msra.mxu0 %v488
    %2584 = vmatprep.subr.mxu0 0.0
    %2585 = vmatpush1.msra.mxu0 %v489
    %2586 = vmatprep.subr.mxu0 0.0
    %2587 = vmatpush1.msra.mxu0 %v490
    %2588 = vmatprep.subr.mxu0 0.0
    %2589 = vmatpush1.msra.mxu0 %v491
    %2590 = vmatprep.subr.mxu0 0.0
    %2591 = vmatpush1.msra.mxu0 %v492
    %2592 = vmatprep.subr.mxu0 0.0
    %2593 = vmatpush1.msra.mxu0 %v493
    %2594 = vmatprep.subr.mxu0 0.0
    %2595 = vmatpush1.msra.mxu0 %v494
    %2596 = vmatprep.subr.mxu0 0.0
    %2597 = vmatpush1.msra.mxu0 %v495
    %2598 = vmatprep.subr.mxu0 0.0
    %2599 = vmatpush1.msra.mxu0 %v496
    %2600 = vmatprep.subr.mxu0 0.0
    %2601 = vmatpush1.msra.mxu0 %v497
    %2602 = vmatprep.subr.mxu0 0.0
    %2603 = vmatpush1.msra.mxu0 %v498
    %2604 = vmatprep.subr.mxu0 0.0
    %2605 = vmatpush1.msra.mxu0 %v499
    %2606 = vmatprep.subr.mxu0 0.0
    %2607 = vmatpush1.msra.mxu0 %v500
    %2608 = vmatprep.subr.mxu0 0.0
    %2609 = vmatpush1.msra.mxu0 %v501
    %2610 = vmatprep.subr.mxu0 0.0
    %2611 = vmatpush1.msra.mxu0 %v502
    %2612 = vmatprep.subr.mxu0 0.0
    %2613 = vmatpush1.msra.mxu0 %v503
    %2614 = vmatprep.subr.mxu0 0.0
    %2615 = vmatpush1.msra.mxu0 %v504
    %2616 = vmatprep.subr.mxu0 0.0
    %2617 = vmatpush1.msra.mxu0 %v505
    %2618 = vmatprep.subr.mxu0 0.0
    %2619 = vmatpush1.msra.mxu0 %v506
    %2620 = vmatprep.subr.mxu0 0.0
    %2621 = vmatpush1.msra.mxu0 %v507
    %2622 = vmatprep.subr.mxu0 0.0
    %2623 = vmatpush1.msra.mxu0 %v508
    %2624 = vmatprep.subr.mxu0 0.0
    %2625 = vmatpush1.msra.mxu0 %v509
    %2626 = vmatprep.subr.mxu0 0.0
    %2627 = vmatpush1.msra.mxu0 %v510
    %2628 = vmatprep.subr.mxu0 0.0
    %2629 = vmatpush1.msra.mxu0 %v511
    %2630 = vmatprep.subr.mxu0 0.0
    %2631 = vmatpush1.msra.mxu0 %v512
    %2632 = vmatprep.mubr.f32.mxu0 %v1344
    %2633 = vmatmul.mubr.f32.gmra.mrb[0].mxu0 %v1336
    %v2634 = vpop.f32.mrb[0].mxu0
    %v2635 = vadd.f32 %v2565, %v2634
    %v2636 = vpop.f32.mrb[0].mxu0
    %2637 = vdwg.mxu0
    %2638 = vmatprep.subr.mxu0 0.0
    %2639 = vmatpush1.msra.mxu0 %v513
    %2640 = vmatprep.subr.mxu0 0.0
    %2641 = vmatpush1.msra.mxu0 %v514
    %2642 = vmatprep.subr.mxu0 0.0
    %2643 = vmatpush1.msra.mxu0 %v515
    %2644 = vmatprep.subr.mxu0 0.0
    %2645 = vmatpush1.msra.mxu0 %v516
    %2646 = vmatprep.subr.mxu0 0.0
    %2647 = vmatpush1.msra.mxu0 %v517
    %2648 = vmatprep.subr.mxu0 0.0
    %2649 = vmatpush1.msra.mxu0 %v518
    %2650 = vmatprep.subr.mxu0 0.0
    %2651 = vmatpush1.msra.mxu0 %v519
    %2652 = vmatprep.subr.mxu0 0.0
    %2653 = vmatpush1.msra.mxu0 %v520
    %2654 = vmatprep.subr.mxu0 0.0
    %2655 = vmatpush1.msra.mxu0 %v521
    %2656 = vmatprep.subr.mxu0 0.0
    %2657 = vmatpush1.msra.mxu0 %v522
    %2658 = vmatprep.subr.mxu0 0.0
    %2659 = vmatpush1.msra.mxu0 %v523
    %2660 = vmatprep.subr.mxu0 0.0
    %2661 = vmatpush1.msra.mxu0 %v524
    %2662 = vmatprep.subr.mxu0 0.0
    %2663 = vmatpush1.msra.mxu0 %v525
    %2664 = vmatprep.subr.mxu0 0.0
    %2665 = vmatpush1.msra.mxu0 %v526
    %2666 = vmatprep.subr.mxu0 0.0
    %2667 = vmatpush1.msra.mxu0 %v527
    %2668 = vmatprep.subr.mxu0 0.0
    %2669 = vmatpush1.msra.mxu0 %v528
    %2670 = vmatprep.subr.mxu0 0.0
    %2671 = vmatpush1.msra.mxu0 %v529
    %2672 = vmatprep.subr.mxu0 0.0
    %2673 = vmatpush1.msra.mxu0 %v530
    %2674 = vmatprep.subr.mxu0 0.0
    %2675 = vmatpush1.msra.mxu0 %v531
    %2676 = vmatprep.subr.mxu0 0.0
    %2677 = vmatpush1.msra.mxu0 %v532
    %2678 = vmatprep.subr.mxu0 0.0
    %2679 = vmatpush1.msra.mxu0 %v533
    %2680 = vmatprep.subr.mxu0 0.0
    %2681 = vmatpush1.msra.mxu0 %v534
    %2682 = vmatprep.subr.mxu0 0.0
    %2683 = vmatpush1.msra.mxu0 %v535
    %2684 = vmatprep.subr.mxu0 0.0
    %2685 = vmatpush1.msra.mxu0 %v536
    %2686 = vmatprep.subr.mxu0 0.0
    %2687 = vmatpush1.msra.mxu0 %v537
    %2688 = vmatprep.subr.mxu0 0.0
    %2689 = vmatpush1.msra.mxu0 %v538
    %2690 = vmatprep.subr.mxu0 0.0
    %2691 = vmatpush1.msra.mxu0 %v539
    %2692 = vmatprep.subr.mxu0 0.0
    %2693 = vmatpush1.msra.mxu0 %v540
    %2694 = vmatprep.subr.mxu0 0.0
    %2695 = vmatpush1.msra.mxu0 %v541
    %2696 = vmatprep.subr.mxu0 0.0
    %2697 = vmatpush1.msra.mxu0 %v542
    %2698 = vmatprep.subr.mxu0 0.0
    %2699 = vmatpush1.msra.mxu0 %v543
    %2700 = vmatprep.subr.mxu0 0.0
    %2701 = vmatpush1.msra.mxu0 %v544
    %2702 = vmatprep.mubr.f32.mxu0 %v1345
    %2703 = vmatmul.mubr.f32.gmra.mrb[0].mxu0 %v1343
    %v2704 = vpop.f32.mrb[0].mxu0
    %v2705 = vadd.f32 %v2635, %v2704
    %v2706 = vpop.f32.mrb[0].mxu0
    %2707 = vdwg.mxu0
    %2708 = vmatprep.subr.mxu0 0.0
    %2709 = vmatpush1.msra.mxu0 %v545
    %2710 = vmatprep.subr.mxu0 0.0
    %2711 = vmatpush1.msra.mxu0 %v546
    %2712 = vmatprep.subr.mxu0 0.0
    %2713 = vmatpush1.msra.mxu0 %v547
    %2714 = vmatprep.subr.mxu0 0.0
    %2715 = vmatpush1.msra.mxu0 %v548
    %2716 = vmatprep.subr.mxu0 0.0
    %2717 = vmatpush1.msra.mxu0 %v549
    %2718 = vmatprep.subr.mxu0 0.0
    %2719 = vmatpush1.msra.mxu0 %v550
    %2720 = vmatprep.subr.mxu0 0.0
    %2721 = vmatpush1.msra.mxu0 %v551
    %2722 = vmatprep.subr.mxu0 0.0
    %2723 = vmatpush1.msra.mxu0 %v552
    %2724 = vmatprep.subr.mxu0 0.0
    %2725 = vmatpush1.msra.mxu0 %v553
    %2726 = vmatprep.subr.mxu0 0.0
    %2727 = vmatpush1.msra.mxu0 %v554
    %2728 = vmatprep.subr.mxu0 0.0
    %2729 = vmatpush1.msra.mxu0 %v555
    %2730 = vmatprep.subr.mxu0 0.0
    %2731 = vmatpush1.msra.mxu0 %v556
    %2732 = vmatprep.subr.mxu0 0.0
    %2733 = vmatpush1.msra.mxu0 %v557
    %2734 = vmatprep.subr.mxu0 0.0
    %2735 = vmatpush1.msra.mxu0 %v558
    %2736 = vmatprep.subr.mxu0 0.0
    %2737 = vmatpush1.msra.mxu0 %v559
    %2738 = vmatprep.subr.mxu0 0.0
    %2739 = vmatpush1.msra.mxu0 %v560
    %2740 = vmatprep.subr.mxu0 0.0
    %2741 = vmatpush1.msra.mxu0 %v561
    %2742 = vmatprep.subr.mxu0 0.0
    %2743 = vmatpush1.msra.mxu0 %v562
    %2744 = vmatprep.subr.mxu0 0.0
    %2745 = vmatpush1.msra.mxu0 %v563
    %2746 = vmatprep.subr.mxu0 0.0
    %2747 = vmatpush1.msra.mxu0 %v564
    %2748 = vmatprep.subr.mxu0 0.0
    %2749 = vmatpush1.msra.mxu0 %v565
    %2750 = vmatprep.subr.mxu0 0.0
    %2751 = vmatpush1.msra.mxu0 %v566
    %2752 = vmatprep.subr.mxu0 0.0
    %2753 = vmatpush1.msra.mxu0 %v567
    %2754 = vmatprep.subr.mxu0 0.0
    %2755 = vmatpush1.msra.mxu0 %v568
    %2756 = vmatprep.subr.mxu0 0.0
    %2757 = vmatpush1.msra.mxu0 %v569
    %2758 = vmatprep.subr.mxu0 0.0
    %2759 = vmatpush1.msra.mxu0 %v570
    %2760 = vmatprep.subr.mxu0 0.0
    %2761 = vmatpush1.msra.mxu0 %v571
    %2762 = vmatprep.subr.mxu0 0.0
    %2763 = vmatpush1.msra.mxu0 %v572
    %2764 = vmatprep.subr.mxu0 0.0
    %2765 = vmatpush1.msra.mxu0 %v573
    %2766 = vmatprep.subr.mxu0 0.0
    %2767 = vmatpush1.msra.mxu0 %v574
    %2768 = vmatprep.subr.mxu0 0.0
    %2769 = vmatpush1.msra.mxu0 %v575
    %2770 = vmatprep.subr.mxu0 0.0
    %2771 = vmatpush1.msra.mxu0 %v576
    %2772 = vmatprep.mubr.f32.mxu0 %v1361
    %2773 = vmatmul.mubr.f32.gmra.mrb[0].mxu0 %v1353
    %v2774 = vpop.f32.mrb[0].mxu0
    %v2775 = vadd.f32 %v2705, %v2774
    %v2776 = vpop.f32.mrb[0].mxu0
    %2777 = vdwg.mxu0
    %2778 = vmatprep.subr.mxu0 0.0
    %2779 = vmatpush1.msra.mxu0 %v577
    %2780 = vmatprep.subr.mxu0 0.0
    %2781 = vmatpush1.msra.mxu0 %v578
    %2782 = vmatprep.subr.mxu0 0.0
    %2783 = vmatpush1.msra.mxu0 %v579
    %2784 = vmatprep.subr.mxu0 0.0
    %2785 = vmatpush1.msra.mxu0 %v580
    %2786 = vmatprep.subr.mxu0 0.0
    %2787 = vmatpush1.msra.mxu0 %v581
    %2788 = vmatprep.subr.mxu0 0.0
    %2789 = vmatpush1.msra.mxu0 %v582
    %2790 = vmatprep.subr.mxu0 0.0
    %2791 = vmatpush1.msra.mxu0 %v583
    %2792 = vmatprep.subr.mxu0 0.0
    %2793 = vmatpush1.msra.mxu0 %v584
    %2794 = vmatprep.subr.mxu0 0.0
    %2795 = vmatpush1.msra.mxu0 %v585
    %2796 = vmatprep.subr.mxu0 0.0
    %2797 = vmatpush1.msra.mxu0 %v586
    %2798 = vmatprep.subr.mxu0 0.0
    %2799 = vmatpush1.msra.mxu0 %v587
    %2800 = vmatprep.subr.mxu0 0.0
    %2801 = vmatpush1.msra.mxu0 %v588
    %2802 = vmatprep.subr.mxu0 0.0
    %2803 = vmatpush1.msra.mxu0 %v589
    %2804 = vmatprep.subr.mxu0 0.0
    %2805 = vmatpush1.msra.mxu0 %v590
    %2806 = vmatprep.subr.mxu0 0.0
    %2807 = vmatpush1.msra.mxu0 %v591
    %2808 = vmatprep.subr.mxu0 0.0
    %2809 = vmatpush1.msra.mxu0 %v592
    %2810 = vmatprep.subr.mxu0 0.0
    %2811 = vmatpush1.msra.mxu0 %v593
    %2812 = vmatprep.subr.mxu0 0.0
    %2813 = vmatpush1.msra.mxu0 %v594
    %2814 = vmatprep.subr.mxu0 0.0
    %2815 = vmatpush1.msra.mxu0 %v595
    %2816 = vmatprep.subr.mxu0 0.0
    %2817 = vmatpush1.msra.mxu0 %v596
    %2818 = vmatprep.subr.mxu0 0.0
    %2819 = vmatpush1.msra.mxu0 %v597
    %2820 = vmatprep.subr.mxu0 0.0
    %2821 = vmatpush1.msra.mxu0 %v598
    %2822 = vmatprep.subr.mxu0 0.0
    %2823 = vmatpush1.msra.mxu0 %v599
    %2824 = vmatprep.subr.mxu0 0.0
    %2825 = vmatpush1.msra.mxu0 %v600
    %2826 = vmatprep.subr.mxu0 0.0
    %2827 = vmatpush1.msra.mxu0 %v601
    %2828 = vmatprep.subr.mxu0 0.0
    %2829 = vmatpush1.msra.mxu0 %v602
    %2830 = vmatprep.subr.mxu0 0.0
    %2831 = vmatpush1.msra.mxu0 %v603
    %2832 = vmatprep.subr.mxu0 0.0
    %2833 = vmatpush1.msra.mxu0 %v604
    %2834 = vmatprep.subr.mxu0 0.0
    %2835 = vmatpush1.msra.mxu0 %v605
    %2836 = vmatprep.subr.mxu0 0.0
    %2837 = vmatpush1.msra.mxu0 %v606
    %2838 = vmatprep.subr.mxu0 0.0
    %2839 = vmatpush1.msra.mxu0 %v607
    %2840 = vmatprep.subr.mxu0 0.0
    %2841 = vmatpush1.msra.mxu0 %v608
    %2842 = vmatprep.mubr.f32.mxu0 %v1362
    %2843 = vmatmul.mubr.f32.gmra.mrb[0].mxu0 %v1360
    %v2844 = vpop.f32.mrb[0].mxu0
    %v2845 = vadd.f32 %v2775, %v2844
    %v2846 = vpop.f32.mrb[0].mxu0
    %2847 = vdwg.mxu0
    %2848 = vmatprep.subr.mxu0 0.0
    %2849 = vmatpush1.msra.mxu0 %v609
    %2850 = vmatprep.subr.mxu0 0.0
    %2851 = vmatpush1.msra.mxu0 %v610
    %2852 = vmatprep.subr.mxu0 0.0
    %2853 = vmatpush1.msra.mxu0 %v611
    %2854 = vmatprep.subr.mxu0 0.0
    %2855 = vmatpush1.msra.mxu0 %v612
    %2856 = vmatprep.subr.mxu0 0.0
    %2857 = vmatpush1.msra.mxu0 %v613
    %2858 = vmatprep.subr.mxu0 0.0
    %2859 = vmatpush1.msra.mxu0 %v614
    %2860 = vmatprep.subr.mxu0 0.0
    %2861 = vmatpush1.msra.mxu0 %v615
    %2862 = vmatprep.subr.mxu0 0.0
    %2863 = vmatpush1.msra.mxu0 %v616
    %2864 = vmatprep.subr.mxu0 0.0
    %2865 = vmatpush1.msra.mxu0 %v617
    %2866 = vmatprep.subr.mxu0 0.0
    %2867 = vmatpush1.msra.mxu0 %v618
    %2868 = vmatprep.subr.mxu0 0.0
    %2869 = vmatpush1.msra.mxu0 %v619
    %2870 = vmatprep.subr.mxu0 0.0
    %2871 = vmatpush1.msra.mxu0 %v620
    %2872 = vmatprep.subr.mxu0 0.0
    %2873 = vmatpush1.msra.mxu0 %v621
    %2874 = vmatprep.subr.mxu0 0.0
    %2875 = vmatpush1.msra.mxu0 %v622
    %2876 = vmatprep.subr.mxu0 0.0
    %2877 = vmatpush1.msra.mxu0 %v623
    %2878 = vmatprep.subr.mxu0 0.0
    %2879 = vmatpush1.msra.mxu0 %v624
    %2880 = vmatprep.subr.mxu0 0.0
    %2881 = vmatpush1.msra.mxu0 %v625
    %2882 = vmatprep.subr.mxu0 0.0
    %2883 = vmatpush1.msra.mxu0 %v626
    %2884 = vmatprep.subr.mxu0 0.0
    %2885 = vmatpush1.msra.mxu0 %v627
    %2886 = vmatprep.subr.mxu0 0.0
    %2887 = vmatpush1.msra.mxu0 %v628
    %2888 = vmatprep.subr.mxu0 0.0
    %2889 = vmatpush1.msra.mxu0 %v629
    %2890 = vmatprep.subr.mxu0 0.0
    %2891 = vmatpush1.msra.mxu0 %v630
    %2892 = vmatprep.subr.mxu0 0.0
    %2893 = vmatpush1.msra.mxu0 %v631
    %2894 = vmatprep.subr.mxu0 0.0
    %2895 = vmatpush1.msra.mxu0 %v632
    %2896 = vmatprep.subr.mxu0 0.0
    %2897 = vmatpush1.msra.mxu0 %v633
    %2898 = vmatprep.subr.mxu0 0.0
    %2899 = vmatpush1.msra.mxu0 %v634
    %2900 = vmatprep.subr.mxu0 0.0
    %2901 = vmatpush1.msra.mxu0 %v635
    %2902 = vmatprep.subr.mxu0 0.0
    %2903 = vmatpush1.msra.mxu0 %v636
    %2904 = vmatprep.subr.mxu0 0.0
    %2905 = vmatpush1.msra.mxu0 %v637
    %2906 = vmatprep.subr.mxu0 0.0
    %2907 = vmatpush1.msra.mxu0 %v638
    %2908 = vmatprep.subr.mxu0 0.0
    %2909 = vmatpush1.msra.mxu0 %v639
    %2910 = vmatprep.subr.mxu0 0.0
    %2911 = vmatpush1.msra.mxu0 %v640
    %2912 = vmatprep.mubr.f32.mxu0 %v1378
    %2913 = vmatmul.mubr.f32.gmra.mrb[0].mxu0 %v1370
    %v2914 = vpop.f32.mrb[0].mxu0
    %v2915 = vadd.f32 %v2845, %v2914
    %v2916 = vpop.f32.mrb[0].mxu0
    %2917 = vdwg.mxu0
    %2918 = vmatprep.subr.mxu0 0.0
    %2919 = vmatpush1.msra.mxu0 %v641
    %2920 = vmatprep.subr.mxu0 0.0
    %2921 = vmatpush1.msra.mxu0 %v642
    %2922 = vmatprep.subr.mxu0 0.0
    %2923 = vmatpush1.msra.mxu0 %v643
    %2924 = vmatprep.subr.mxu0 0.0
    %2925 = vmatpush1.msra.mxu0 %v644
    %2926 = vmatprep.subr.mxu0 0.0
    %2927 = vmatpush1.msra.mxu0 %v645
    %2928 = vmatprep.subr.mxu0 0.0
    %2929 = vmatpush1.msra.mxu0 %v646
    %2930 = vmatprep.subr.mxu0 0.0
    %2931 = vmatpush1.msra.mxu0 %v647
    %2932 = vmatprep.subr.mxu0 0.0
    %2933 = vmatpush1.msra.mxu0 %v648
    %2934 = vmatprep.subr.mxu0 0.0
    %2935 = vmatpush1.msra.mxu0 %v649
    %2936 = vmatprep.subr.mxu0 0.0
    %2937 = vmatpush1.msra.mxu0 %v650
    %2938 = vmatprep.subr.mxu0 0.0
    %2939 = vmatpush1.msra.mxu0 %v651
    %2940 = vmatprep.subr.mxu0 0.0
    %2941 = vmatpush1.msra.mxu0 %v652
    %2942 = vmatprep.subr.mxu0 0.0
    %2943 = vmatpush1.msra.mxu0 %v653
    %2944 = vmatprep.subr.mxu0 0.0
    %2945 = vmatpush1.msra.mxu0 %v654
    %2946 = vmatprep.subr.mxu0 0.0
    %2947 = vmatpush1.msra.mxu0 %v655
    %2948 = vmatprep.subr.mxu0 0.0
    %2949 = vmatpush1.msra.mxu0 %v656
    %2950 = vmatprep.subr.mxu0 0.0
    %2951 = vmatpush1.msra.mxu0 %v657
    %2952 = vmatprep.subr.mxu0 0.0
    %2953 = vmatpush1.msra.mxu0 %v658
    %2954 = vmatprep.subr.mxu0 0.0
    %2955 = vmatpush1.msra.mxu0 %v659
    %2956 = vmatprep.subr.mxu0 0.0
    %2957 = vmatpush1.msra.mxu0 %v660
    %2958 = vmatprep.subr.mxu0 0.0
    %2959 = vmatpush1.msra.mxu0 %v661
    %2960 = vmatprep.subr.mxu0 0.0
    %2961 = vmatpush1.msra.mxu0 %v662
    %2962 = vmatprep.subr.mxu0 0.0
    %2963 = vmatpush1.msra.mxu0 %v663
    %2964 = vmatprep.subr.mxu0 0.0
    %2965 = vmatpush1.msra.mxu0 %v664
    %2966 = vmatprep.subr.mxu0 0.0
    %2967 = vmatpush1.msra.mxu0 %v665
    %2968 = vmatprep.subr.mxu0 0.0
    %2969 = vmatpush1.msra.mxu0 %v666
    %2970 = vmatprep.subr.mxu0 0.0
    %2971 = vmatpush1.msra.mxu0 %v667
    %2972 = vmatprep.subr.mxu0 0.0
    %2973 = vmatpush1.msra.mxu0 %v668
    %2974 = vmatprep.subr.mxu0 0.0
    %2975 = vmatpush1.msra.mxu0 %v669
    %2976 = vmatprep.subr.mxu0 0.0
    %2977 = vmatpush1.msra.mxu0 %v670
    %2978 = vmatprep.subr.mxu0 0.0
    %2979 = vmatpush1.msra.mxu0 %v671
    %2980 = vmatprep.subr.mxu0 0.0
    %2981 = vmatpush1.msra.mxu0 %v672
    %2982 = vmatprep.mubr.f32.mxu0 %v1379
    %2983 = vmatmul.mubr.f32.gmra.mrb[0].mxu0 %v1377
    %v2984 = vpop.f32.mrb[0].mxu0
    %v2985 = vadd.f32 %v2915, %v2984
    %v2986 = vpop.f32.mrb[0].mxu0
    %2987 = vdwg.mxu0
    %2988 = vmatprep.subr.mxu0 0.0
    %2989 = vmatpush1.msra.mxu0 %v673
    %2990 = vmatprep.subr.mxu0 0.0
    %2991 = vmatpush1.msra.mxu0 %v674
    %2992 = vmatprep.subr.mxu0 0.0
    %2993 = vmatpush1.msra.mxu0 %v675
    %2994 = vmatprep.subr.mxu0 0.0
    %2995 = vmatpush1.msra.mxu0 %v676
    %2996 = vmatprep.subr.mxu0 0.0
    %2997 = vmatpush1.msra.mxu0 %v677
    %2998 = vmatprep.subr.mxu0 0.0
    %2999 = vmatpush1.msra.mxu0 %v678
    %3000 = vmatprep.subr.mxu0 0.0
    %3001 = vmatpush1.msra.mxu0 %v679
    %3002 = vmatprep.subr.mxu0 0.0
    %3003 = vmatpush1.msra.mxu0 %v680
    %3004 = vmatprep.subr.mxu0 0.0
    %3005 = vmatpush1.msra.mxu0 %v681
    %3006 = vmatprep.subr.mxu0 0.0
    %3007 = vmatpush1.msra.mxu0 %v682
    %3008 = vmatprep.subr.mxu0 0.0
    %3009 = vmatpush1.msra.mxu0 %v683
    %3010 = vmatprep.subr.mxu0 0.0
    %3011 = vmatpush1.msra.mxu0 %v684
    %3012 = vmatprep.subr.mxu0 0.0
    %3013 = vmatpush1.msra.mxu0 %v685
    %3014 = vmatprep.subr.mxu0 0.0
    %3015 = vmatpush1.msra.mxu0 %v686
    %3016 = vmatprep.subr.mxu0 0.0
    %3017 = vmatpush1.msra.mxu0 %v687
    %3018 = vmatprep.subr.mxu0 0.0
    %3019 = vmatpush1.msra.mxu0 %v688
    %3020 = vmatprep.subr.mxu0 0.0
    %3021 = vmatpush1.msra.mxu0 %v689
    %3022 = vmatprep.subr.mxu0 0.0
    %3023 = vmatpush1.msra.mxu0 %v690
    %3024 = vmatprep.subr.mxu0 0.0
    %3025 = vmatpush1.msra.mxu0 %v691
    %3026 = vmatprep.subr.mxu0 0.0
    %3027 = vmatpush1.msra.mxu0 %v692
    %3028 = vmatprep.subr.mxu0 0.0
    %3029 = vmatpush1.msra.mxu0 %v693
    %3030 = vmatprep.subr.mxu0 0.0
    %3031 = vmatpush1.msra.mxu0 %v694
    %3032 = vmatprep.subr.mxu0 0.0
    %3033 = vmatpush1.msra.mxu0 %v695
    %3034 = vmatprep.subr.mxu0 0.0
    %3035 = vmatpush1.msra.mxu0 %v696
    %3036 = vmatprep.subr.mxu0 0.0
    %3037 = vmatpush1.msra.mxu0 %v697
    %3038 = vmatprep.subr.mxu0 0.0
    %3039 = vmatpush1.msra.mxu0 %v698
    %3040 = vmatprep.subr.mxu0 0.0
    %3041 = vmatpush1.msra.mxu0 %v699
    %3042 = vmatprep.subr.mxu0 0.0
    %3043 = vmatpush1.msra.mxu0 %v700
    %3044 = vmatprep.subr.mxu0 0.0
    %3045 = vmatpush1.msra.mxu0 %v701
    %3046 = vmatprep.subr.mxu0 0.0
    %3047 = vmatpush1.msra.mxu0 %v702
    %3048 = vmatprep.subr.mxu0 0.0
    %3049 = vmatpush1.msra.mxu0 %v703
    %3050 = vmatprep.subr.mxu0 0.0
    %3051 = vmatpush1.msra.mxu0 %v704
    %3052 = vmatprep.mubr.f32.mxu0 %v1395
    %3053 = vmatmul.mubr.f32.gmra.mrb[0].mxu0 %v1387
    %v3054 = vpop.f32.mrb[0].mxu0
    %v3055 = vadd.f32 %v2985, %v3054
    %v3056 = vpop.f32.mrb[0].mxu0
    %3057 = vdwg.mxu0
    %3058 = vmatprep.subr.mxu0 0.0
    %3059 = vmatpush1.msra.mxu0 %v705
    %3060 = vmatprep.subr.mxu0 0.0
    %3061 = vmatpush1.msra.mxu0 %v706
    %3062 = vmatprep.subr.mxu0 0.0
    %3063 = vmatpush1.msra.mxu0 %v707
    %3064 = vmatprep.subr.mxu0 0.0
    %3065 = vmatpush1.msra.mxu0 %v708
    %3066 = vmatprep.subr.mxu0 0.0
    %3067 = vmatpush1.msra.mxu0 %v709
    %3068 = vmatprep.subr.mxu0 0.0
    %3069 = vmatpush1.msra.mxu0 %v710
    %3070 = vmatprep.subr.mxu0 0.0
    %3071 = vmatpush1.msra.mxu0 %v711
    %3072 = vmatprep.subr.mxu0 0.0
    %3073 = vmatpush1.msra.mxu0 %v712
    %3074 = vmatprep.subr.mxu0 0.0
    %3075 = vmatpush1.msra.mxu0 %v713
    %3076 = vmatprep.subr.mxu0 0.0
    %3077 = vmatpush1.msra.mxu0 %v714
    %3078 = vmatprep.subr.mxu0 0.0
    %3079 = vmatpush1.msra.mxu0 %v715
    %3080 = vmatprep.subr.mxu0 0.0
    %3081 = vmatpush1.msra.mxu0 %v716
    %3082 = vmatprep.subr.mxu0 0.0
    %3083 = vmatpush1.msra.mxu0 %v717
    %3084 = vmatprep.subr.mxu0 0.0
    %3085 = vmatpush1.msra.mxu0 %v718
    %3086 = vmatprep.subr.mxu0 0.0
    %3087 = vmatpush1.msra.mxu0 %v719
    %3088 = vmatprep.subr.mxu0 0.0
    %3089 = vmatpush1.msra.mxu0 %v720
    %3090 = vmatprep.subr.mxu0 0.0
    %3091 = vmatpush1.msra.mxu0 %v721
    %3092 = vmatprep.subr.mxu0 0.0
    %3093 = vmatpush1.msra.mxu0 %v722
    %3094 = vmatprep.subr.mxu0 0.0
    %3095 = vmatpush1.msra.mxu0 %v723
    %3096 = vmatprep.subr.mxu0 0.0
    %3097 = vmatpush1.msra.mxu0 %v724
    %3098 = vmatprep.subr.mxu0 0.0
    %3099 = vmatpush1.msra.mxu0 %v725
    %3100 = vmatprep.subr.mxu0 0.0
    %3101 = vmatpush1.msra.mxu0 %v726
    %3102 = vmatprep.subr.mxu0 0.0
    %3103 = vmatpush1.msra.mxu0 %v727
    %3104 = vmatprep.subr.mxu0 0.0
    %3105 = vmatpush1.msra.mxu0 %v728
    %3106 = vmatprep.subr.mxu0 0.0
    %3107 = vmatpush1.msra.mxu0 %v729
    %3108 = vmatprep.subr.mxu0 0.0
    %3109 = vmatpush1.msra.mxu0 %v730
    %3110 = vmatprep.subr.mxu0 0.0
    %3111 = vmatpush1.msra.mxu0 %v731
    %3112 = vmatprep.subr.mxu0 0.0
    %3113 = vmatpush1.msra.mxu0 %v732
    %3114 = vmatprep.subr.mxu0 0.0
    %3115 = vmatpush1.msra.mxu0 %v733
    %3116 = vmatprep.subr.mxu0 0.0
    %3117 = vmatpush1.msra.mxu0 %v734
    %3118 = vmatprep.subr.mxu0 0.0
    %3119 = vmatpush1.msra.mxu0 %v735
    %3120 = vmatprep.subr.mxu0 0.0
    %3121 = vmatpush1.msra.mxu0 %v736
    %3122 = vmatprep.mubr.f32.mxu0 %v1396
    %3123 = vmatmul.mubr.f32.gmra.mrb[0].mxu0 %v1394
    %v3124 = vpop.f32.mrb[0].mxu0
    %v3125 = vadd.f32 %v3055, %v3124
    %v3126 = vpop.f32.mrb[0].mxu0
    %3127 = vdwg.mxu0
    %3128 = vmatprep.subr.mxu0 0.0
    %3129 = vmatpush1.msra.mxu0 %v737
    %3130 = vmatprep.subr.mxu0 0.0
    %3131 = vmatpush1.msra.mxu0 %v738
    %3132 = vmatprep.subr.mxu0 0.0
    %3133 = vmatpush1.msra.mxu0 %v739
    %3134 = vmatprep.subr.mxu0 0.0
    %3135 = vmatpush1.msra.mxu0 %v740
    %3136 = vmatprep.subr.mxu0 0.0
    %3137 = vmatpush1.msra.mxu0 %v741
    %3138 = vmatprep.subr.mxu0 0.0
    %3139 = vmatpush1.msra.mxu0 %v742
    %3140 = vmatprep.subr.mxu0 0.0
    %3141 = vmatpush1.msra.mxu0 %v743
    %3142 = vmatprep.subr.mxu0 0.0
    %3143 = vmatpush1.msra.mxu0 %v744
    %3144 = vmatprep.subr.mxu0 0.0
    %3145 = vmatpush1.msra.mxu0 %v745
    %3146 = vmatprep.subr.mxu0 0.0
    %3147 = vmatpush1.msra.mxu0 %v746
    %3148 = vmatprep.subr.mxu0 0.0
    %3149 = vmatpush1.msra.mxu0 %v747
    %3150 = vmatprep.subr.mxu0 0.0
    %3151 = vmatpush1.msra.mxu0 %v748
    %3152 = vmatprep.subr.mxu0 0.0
    %3153 = vmatpush1.msra.mxu0 %v749
    %3154 = vmatprep.subr.mxu0 0.0
    %3155 = vmatpush1.msra.mxu0 %v750
    %3156 = vmatprep.subr.mxu0 0.0
    %3157 = vmatpush1.msra.mxu0 %v751
    %3158 = vmatprep.subr.mxu0 0.0
    %3159 = vmatpush1.msra.mxu0 %v752
    %3160 = vmatprep.subr.mxu0 0.0
    %3161 = vmatpush1.msra.mxu0 %v753
    %3162 = vmatprep.subr.mxu0 0.0
    %3163 = vmatpush1.msra.mxu0 %v754
    %3164 = vmatprep.subr.mxu0 0.0
    %3165 = vmatpush1.msra.mxu0 %v755
    %3166 = vmatprep.subr.mxu0 0.0
    %3167 = vmatpush1.msra.mxu0 %v756
    %3168 = vmatprep.subr.mxu0 0.0
    %3169 = vmatpush1.msra.mxu0 %v757
    %3170 = vmatprep.subr.mxu0 0.0
    %3171 = vmatpush1.msra.mxu0 %v758
    %3172 = vmatprep.subr.mxu0 0.0
    %3173 = vmatpush1.msra.mxu0 %v759
    %3174 = vmatprep.subr.mxu0 0.0
    %3175 = vmatpush1.msra.mxu0 %v760
    %3176 = vmatprep.subr.mxu0 0.0
    %3177 = vmatpush1.msra.mxu0 %v761
    %3178 = vmatprep.subr.mxu0 0.0
    %3179 = vmatpush1.msra.mxu0 %v762
    %3180 = vmatprep.subr.mxu0 0.0
    %3181 = vmatpush1.msra.mxu0 %v763
    %3182 = vmatprep.subr.mxu0 0.0
    %3183 = vmatpush1.msra.mxu0 %v764
    %3184 = vmatprep.subr.mxu0 0.0
    %3185 = vmatpush1.msra.mxu0 %v765
    %3186 = vmatprep.subr.mxu0 0.0
    %3187 = vmatpush1.msra.mxu0 %v766
    %3188 = vmatprep.subr.mxu0 0.0
    %3189 = vmatpush1.msra.mxu0 %v767
    %3190 = vmatprep.subr.mxu0 0.0
    %3191 = vmatpush1.msra.mxu0 %v768
    %3192 = vmatprep.mubr.f32.mxu0 %v1412
    %3193 = vmatmul.mubr.f32.gmra.mrb[0].mxu0 %v1404
    %v3194 = vpop.f32.mrb[0].mxu0
    %v3195 = vadd.f32 %v3125, %v3194
    %v3196 = vpop.f32.mrb[0].mxu0
    %3197 = vdwg.mxu0
    %3198 = vmatprep.subr.mxu0 0.0
    %3199 = vmatpush1.msra.mxu0 %v769
    %3200 = vmatprep.subr.mxu0 0.0
    %3201 = vmatpush1.msra.mxu0 %v770
    %3202 = vmatprep.subr.mxu0 0.0
    %3203 = vmatpush1.msra.mxu0 %v771
    %3204 = vmatprep.subr.mxu0 0.0
    %3205 = vmatpush1.msra.mxu0 %v772
    %3206 = vmatprep.subr.mxu0 0.0
    %3207 = vmatpush1.msra.mxu0 %v773
    %3208 = vmatprep.subr.mxu0 0.0
    %3209 = vmatpush1.msra.mxu0 %v774
    %3210 = vmatprep.subr.mxu0 0.0
    %3211 = vmatpush1.msra.mxu0 %v775
    %3212 = vmatprep.subr.mxu0 0.0
    %3213 = vmatpush1.msra.mxu0 %v776
    %3214 = vmatprep.subr.mxu0 0.0
    %3215 = vmatpush1.msra.mxu0 %v777
    %3216 = vmatprep.subr.mxu0 0.0
    %3217 = vmatpush1.msra.mxu0 %v778
    %3218 = vmatprep.subr.mxu0 0.0
    %3219 = vmatpush1.msra.mxu0 %v779
    %3220 = vmatprep.subr.mxu0 0.0
    %3221 = vmatpush1.msra.mxu0 %v780
    %3222 = vmatprep.subr.mxu0 0.0
    %3223 = vmatpush1.msra.mxu0 %v781
    %3224 = vmatprep.subr.mxu0 0.0
    %3225 = vmatpush1.msra.mxu0 %v782
    %3226 = vmatprep.subr.mxu0 0.0
    %3227 = vmatpush1.msra.mxu0 %v783
    %3228 = vmatprep.subr.mxu0 0.0
    %3229 = vmatpush1.msra.mxu0 %v784
    %3230 = vmatprep.subr.mxu0 0.0
    %3231 = vmatpush1.msra.mxu0 %v785
    %3232 = vmatprep.subr.mxu0 0.0
    %3233 = vmatpush1.msra.mxu0 %v786
    %3234 = vmatprep.subr.mxu0 0.0
    %3235 = vmatpush1.msra.mxu0 %v787
    %3236 = vmatprep.subr.mxu0 0.0
    %3237 = vmatpush1.msra.mxu0 %v788
    %3238 = vmatprep.subr.mxu0 0.0
    %3239 = vmatpush1.msra.mxu0 %v789
    %3240 = vmatprep.subr.mxu0 0.0
    %3241 = vmatpush1.msra.mxu0 %v790
    %3242 = vmatprep.subr.mxu0 0.0
    %3243 = vmatpush1.msra.mxu0 %v791
    %3244 = vmatprep.subr.mxu0 0.0
    %3245 = vmatpush1.msra.mxu0 %v792
    %3246 = vmatprep.subr.mxu0 0.0
    %3247 = vmatpush1.msra.mxu0 %v793
    %3248 = vmatprep.subr.mxu0 0.0
    %3249 = vmatpush1.msra.mxu0 %v794
    %3250 = vmatprep.subr.mxu0 0.0
    %3251 = vmatpush1.msra.mxu0 %v795
    %3252 = vmatprep.subr.mxu0 0.0
    %3253 = vmatpush1.msra.mxu0 %v796
    %3254 = vmatprep.subr.mxu0 0.0
    %3255 = vmatpush1.msra.mxu0 %v797
    %3256 = vmatprep.subr.mxu0 0.0
    %3257 = vmatpush1.msra.mxu0 %v798
    %3258 = vmatprep.subr.mxu0 0.0
    %3259 = vmatpush1.msra.mxu0 %v799
    %3260 = vmatprep.subr.mxu0 0.0
    %3261 = vmatpush1.msra.mxu0 %v800
    %3262 = vmatprep.mubr.f32.mxu0 %v1413
    %3263 = vmatmul.mubr.f32.gmra.mrb[0].mxu0 %v1411
    %v3264 = vpop.f32.mrb[0].mxu0
    %v3265 = vadd.f32 %v3195, %v3264
    %v3266 = vpop.f32.mrb[0].mxu0
    %3267 = vdwg.mxu0
    %3268 = vmatprep.subr.mxu0 0.0
    %3269 = vmatpush1.msra.mxu0 %v801
    %3270 = vmatprep.subr.mxu0 0.0
    %3271 = vmatpush1.msra.mxu0 %v802
    %3272 = vmatprep.subr.mxu0 0.0
    %3273 = vmatpush1.msra.mxu0 %v803
    %3274 = vmatprep.subr.mxu0 0.0
    %3275 = vmatpush1.msra.mxu0 %v804
    %3276 = vmatprep.subr.mxu0 0.0
    %3277 = vmatpush1.msra.mxu0 %v805
    %3278 = vmatprep.subr.mxu0 0.0
    %3279 = vmatpush1.msra.mxu0 %v806
    %3280 = vmatprep.subr.mxu0 0.0
    %3281 = vmatpush1.msra.mxu0 %v807
    %3282 = vmatprep.subr.mxu0 0.0
    %3283 = vmatpush1.msra.mxu0 %v808
    %3284 = vmatprep.subr.mxu0 0.0
    %3285 = vmatpush1.msra.mxu0 %v809
    %3286 = vmatprep.subr.mxu0 0.0
    %3287 = vmatpush1.msra.mxu0 %v810
    %3288 = vmatprep.subr.mxu0 0.0
    %3289 = vmatpush1.msra.mxu0 %v811
    %3290 = vmatprep.subr.mxu0 0.0
    %3291 = vmatpush1.msra.mxu0 %v812
    %3292 = vmatprep.subr.mxu0 0.0
    %3293 = vmatpush1.msra.mxu0 %v813
    %3294 = vmatprep.subr.mxu0 0.0
    %3295 = vmatpush1.msra.mxu0 %v814
    %3296 = vmatprep.subr.mxu0 0.0
    %3297 = vmatpush1.msra.mxu0 %v815
    %3298 = vmatprep.subr.mxu0 0.0
    %3299 = vmatpush1.msra.mxu0 %v816
    %3300 = vmatprep.subr.mxu0 0.0
    %3301 = vmatpush1.msra.mxu0 %v817
    %3302 = vmatprep.subr.mxu0 0.0
    %3303 = vmatpush1.msra.mxu0 %v818
    %3304 = vmatprep.subr.mxu0 0.0
    %3305 = vmatpush1.msra.mxu0 %v819
    %3306 = vmatprep.subr.mxu0 0.0
    %3307 = vmatpush1.msra.mxu0 %v820
    %3308 = vmatprep.subr.mxu0 0.0
    %3309 = vmatpush1.msra.mxu0 %v821
    %3310 = vmatprep.subr.mxu0 0.0
    %3311 = vmatpush1.msra.mxu0 %v822
    %3312 = vmatprep.subr.mxu0 0.0
    %3313 = vmatpush1.msra.mxu0 %v823
    %3314 = vmatprep.subr.mxu0 0.0
    %3315 = vmatpush1.msra.mxu0 %v824
    %3316 = vmatprep.subr.mxu0 0.0
    %3317 = vmatpush1.msra.mxu0 %v825
    %3318 = vmatprep.subr.mxu0 0.0
    %3319 = vmatpush1.msra.mxu0 %v826
    %3320 = vmatprep.subr.mxu0 0.0
    %3321 = vmatpush1.msra.mxu0 %v827
    %3322 = vmatprep.subr.mxu0 0.0
    %3323 = vmatpush1.msra.mxu0 %v828
    %3324 = vmatprep.subr.mxu0 0.0
    %3325 = vmatpush1.msra.mxu0 %v829
    %3326 = vmatprep.subr.mxu0 0.0
    %3327 = vmatpush1.msra.mxu0 %v830
    %3328 = vmatprep.subr.mxu0 0.0
    %3329 = vmatpush1.msra.mxu0 %v831
    %3330 = vmatprep.subr.mxu0 0.0
    %3331 = vmatpush1.msra.mxu0 %v832
    %3332 = vmatprep.mubr.f32.mxu0 %v1429
    %3333 = vmatmul.mubr.f32.gmra.mrb[0].mxu0 %v1421
    %v3334 = vpop.f32.mrb[0].mxu0
    %v3335 = vadd.f32 %v3265, %v3334
    %v3336 = vpop.f32.mrb[0].mxu0
    %3337 = vdwg.mxu0
    %3338 = vmatprep.subr.mxu0 0.0
    %3339 = vmatpush1.msra.mxu0 %v833
    %3340 = vmatprep.subr.mxu0 0.0
    %3341 = vmatpush1.msra.mxu0 %v834
    %3342 = vmatprep.subr.mxu0 0.0
    %3343 = vmatpush1.msra.mxu0 %v835
    %3344 = vmatprep.subr.mxu0 0.0
    %3345 = vmatpush1.msra.mxu0 %v836
    %3346 = vmatprep.subr.mxu0 0.0
    %3347 = vmatpush1.msra.mxu0 %v837
    %3348 = vmatprep.subr.mxu0 0.0
    %3349 = vmatpush1.msra.mxu0 %v838
    %3350 = vmatprep.subr.mxu0 0.0
    %3351 = vmatpush1.msra.mxu0 %v839
    %3352 = vmatprep.subr.mxu0 0.0
    %3353 = vmatpush1.msra.mxu0 %v840
    %3354 = vmatprep.subr.mxu0 0.0
    %3355 = vmatpush1.msra.mxu0 %v841
    %3356 = vmatprep.subr.mxu0 0.0
    %3357 = vmatpush1.msra.mxu0 %v842
    %3358 = vmatprep.subr.mxu0 0.0
    %3359 = vmatpush1.msra.mxu0 %v843
    %3360 = vmatprep.subr.mxu0 0.0
    %3361 = vmatpush1.msra.mxu0 %v844
    %3362 = vmatprep.subr.mxu0 0.0
    %3363 = vmatpush1.msra.mxu0 %v845
    %3364 = vmatprep.subr.mxu0 0.0
    %3365 = vmatpush1.msra.mxu0 %v846
    %3366 = vmatprep.subr.mxu0 0.0
    %3367 = vmatpush1.msra.mxu0 %v847
    %3368 = vmatprep.subr.mxu0 0.0
    %3369 = vmatpush1.msra.mxu0 %v848
    %3370 = vmatprep.subr.mxu0 0.0
    %3371 = vmatpush1.msra.mxu0 %v849
    %3372 = vmatprep.subr.mxu0 0.0
    %3373 = vmatpush1.msra.mxu0 %v850
    %3374 = vmatprep.subr.mxu0 0.0
    %3375 = vmatpush1.msra.mxu0 %v851
    %3376 = vmatprep.subr.mxu0 0.0
    %3377 = vmatpush1.msra.mxu0 %v852
    %3378 = vmatprep.subr.mxu0 0.0
    %3379 = vmatpush1.msra.mxu0 %v853
    %3380 = vmatprep.subr.mxu0 0.0
    %3381 = vmatpush1.msra.mxu0 %v854
    %3382 = vmatprep.subr.mxu0 0.0
    %3383 = vmatpush1.msra.mxu0 %v855
    %3384 = vmatprep.subr.mxu0 0.0
    %3385 = vmatpush1.msra.mxu0 %v856
    %3386 = vmatprep.subr.mxu0 0.0
    %3387 = vmatpush1.msra.mxu0 %v857
    %3388 = vmatprep.subr.mxu0 0.0
    %3389 = vmatpush1.msra.mxu0 %v858
    %3390 = vmatprep.subr.mxu0 0.0
    %3391 = vmatpush1.msra.mxu0 %v859
    %3392 = vmatprep.subr.mxu0 0.0
    %3393 = vmatpush1.msra.mxu0 %v860
    %3394 = vmatprep.subr.mxu0 0.0
    %3395 = vmatpush1.msra.mxu0 %v861
    %3396 = vmatprep.subr.mxu0 0.0
    %3397 = vmatpush1.msra.mxu0 %v862
    %3398 = vmatprep.subr.mxu0 0.0
    %3399 = vmatpush1.msra.mxu0 %v863
    %3400 = vmatprep.subr.mxu0 0.0
    %3401 = vmatpush1.msra.mxu0 %v864
    %3402 = vmatprep.mubr.f32.mxu0 %v1430
    %3403 = vmatmul.mubr.f32.gmra.mrb[0].mxu0 %v1428
    %v3404 = vpop.f32.mrb[0].mxu0
    %v3405 = vadd.f32 %v3335, %v3404
    %v3406 = vpop.f32.mrb[0].mxu0
    %3407 = vdwg.mxu0
    %3408 = vmatprep.subr.mxu0 0.0
    %3409 = vmatpush1.msra.mxu0 %v865
    %3410 = vmatprep.subr.mxu0 0.0
    %3411 = vmatpush1.msra.mxu0 %v866
    %3412 = vmatprep.subr.mxu0 0.0
    %3413 = vmatpush1.msra.mxu0 %v867
    %3414 = vmatprep.subr.mxu0 0.0
    %3415 = vmatpush1.msra.mxu0 %v868
    %3416 = vmatprep.subr.mxu0 0.0
    %3417 = vmatpush1.msra.mxu0 %v869
    %3418 = vmatprep.subr.mxu0 0.0
    %3419 = vmatpush1.msra.mxu0 %v870
    %3420 = vmatprep.subr.mxu0 0.0
    %3421 = vmatpush1.msra.mxu0 %v871
    %3422 = vmatprep.subr.mxu0 0.0
    %3423 = vmatpush1.msra.mxu0 %v872
    %3424 = vmatprep.subr.mxu0 0.0
    %3425 = vmatpush1.msra.mxu0 %v873
    %3426 = vmatprep.subr.mxu0 0.0
    %3427 = vmatpush1.msra.mxu0 %v874
    %3428 = vmatprep.subr.mxu0 0.0
    %3429 = vmatpush1.msra.mxu0 %v875
    %3430 = vmatprep.subr.mxu0 0.0
    %3431 = vmatpush1.msra.mxu0 %v876
    %3432 = vmatprep.subr.mxu0 0.0
    %3433 = vmatpush1.msra.mxu0 %v877
    %3434 = vmatprep.subr.mxu0 0.0
    %3435 = vmatpush1.msra.mxu0 %v878
    %3436 = vmatprep.subr.mxu0 0.0
    %3437 = vmatpush1.msra.mxu0 %v879
    %3438 = vmatprep.subr.mxu0 0.0
    %3439 = vmatpush1.msra.mxu0 %v880
    %3440 = vmatprep.subr.mxu0 0.0
    %3441 = vmatpush1.msra.mxu0 %v881
    %3442 = vmatprep.subr.mxu0 0.0
    %3443 = vmatpush1.msra.mxu0 %v882
    %3444 = vmatprep.subr.mxu0 0.0
    %3445 = vmatpush1.msra.mxu0 %v883
    %3446 = vmatprep.subr.mxu0 0.0
    %3447 = vmatpush1.msra.mxu0 %v884
    %3448 = vmatprep.subr.mxu0 0.0
    %3449 = vmatpush1.msra.mxu0 %v885
    %3450 = vmatprep.subr.mxu0 0.0
    %3451 = vmatpush1.msra.mxu0 %v886
    %3452 = vmatprep.subr.mxu0 0.0
    %3453 = vmatpush1.msra.mxu0 %v887
    %3454 = vmatprep.subr.mxu0 0.0
    %3455 = vmatpush1.msra.mxu0 %v888
    %3456 = vmatprep.subr.mxu0 0.0
    %3457 = vmatpush1.msra.mxu0 %v889
    %3458 = vmatprep.subr.mxu0 0.0
    %3459 = vmatpush1.msra.mxu0 %v890
    %3460 = vmatprep.subr.mxu0 0.0
    %3461 = vmatpush1.msra.mxu0 %v891
    %3462 = vmatprep.subr.mxu0 0.0
    %3463 = vmatpush1.msra.mxu0 %v892
    %3464 = vmatprep.subr.mxu0 0.0
    %3465 = vmatpush1.msra.mxu0 %v893
    %3466 = vmatprep.subr.mxu0 0.0
    %3467 = vmatpush1.msra.mxu0 %v894
    %3468 = vmatprep.subr.mxu0 0.0
    %3469 = vmatpush1.msra.mxu0 %v895
    %3470 = vmatprep.subr.mxu0 0.0
    %3471 = vmatpush1.msra.mxu0 %v896
    %3472 = vmatprep.mubr.f32.mxu0 %v1446
    %3473 = vmatmul.mubr.f32.gmra.mrb[0].mxu0 %v1438
    %v3474 = vpop.f32.mrb[0].mxu0
    %v3475 = vadd.f32 %v3405, %v3474
    %v3476 = vpop.f32.mrb[0].mxu0
    %3477 = vdwg.mxu0
    %3478 = vmatprep.subr.mxu0 0.0
    %3479 = vmatpush1.msra.mxu0 %v897
    %3480 = vmatprep.subr.mxu0 0.0
    %3481 = vmatpush1.msra.mxu0 %v898
    %3482 = vmatprep.subr.mxu0 0.0
    %3483 = vmatpush1.msra.mxu0 %v899
    %3484 = vmatprep.subr.mxu0 0.0
    %3485 = vmatpush1.msra.mxu0 %v900
    %3486 = vmatprep.subr.mxu0 0.0
    %3487 = vmatpush1.msra.mxu0 %v901
    %3488 = vmatprep.subr.mxu0 0.0
    %3489 = vmatpush1.msra.mxu0 %v902
    %3490 = vmatprep.subr.mxu0 0.0
    %3491 = vmatpush1.msra.mxu0 %v903
    %3492 = vmatprep.subr.mxu0 0.0
    %3493 = vmatpush1.msra.mxu0 %v904
    %3494 = vmatprep.subr.mxu0 0.0
    %3495 = vmatpush1.msra.mxu0 %v905
    %3496 = vmatprep.subr.mxu0 0.0
    %3497 = vmatpush1.msra.mxu0 %v906
    %3498 = vmatprep.subr.mxu0 0.0
    %3499 = vmatpush1.msra.mxu0 %v907
    %3500 = vmatprep.subr.mxu0 0.0
    %3501 = vmatpush1.msra.mxu0 %v908
    %3502 = vmatprep.subr.mxu0 0.0
    %3503 = vmatpush1.msra.mxu0 %v909
    %3504 = vmatprep.subr.mxu0 0.0
    %3505 = vmatpush1.msra.mxu0 %v910
    %3506 = vmatprep.subr.mxu0 0.0
    %3507 = vmatpush1.msra.mxu0 %v911
    %3508 = vmatprep.subr.mxu0 0.0
    %3509 = vmatpush1.msra.mxu0 %v912
    %3510 = vmatprep.subr.mxu0 0.0
    %3511 = vmatpush1.msra.mxu0 %v913
    %3512 = vmatprep.subr.mxu0 0.0
    %3513 = vmatpush1.msra.mxu0 %v914
    %3514 = vmatprep.subr.mxu0 0.0
    %3515 = vmatpush1.msra.mxu0 %v915
    %3516 = vmatprep.subr.mxu0 0.0
    %3517 = vmatpush1.msra.mxu0 %v916
    %3518 = vmatprep.subr.mxu0 0.0
    %3519 = vmatpush1.msra.mxu0 %v917
    %3520 = vmatprep.subr.mxu0 0.0
    %3521 = vmatpush1.msra.mxu0 %v918
    %3522 = vmatprep.subr.mxu0 0.0
    %3523 = vmatpush1.msra.mxu0 %v919
    %3524 = vmatprep.subr.mxu0 0.0
    %3525 = vmatpush1.msra.mxu0 %v920
    %3526 = vmatprep.subr.mxu0 0.0
    %3527 = vmatpush1.msra.mxu0 %v921
    %3528 = vmatprep.subr.mxu0 0.0
    %3529 = vmatpush1.msra.mxu0 %v922
    %3530 = vmatprep.subr.mxu0 0.0
    %3531 = vmatpush1.msra.mxu0 %v923
    %3532 = vmatprep.subr.mxu0 0.0
    %3533 = vmatpush1.msra.mxu0 %v924
    %3534 = vmatprep.subr.mxu0 0.0
    %3535 = vmatpush1.msra.mxu0 %v925
    %3536 = vmatprep.subr.mxu0 0.0
    %3537 = vmatpush1.msra.mxu0 %v926
    %3538 = vmatprep.subr.mxu0 0.0
    %3539 = vmatpush1.msra.mxu0 %v927
    %3540 = vmatprep.subr.mxu0 0.0
    %3541 = vmatpush1.msra.mxu0 %v928
    %3542 = vmatprep.mubr.f32.mxu0 %v1447
    %3543 = vmatmul.mubr.f32.gmra.mrb[0].mxu0 %v1445
    %v3544 = vpop.f32.mrb[0].mxu0
    %v3545 = vadd.f32 %v3475, %v3544
    %v3546 = vpop.f32.mrb[0].mxu0
    %3547 = vdwg.mxu0
    %3548 = vmatprep.subr.mxu0 0.0
    %3549 = vmatpush1.msra.mxu0 %v929
    %3550 = vmatprep.subr.mxu0 0.0
    %3551 = vmatpush1.msra.mxu0 %v930
    %3552 = vmatprep.subr.mxu0 0.0
    %3553 = vmatpush1.msra.mxu0 %v931
    %3554 = vmatprep.subr.mxu0 0.0
    %3555 = vmatpush1.msra.mxu0 %v932
    %3556 = vmatprep.subr.mxu0 0.0
    %3557 = vmatpush1.msra.mxu0 %v933
    %3558 = vmatprep.subr.mxu0 0.0
    %3559 = vmatpush1.msra.mxu0 %v934
    %3560 = vmatprep.subr.mxu0 0.0
    %3561 = vmatpush1.msra.mxu0 %v935
    %3562 = vmatprep.subr.mxu0 0.0
    %3563 = vmatpush1.msra.mxu0 %v936
    %3564 = vmatprep.subr.mxu0 0.0
    %3565 = vmatpush1.msra.mxu0 %v937
    %3566 = vmatprep.subr.mxu0 0.0
    %3567 = vmatpush1.msra.mxu0 %v938
    %3568 = vmatprep.subr.mxu0 0.0
    %3569 = vmatpush1.msra.mxu0 %v939
    %3570 = vmatprep.subr.mxu0 0.0
    %3571 = vmatpush1.msra.mxu0 %v940
    %3572 = vmatprep.subr.mxu0 0.0
    %3573 = vmatpush1.msra.mxu0 %v941
    %3574 = vmatprep.subr.mxu0 0.0
    %3575 = vmatpush1.msra.mxu0 %v942
    %3576 = vmatprep.subr.mxu0 0.0
    %3577 = vmatpush1.msra.mxu0 %v943
    %3578 = vmatprep.subr.mxu0 0.0
    %3579 = vmatpush1.msra.mxu0 %v944
    %3580 = vmatprep.subr.mxu0 0.0
    %3581 = vmatpush1.msra.mxu0 %v945
    %3582 = vmatprep.subr.mxu0 0.0
    %3583 = vmatpush1.msra.mxu0 %v946
    %3584 = vmatprep.subr.mxu0 0.0
    %3585 = vmatpush1.msra.mxu0 %v947
    %3586 = vmatprep.subr.mxu0 0.0
    %3587 = vmatpush1.msra.mxu0 %v948
    %3588 = vmatprep.subr.mxu0 0.0
    %3589 = vmatpush1.msra.mxu0 %v949
    %3590 = vmatprep.subr.mxu0 0.0
    %3591 = vmatpush1.msra.mxu0 %v950
    %3592 = vmatprep.subr.mxu0 0.0
    %3593 = vmatpush1.msra.mxu0 %v951
    %3594 = vmatprep.subr.mxu0 0.0
    %3595 = vmatpush1.msra.mxu0 %v952
    %3596 = vmatprep.subr.mxu0 0.0
    %3597 = vmatpush1.msra.mxu0 %v953
    %3598 = vmatprep.subr.mxu0 0.0
    %3599 = vmatpush1.msra.mxu0 %v954
    %3600 = vmatprep.subr.mxu0 0.0
    %3601 = vmatpush1.msra.mxu0 %v955
    %3602 = vmatprep.subr.mxu0 0.0
    %3603 = vmatpush1.msra.mxu0 %v956
    %3604 = vmatprep.subr.mxu0 0.0
    %3605 = vmatpush1.msra.mxu0 %v957
    %3606 = vmatprep.subr.mxu0 0.0
    %3607 = vmatpush1.msra.mxu0 %v958
    %3608 = vmatprep.subr.mxu0 0.0
    %3609 = vmatpush1.msra.mxu0 %v959
    %3610 = vmatprep.subr.mxu0 0.0
    %3611 = vmatpush1.msra.mxu0 %v960
    %3612 = vmatprep.mubr.f32.mxu0 %v1463
    %3613 = vmatmul.mubr.f32.gmra.mrb[0].mxu0 %v1455
    %v3614 = vpop.f32.mrb[0].mxu0
    %v3615 = vadd.f32 %v3545, %v3614
    %v3616 = vpop.f32.mrb[0].mxu0
    %3617 = vdwg.mxu0
    %3618 = vmatprep.subr.mxu0 0.0
    %3619 = vmatpush1.msra.mxu0 %v961
    %3620 = vmatprep.subr.mxu0 0.0
    %3621 = vmatpush1.msra.mxu0 %v962
    %3622 = vmatprep.subr.mxu0 0.0
    %3623 = vmatpush1.msra.mxu0 %v963
    %3624 = vmatprep.subr.mxu0 0.0
    %3625 = vmatpush1.msra.mxu0 %v964
    %3626 = vmatprep.subr.mxu0 0.0
    %3627 = vmatpush1.msra.mxu0 %v965
    %3628 = vmatprep.subr.mxu0 0.0
    %3629 = vmatpush1.msra.mxu0 %v966
    %3630 = vmatprep.subr.mxu0 0.0
    %3631 = vmatpush1.msra.mxu0 %v967
    %3632 = vmatprep.subr.mxu0 0.0
    %3633 = vmatpush1.msra.mxu0 %v968
    %3634 = vmatprep.subr.mxu0 0.0
    %3635 = vmatpush1.msra.mxu0 %v969
    %3636 = vmatprep.subr.mxu0 0.0
    %3637 = vmatpush1.msra.mxu0 %v970
    %3638 = vmatprep.subr.mxu0 0.0
    %3639 = vmatpush1.msra.mxu0 %v971
    %3640 = vmatprep.subr.mxu0 0.0
    %3641 = vmatpush1.msra.mxu0 %v972
    %3642 = vmatprep.subr.mxu0 0.0
    %3643 = vmatpush1.msra.mxu0 %v973
    %3644 = vmatprep.subr.mxu0 0.0
    %3645 = vmatpush1.msra.mxu0 %v974
    %3646 = vmatprep.subr.mxu0 0.0
    %3647 = vmatpush1.msra.mxu0 %v975
    %3648 = vmatprep.subr.mxu0 0.0
    %3649 = vmatpush1.msra.mxu0 %v976
    %3650 = vmatprep.subr.mxu0 0.0
    %3651 = vmatpush1.msra.mxu0 %v977
    %3652 = vmatprep.subr.mxu0 0.0
    %3653 = vmatpush1.msra.mxu0 %v978
    %3654 = vmatprep.subr.mxu0 0.0
    %3655 = vmatpush1.msra.mxu0 %v979
    %3656 = vmatprep.subr.mxu0 0.0
    %3657 = vmatpush1.msra.mxu0 %v980
    %3658 = vmatprep.subr.mxu0 0.0
    %3659 = vmatpush1.msra.mxu0 %v981
    %3660 = vmatprep.subr.mxu0 0.0
    %3661 = vmatpush1.msra.mxu0 %v982
    %3662 = vmatprep.subr.mxu0 0.0
    %3663 = vmatpush1.msra.mxu0 %v983
    %3664 = vmatprep.subr.mxu0 0.0
    %3665 = vmatpush1.msra.mxu0 %v984
    %3666 = vmatprep.subr.mxu0 0.0
    %3667 = vmatpush1.msra.mxu0 %v985
    %3668 = vmatprep.subr.mxu0 0.0
    %3669 = vmatpush1.msra.mxu0 %v986
    %3670 = vmatprep.subr.mxu0 0.0
    %3671 = vmatpush1.msra.mxu0 %v987
    %3672 = vmatprep.subr.mxu0 0.0
    %3673 = vmatpush1.msra.mxu0 %v988
    %3674 = vmatprep.subr.mxu0 0.0
    %3675 = vmatpush1.msra.mxu0 %v989
    %3676 = vmatprep.subr.mxu0 0.0
    %3677 = vmatpush1.msra.mxu0 %v990
    %3678 = vmatprep.subr.mxu0 0.0
    %3679 = vmatpush1.msra.mxu0 %v991
    %3680 = vmatprep.subr.mxu0 0.0
    %3681 = vmatpush1.msra.mxu0 %v992
    %3682 = vmatprep.mubr.f32.mxu0 %v1464
    %3683 = vmatmul.mubr.f32.gmra.mrb[0].mxu0 %v1462
    %v3684 = vpop.f32.mrb[0].mxu0
    %v3685 = vadd.f32 %v3615, %v3684
    %v3686 = vpop.f32.mrb[0].mxu0
    %3687 = vdwg.mxu0
    %3688 = vmatprep.subr.mxu0 0.0
    %3689 = vmatpush1.msra.mxu0 %v993
    %3690 = vmatprep.subr.mxu0 0.0
    %3691 = vmatpush1.msra.mxu0 %v994
    %3692 = vmatprep.subr.mxu0 0.0
    %3693 = vmatpush1.msra.mxu0 %v995
    %3694 = vmatprep.subr.mxu0 0.0
    %3695 = vmatpush1.msra.mxu0 %v996
    %3696 = vmatprep.subr.mxu0 0.0
    %3697 = vmatpush1.msra.mxu0 %v997
    %3698 = vmatprep.subr.mxu0 0.0
    %3699 = vmatpush1.msra.mxu0 %v998
    %3700 = vmatprep.subr.mxu0 0.0
    %3701 = vmatpush1.msra.mxu0 %v999
    %3702 = vmatprep.subr.mxu0 0.0
    %3703 = vmatpush1.msra.mxu0 %v1000
    %3704 = vmatprep.subr.mxu0 0.0
    %3705 = vmatpush1.msra.mxu0 %v1001
    %3706 = vmatprep.subr.mxu0 0.0
    %3707 = vmatpush1.msra.mxu0 %v1002
    %3708 = vmatprep.subr.mxu0 0.0
    %3709 = vmatpush1.msra.mxu0 %v1003
    %3710 = vmatprep.subr.mxu0 0.0
    %3711 = vmatpush1.msra.mxu0 %v1004
    %3712 = vmatprep.subr.mxu0 0.0
    %3713 = vmatpush1.msra.mxu0 %v1005
    %3714 = vmatprep.subr.mxu0 0.0
    %3715 = vmatpush1.msra.mxu0 %v1006
    %3716 = vmatprep.subr.mxu0 0.0
    %3717 = vmatpush1.msra.mxu0 %v1007
    %3718 = vmatprep.subr.mxu0 0.0
    %3719 = vmatpush1.msra.mxu0 %v1008
    %3720 = vmatprep.subr.mxu0 0.0
    %3721 = vmatpush1.msra.mxu0 %v1009
    %3722 = vmatprep.subr.mxu0 0.0
    %3723 = vmatpush1.msra.mxu0 %v1010
    %3724 = vmatprep.subr.mxu0 0.0
    %3725 = vmatpush1.msra.mxu0 %v1011
    %3726 = vmatprep.subr.mxu0 0.0
    %3727 = vmatpush1.msra.mxu0 %v1012
    %3728 = vmatprep.subr.mxu0 0.0
    %3729 = vmatpush1.msra.mxu0 %v1013
    %3730 = vmatprep.subr.mxu0 0.0
    %3731 = vmatpush1.msra.mxu0 %v1014
    %3732 = vmatprep.subr.mxu0 0.0
    %3733 = vmatpush1.msra.mxu0 %v1015
    %3734 = vmatprep.subr.mxu0 0.0
    %3735 = vmatpush1.msra.mxu0 %v1016
    %3736 = vmatprep.subr.mxu0 0.0
    %3737 = vmatpush1.msra.mxu0 %v1017
    %3738 = vmatprep.subr.mxu0 0.0
    %3739 = vmatpush1.msra.mxu0 %v1018
    %3740 = vmatprep.subr.mxu0 0.0
    %3741 = vmatpush1.msra.mxu0 %v1019
    %3742 = vmatprep.subr.mxu0 0.0
    %3743 = vmatpush1.msra.mxu0 %v1020
    %3744 = vmatprep.subr.mxu0 0.0
    %3745 = vmatpush1.msra.mxu0 %v1021
    %3746 = vmatprep.subr.mxu0 0.0
    %3747 = vmatpush1.msra.mxu0 %v1022
    %3748 = vmatprep.subr.mxu0 0.0
    %3749 = vmatpush1.msra.mxu0 %v1023
    %3750 = vmatprep.subr.mxu0 0.0
    %3751 = vmatpush1.msra.mxu0 %v1024
    %3752 = vmatprep.mubr.f32.mxu0 %v1480
    %3753 = vmatmul.mubr.f32.gmra.mrb[0].mxu0 %v1472
    %v3754 = vpop.f32.mrb[0].mxu0
    %v3755 = vadd.f32 %v3685, %v3754
    %v3756 = vpop.f32.mrb[0].mxu0
    %3757 = vdwg.mxu0
    %3758 = vmatprep.subr.mxu0 0.0
    %3759 = vmatpush1.msra.mxu0 %v1025
    %3760 = vmatprep.subr.mxu0 0.0
    %3761 = vmatpush1.msra.mxu0 %v1026
    %3762 = vmatprep.subr.mxu0 0.0
    %3763 = vmatpush1.msra.mxu0 %v1027
    %3764 = vmatprep.subr.mxu0 0.0
    %3765 = vmatpush1.msra.mxu0 %v1028
    %3766 = vmatprep.subr.mxu0 0.0
    %3767 = vmatpush1.msra.mxu0 %v1029
    %3768 = vmatprep.subr.mxu0 0.0
    %3769 = vmatpush1.msra.mxu0 %v1030
    %3770 = vmatprep.subr.mxu0 0.0
    %3771 = vmatpush1.msra.mxu0 %v1031
    %3772 = vmatprep.subr.mxu0 0.0
    %3773 = vmatpush1.msra.mxu0 %v1032
    %3774 = vmatprep.subr.mxu0 0.0
    %3775 = vmatpush1.msra.mxu0 %v1033
    %3776 = vmatprep.subr.mxu0 0.0
    %3777 = vmatpush1.msra.mxu0 %v1034
    %3778 = vmatprep.subr.mxu0 0.0
    %3779 = vmatpush1.msra.mxu0 %v1035
    %3780 = vmatprep.subr.mxu0 0.0
    %3781 = vmatpush1.msra.mxu0 %v1036
    %3782 = vmatprep.subr.mxu0 0.0
    %3783 = vmatpush1.msra.mxu0 %v1037
    %3784 = vmatprep.subr.mxu0 0.0
    %3785 = vmatpush1.msra.mxu0 %v1038
    %3786 = vmatprep.subr.mxu0 0.0
    %3787 = vmatpush1.msra.mxu0 %v1039
    %3788 = vmatprep.subr.mxu0 0.0
    %3789 = vmatpush1.msra.mxu0 %v1040
    %3790 = vmatprep.subr.mxu0 0.0
    %3791 = vmatpush1.msra.mxu0 %v1041
    %3792 = vmatprep.subr.mxu0 0.0
    %3793 = vmatpush1.msra.mxu0 %v1042
    %3794 = vmatprep.subr.mxu0 0.0
    %3795 = vmatpush1.msra.mxu0 %v1043
    %3796 = vmatprep.subr.mxu0 0.0
    %3797 = vmatpush1.msra.mxu0 %v1044
    %3798 = vmatprep.subr.mxu0 0.0
    %3799 = vmatpush1.msra.mxu0 %v1045
    %3800 = vmatprep.subr.mxu0 0.0
    %3801 = vmatpush1.msra.mxu0 %v1046
    %3802 = vmatprep.subr.mxu0 0.0
    %3803 = vmatpush1.msra.mxu0 %v1047
    %3804 = vmatprep.subr.mxu0 0.0
    %3805 = vmatpush1.msra.mxu0 %v1048
    %3806 = vmatprep.subr.mxu0 0.0
    %3807 = vmatpush1.msra.mxu0 %v1049
    %3808 = vmatprep.subr.mxu0 0.0
    %3809 = vmatpush1.msra.mxu0 %v1050
    %3810 = vmatprep.subr.mxu0 0.0
    %3811 = vmatpush1.msra.mxu0 %v1051
    %3812 = vmatprep.subr.mxu0 0.0
    %3813 = vmatpush1.msra.mxu0 %v1052
    %3814 = vmatprep.subr.mxu0 0.0
    %3815 = vmatpush1.msra.mxu0 %v1053
    %3816 = vmatprep.subr.mxu0 0.0
    %3817 = vmatpush1.msra.mxu0 %v1054
    %3818 = vmatprep.subr.mxu0 0.0
    %3819 = vmatpush1.msra.mxu0 %v1055
    %3820 = vmatprep.subr.mxu0 0.0
    %3821 = vmatpush1.msra.mxu0 %v1056
    %3822 = vmatprep.mubr.f32.mxu0 %v1481
    %3823 = vmatmul.mubr.f32.gmra.mrb[0].mxu0 %v1479
    %v3824 = vpop.f32.mrb[0].mxu0
    %v3825 = vadd.f32 %v3755, %v3824
    %v3826 = vpop.f32.mrb[0].mxu0
    %3827 = vdwg.mxu0
    %3828 = vmatprep.subr.mxu0 0.0
    %3829 = vmatpush1.msra.mxu0 %v1057
    %3830 = vmatprep.subr.mxu0 0.0
    %3831 = vmatpush1.msra.mxu0 %v1058
    %3832 = vmatprep.subr.mxu0 0.0
    %3833 = vmatpush1.msra.mxu0 %v1059
    %3834 = vmatprep.subr.mxu0 0.0
    %3835 = vmatpush1.msra.mxu0 %v1060
    %3836 = vmatprep.subr.mxu0 0.0
    %3837 = vmatpush1.msra.mxu0 %v1061
    %3838 = vmatprep.subr.mxu0 0.0
    %3839 = vmatpush1.msra.mxu0 %v1062
    %3840 = vmatprep.subr.mxu0 0.0
    %3841 = vmatpush1.msra.mxu0 %v1063
    %3842 = vmatprep.subr.mxu0 0.0
    %3843 = vmatpush1.msra.mxu0 %v1064
    %3844 = vmatprep.subr.mxu0 0.0
    %3845 = vmatpush1.msra.mxu0 %v1065
    %3846 = vmatprep.subr.mxu0 0.0
    %3847 = vmatpush1.msra.mxu0 %v1066
    %3848 = vmatprep.subr.mxu0 0.0
    %3849 = vmatpush1.msra.mxu0 %v1067
    %3850 = vmatprep.subr.mxu0 0.0
    %3851 = vmatpush1.msra.mxu0 %v1068
    %3852 = vmatprep.subr.mxu0 0.0
    %3853 = vmatpush1.msra.mxu0 %v1069
    %3854 = vmatprep.subr.mxu0 0.0
    %3855 = vmatpush1.msra.mxu0 %v1070
    %3856 = vmatprep.subr.mxu0 0.0
    %3857 = vmatpush1.msra.mxu0 %v1071
    %3858 = vmatprep.subr.mxu0 0.0
    %3859 = vmatpush1.msra.mxu0 %v1072
    %3860 = vmatprep.subr.mxu0 0.0
    %3861 = vmatpush1.msra.mxu0 %v1073
    %3862 = vmatprep.subr.mxu0 0.0
    %3863 = vmatpush1.msra.mxu0 %v1074
    %3864 = vmatprep.subr.mxu0 0.0
    %3865 = vmatpush1.msra.mxu0 %v1075
    %3866 = vmatprep.subr.mxu0 0.0
    %3867 = vmatpush1.msra.mxu0 %v1076
    %3868 = vmatprep.subr.mxu0 0.0
    %3869 = vmatpush1.msra.mxu0 %v1077
    %3870 = vmatprep.subr.mxu0 0.0
    %3871 = vmatpush1.msra.mxu0 %v1078
    %3872 = vmatprep.subr.mxu0 0.0
    %3873 = vmatpush1.msra.mxu0 %v1079
    %3874 = vmatprep.subr.mxu0 0.0
    %3875 = vmatpush1.msra.mxu0 %v1080
    %3876 = vmatprep.subr.mxu0 0.0
    %3877 = vmatpush1.msra.mxu0 %v1081
    %3878 = vmatprep.subr.mxu0 0.0
    %3879 = vmatpush1.msra.mxu0 %v1082
    %3880 = vmatprep.subr.mxu0 0.0
    %3881 = vmatpush1.msra.mxu0 %v1083
    %3882 = vmatprep.subr.mxu0 0.0
    %3883 = vmatpush1.msra.mxu0 %v1084
    %3884 = vmatprep.subr.mxu0 0.0
    %3885 = vmatpush1.msra.mxu0 %v1085
    %3886 = vmatprep.subr.mxu0 0.0
    %3887 = vmatpush1.msra.mxu0 %v1086
    %3888 = vmatprep.subr.mxu0 0.0
    %3889 = vmatpush1.msra.mxu0 %v1087
    %3890 = vmatprep.subr.mxu0 0.0
    %3891 = vmatpush1.msra.mxu0 %v1088
    %3892 = vmatprep.mubr.f32.mxu0 %v1497
    %3893 = vmatmul.mubr.f32.gmra.mrb[0].mxu0 %v1489
    %v3894 = vpop.f32.mrb[0].mxu0
    %v3895 = vadd.f32 %v3825, %v3894
    %v3896 = vpop.f32.mrb[0].mxu0
    %3897 = vdwg.mxu0
    %3898 = vmatprep.subr.mxu0 0.0
    %3899 = vmatpush1.msra.mxu0 %v1089
    %3900 = vmatprep.subr.mxu0 0.0
    %3901 = vmatpush1.msra.mxu0 %v1090
    %3902 = vmatprep.subr.mxu0 0.0
    %3903 = vmatpush1.msra.mxu0 %v1091
    %3904 = vmatprep.subr.mxu0 0.0
    %3905 = vmatpush1.msra.mxu0 %v1092
    %3906 = vmatprep.subr.mxu0 0.0
    %3907 = vmatpush1.msra.mxu0 %v1093
    %3908 = vmatprep.subr.mxu0 0.0
    %3909 = vmatpush1.msra.mxu0 %v1094
    %3910 = vmatprep.subr.mxu0 0.0
    %3911 = vmatpush1.msra.mxu0 %v1095
    %3912 = vmatprep.subr.mxu0 0.0
    %3913 = vmatpush1.msra.mxu0 %v1096
    %3914 = vmatprep.subr.mxu0 0.0
    %3915 = vmatpush1.msra.mxu0 %v1097
    %3916 = vmatprep.subr.mxu0 0.0
    %3917 = vmatpush1.msra.mxu0 %v1098
    %3918 = vmatprep.subr.mxu0 0.0
    %3919 = vmatpush1.msra.mxu0 %v1099
    %3920 = vmatprep.subr.mxu0 0.0
    %3921 = vmatpush1.msra.mxu0 %v1100
    %3922 = vmatprep.subr.mxu0 0.0
    %3923 = vmatpush1.msra.mxu0 %v1101
    %3924 = vmatprep.subr.mxu0 0.0
    %3925 = vmatpush1.msra.mxu0 %v1102
    %3926 = vmatprep.subr.mxu0 0.0
    %3927 = vmatpush1.msra.mxu0 %v1103
    %3928 = vmatprep.subr.mxu0 0.0
    %3929 = vmatpush1.msra.mxu0 %v1104
    %3930 = vmatprep.subr.mxu0 0.0
    %3931 = vmatpush1.msra.mxu0 %v1105
    %3932 = vmatprep.subr.mxu0 0.0
    %3933 = vmatpush1.msra.mxu0 %v1106
    %3934 = vmatprep.subr.mxu0 0.0
    %3935 = vmatpush1.msra.mxu0 %v1107
    %3936 = vmatprep.subr.mxu0 0.0
    %3937 = vmatpush1.msra.mxu0 %v1108
    %3938 = vmatprep.subr.mxu0 0.0
    %3939 = vmatpush1.msra.mxu0 %v1109
    %3940 = vmatprep.subr.mxu0 0.0
    %3941 = vmatpush1.msra.mxu0 %v1110
    %3942 = vmatprep.subr.mxu0 0.0
    %3943 = vmatpush1.msra.mxu0 %v1111
    %3944 = vmatprep.subr.mxu0 0.0
    %3945 = vmatpush1.msra.mxu0 %v1112
    %3946 = vmatprep.subr.mxu0 0.0
    %3947 = vmatpush1.msra.mxu0 %v1113
    %3948 = vmatprep.subr.mxu0 0.0
    %3949 = vmatpush1.msra.mxu0 %v1114
    %3950 = vmatprep.subr.mxu0 0.0
    %3951 = vmatpush1.msra.mxu0 %v1115
    %3952 = vmatprep.subr.mxu0 0.0
    %3953 = vmatpush1.msra.mxu0 %v1116
    %3954 = vmatprep.subr.mxu0 0.0
    %3955 = vmatpush1.msra.mxu0 %v1117
    %3956 = vmatprep.subr.mxu0 0.0
    %3957 = vmatpush1.msra.mxu0 %v1118
    %3958 = vmatprep.subr.mxu0 0.0
    %3959 = vmatpush1.msra.mxu0 %v1119
    %3960 = vmatprep.subr.mxu0 0.0
    %3961 = vmatpush1.msra.mxu0 %v1120
    %3962 = vmatprep.mubr.f32.mxu0 %v1498
    %3963 = vmatmul.mubr.f32.gmra.mrb[0].mxu0 %v1496
    %v3964 = vpop.f32.mrb[0].mxu0
    %v3965 = vadd.f32 %v3895, %v3964
    %v3966 = vpop.f32.mrb[0].mxu0
    %3967 = vdwg.mxu0
    %3968 = vmatprep.subr.mxu0 0.0
    %3969 = vmatpush1.msra.mxu0 %v1121
    %3970 = vmatprep.subr.mxu0 0.0
    %3971 = vmatpush1.msra.mxu0 %v1122
    %3972 = vmatprep.subr.mxu0 0.0
    %3973 = vmatpush1.msra.mxu0 %v1123
    %3974 = vmatprep.subr.mxu0 0.0
    %3975 = vmatpush1.msra.mxu0 %v1124
    %3976 = vmatprep.subr.mxu0 0.0
    %3977 = vmatpush1.msra.mxu0 %v1125
    %3978 = vmatprep.subr.mxu0 0.0
    %3979 = vmatpush1.msra.mxu0 %v1126
    %3980 = vmatprep.subr.mxu0 0.0
    %3981 = vmatpush1.msra.mxu0 %v1127
    %3982 = vmatprep.subr.mxu0 0.0
    %3983 = vmatpush1.msra.mxu0 %v1128
    %3984 = vmatprep.subr.mxu0 0.0
    %3985 = vmatpush1.msra.mxu0 %v1129
    %3986 = vmatprep.subr.mxu0 0.0
    %3987 = vmatpush1.msra.mxu0 %v1130
    %3988 = vmatprep.subr.mxu0 0.0
    %3989 = vmatpush1.msra.mxu0 %v1131
    %3990 = vmatprep.subr.mxu0 0.0
    %3991 = vmatpush1.msra.mxu0 %v1132
    %3992 = vmatprep.subr.mxu0 0.0
    %3993 = vmatpush1.msra.mxu0 %v1133
    %3994 = vmatprep.subr.mxu0 0.0
    %3995 = vmatpush1.msra.mxu0 %v1134
    %3996 = vmatprep.subr.mxu0 0.0
    %3997 = vmatpush1.msra.mxu0 %v1135
    %3998 = vmatprep.subr.mxu0 0.0
    %3999 = vmatpush1.msra.mxu0 %v1136
    %4000 = vmatprep.subr.mxu0 0.0
    %4001 = vmatpush1.msra.mxu0 %v1137
    %4002 = vmatprep.subr.mxu0 0.0
    %4003 = vmatpush1.msra.mxu0 %v1138
    %4004 = vmatprep.subr.mxu0 0.0
    %4005 = vmatpush1.msra.mxu0 %v1139
    %4006 = vmatprep.subr.mxu0 0.0
    %4007 = vmatpush1.msra.mxu0 %v1140
    %4008 = vmatprep.subr.mxu0 0.0
    %4009 = vmatpush1.msra.mxu0 %v1141
    %4010 = vmatprep.subr.mxu0 0.0
    %4011 = vmatpush1.msra.mxu0 %v1142
    %4012 = vmatprep.subr.mxu0 0.0
    %4013 = vmatpush1.msra.mxu0 %v1143
    %4014 = vmatprep.subr.mxu0 0.0
    %4015 = vmatpush1.msra.mxu0 %v1144
    %4016 = vmatprep.subr.mxu0 0.0
    %4017 = vmatpush1.msra.mxu0 %v1145
    %4018 = vmatprep.subr.mxu0 0.0
    %4019 = vmatpush1.msra.mxu0 %v1146
    %4020 = vmatprep.subr.mxu0 0.0
    %4021 = vmatpush1.msra.mxu0 %v1147
    %4022 = vmatprep.subr.mxu0 0.0
    %4023 = vmatpush1.msra.mxu0 %v1148
    %4024 = vmatprep.subr.mxu0 0.0
    %4025 = vmatpush1.msra.mxu0 %v1149
    %4026 = vmatprep.subr.mxu0 0.0
    %4027 = vmatpush1.msra.mxu0 %v1150
    %4028 = vmatprep.subr.mxu0 0.0
    %4029 = vmatpush1.msra.mxu0 %v1151
    %4030 = vmatprep.subr.mxu0 0.0
    %4031 = vmatpush1.msra.mxu0 %v1152
    %4032 = vmatprep.mubr.f32.mxu0 %v1514
    %4033 = vmatmul.mubr.f32.gmra.mrb[0].mxu0 %v1506
    %v4034 = vpop.f32.mrb[0].mxu0
    %v4035 = vadd.f32 %v3965, %v4034
    %v4036 = vpop.f32.mrb[0].mxu0
    %4037 = vdwg.mxu0
    %4038 = vmatprep.subr.mxu0 0.0
    %4039 = vmatpush1.msra.mxu0 %v1153
    %4040 = vmatprep.subr.mxu0 0.0
    %4041 = vmatpush1.msra.mxu0 %v1154
    %4042 = vmatprep.subr.mxu0 0.0
    %4043 = vmatpush1.msra.mxu0 %v1155
    %4044 = vmatprep.subr.mxu0 0.0
    %4045 = vmatpush1.msra.mxu0 %v1156
    %4046 = vmatprep.subr.mxu0 0.0
    %4047 = vmatpush1.msra.mxu0 %v1157
    %4048 = vmatprep.subr.mxu0 0.0
    %4049 = vmatpush1.msra.mxu0 %v1158
    %4050 = vmatprep.subr.mxu0 0.0
    %4051 = vmatpush1.msra.mxu0 %v1159
    %4052 = vmatprep.subr.mxu0 0.0
    %4053 = vmatpush1.msra.mxu0 %v1160
    %4054 = vmatprep.subr.mxu0 0.0
    %4055 = vmatpush1.msra.mxu0 %v1161
    %4056 = vmatprep.subr.mxu0 0.0
    %4057 = vmatpush1.msra.mxu0 %v1162
    %4058 = vmatprep.subr.mxu0 0.0
    %4059 = vmatpush1.msra.mxu0 %v1163
    %4060 = vmatprep.subr.mxu0 0.0
    %4061 = vmatpush1.msra.mxu0 %v1164
    %4062 = vmatprep.subr.mxu0 0.0
    %4063 = vmatpush1.msra.mxu0 %v1165
    %4064 = vmatprep.subr.mxu0 0.0
    %4065 = vmatpush1.msra.mxu0 %v1166
    %4066 = vmatprep.subr.mxu0 0.0
    %4067 = vmatpush1.msra.mxu0 %v1167
    %4068 = vmatprep.subr.mxu0 0.0
    %4069 = vmatpush1.msra.mxu0 %v1168
    %4070 = vmatprep.subr.mxu0 0.0
    %4071 = vmatpush1.msra.mxu0 %v1169
    %4072 = vmatprep.subr.mxu0 0.0
    %4073 = vmatpush1.msra.mxu0 %v1170
    %4074 = vmatprep.subr.mxu0 0.0
    %4075 = vmatpush1.msra.mxu0 %v1171
    %4076 = vmatprep.subr.mxu0 0.0
    %4077 = vmatpush1.msra.mxu0 %v1172
    %4078 = vmatprep.subr.mxu0 0.0
    %4079 = vmatpush1.msra.mxu0 %v1173
    %4080 = vmatprep.subr.mxu0 0.0
    %4081 = vmatpush1.msra.mxu0 %v1174
    %4082 = vmatprep.subr.mxu0 0.0
    %4083 = vmatpush1.msra.mxu0 %v1175
    %4084 = vmatprep.subr.mxu0 0.0
    %4085 = vmatpush1.msra.mxu0 %v1176
    %4086 = vmatprep.subr.mxu0 0.0
    %4087 = vmatpush1.msra.mxu0 %v1177
    %4088 = vmatprep.subr.mxu0 0.0
    %4089 = vmatpush1.msra.mxu0 %v1178
    %4090 = vmatprep.subr.mxu0 0.0
    %4091 = vmatpush1.msra.mxu0 %v1179
    %4092 = vmatprep.subr.mxu0 0.0
    %4093 = vmatpush1.msra.mxu0 %v1180
    %4094 = vmatprep.subr.mxu0 0.0
    %4095 = vmatpush1.msra.mxu0 %v1181
    %4096 = vmatprep.subr.mxu0 0.0
    %4097 = vmatpush1.msra.mxu0 %v1182
    %4098 = vmatprep.subr.mxu0 0.0
    %4099 = vmatpush1.msra.mxu0 %v1183
    %4100 = vmatprep.subr.mxu0 0.0
    %4101 = vmatpush1.msra.mxu0 %v1184
    %4102 = vmatprep.mubr.f32.mxu0 %v1515
    %4103 = vmatmul.mubr.f32.gmra.mrb[0].mxu0 %v1513
    %v4104 = vpop.f32.mrb[0].mxu0
    %v4105 = vadd.f32 %v4035, %v4104
    %v4106 = vpop.f32.mrb[0].mxu0
    %4107 = vdwg.mxu0
    %vm4108 = vcmask 500736
    %v4109 = vsel %vm4108, %v4105, -inf
    %4110 = vmax.xlane.f32.xlu0 %v4109
    %v4111 = vpop.xlane.xlu0 %4110
    %v4112 = vsub.f32 %v4105, %v4111
    %v4113 = vmul.f32 %v4112, 1.442695
    %v4114 = vpow.pop %v4113
    %v4115 = vsel %vm4108, %v4114, 0.0
    %4116 = vadd.xlane.f32.xlu0 %v4115
    %v4117 = vpop.xlane.xlu0 %4116
    %v4118 = vlog2.pop %v4117
    %v4119 = vmul.f32 %v4118, 0.6931472
    %v4120 = vsub.f32 %v4112, %v4119
    %4121 = vst.msk [vmem:[#allocation2] sm:$0x3] %vm4108, %v4120
    // Predicated region
    $region14: #{aux_model_femnist_forward.1} parent=1 // pred_check
      _
    $region15: #{aux_model_femnist_forward.1} parent=1 // pred_check_branch
      %4123 = sbr.rel (0) target = $region17
    $region16: #{aux_model_femnist_forward.1} parent=1 // pred_region
      %s4125 = ssub.s32 32, 32
      %4126 = vsyncadd [#allocation3], %s4125
      %s4128 = sshll.u32 [#allocation2], 4
      %s4129 = int_to_ptr.vmem [resolvable:$true] %s4128
      %4131 = dma.vmem_to_hbm [thread:$0]  %s4129, 32, %s3, [#allocation3]
    $region17: #{aux_model_femnist_forward.1} parent=1 // pred_fallthru
      _
    // Predicated region
    $region18: #{aux_model_femnist_forward.1} parent=1 // pred_check
      _
    $region19: #{aux_model_femnist_forward.1} parent=1 // pred_check_branch
      %4133 = sbr.rel (0) target = $region21
    $region20: #{aux_model_femnist_forward.1} parent=1 // pred_region
      %4134 = dma.done [#allocation3], 32
    $region21: #{aux_model_femnist_forward.1} parent=1 // pred_fallthru
      _
    %4135 = vsyncpa [#allocation3], 1

</llo_original>
